<compile_context>
chip_gen: v7x
topology: tpu7x:2x2x1
jax: 0.10.0
libtpu: 0.0.40
codegen_flags: <defaults>
</compile_context>

<pallas_src>
import jax
import jax.numpy as jnp
from jax.experimental import pallas as pl
from jax.experimental.pallas import tpu as pltpu

NR_CLASSES = 2          # len(set(y_vals))
SEQ_LEN = 100           # implied by nn.Linear(1600, nr_classes): 32 * (L // 2) = 1600
POOL_LEN = SEQ_LEN // 2 # 50 pooled positions
C1, C2 = 32, 32         # conv channel counts
KTAPS = 3               # conv1 kernel size
LANES = 128             # TPU lane width; signal (100 + 2 'same' pads) lives in lanes 0..101
TILE_N = 8              # samples per grid step (sublane multiple)


# --------------------------------------------------------------------------
# Fused conv1+ReLU -> conv2(1x1)+ReLU -> MaxPool1d(2) -> flatten -> fc2 kernel
# --------------------------------------------------------------------------
def _c1d_fused_kernel(xp_ref, w1_ref, b1_ref, w2_ref, b2_ref, fcw_ref, fcb_ref,
                      out_ref):
    """One grid step = TILE_N samples, everything resident in VMEM/vregs.

    Per-sample layout: channels on sublanes, signal positions on lanes.
      xp_ref : (TILE_N, LANES)          padded signal; lane p holds x[p-1] for 1<=p<=100
      w1_ref : (KTAPS, C1, 1)           w1[k, c, 0] = torch conv1.weight[c, 0, k]
      b1_ref : (C1, 1)
      w2_ref : (C2, C1)                 conv2 1x1 weight, (out, in)
      b2_ref : (C2, 1)
      fcw_ref: (NR_CLASSES, C2, LANES)  fc2 weight scattered onto even lanes (zeros elsewhere)
      fcb_ref: (1, NR_CLASSES)
      out_ref: (TILE_N, NR_CLASSES)     logits
    """
    w1 = w1_ref[...]
    b1 = b1_ref[...]
    w2 = w2_ref[...]
    b2 = b2_ref[...]
    fcw = fcw_ref[...]
    fcb = fcb_ref[...]

    # 3 conv taps built in-kernel with lane rotations (XLU): t1[:, l] = xp[:, l+1], etc.
    xp = xp_ref[...]                                       # (TILE_N, LANES)
    xp1 = pltpu.roll(xp, shift=LANES - 1, axis=1)
    xp2 = pltpu.roll(xp, shift=LANES - 2, axis=1)

    # conv1 (Cin=1, k=3, 'same') + ReLU: (C1,1) x (1,LANES) VPU broadcasts per sample.
    # Samples are concatenated along lanes so conv2 becomes a single MXU matmul
    # (w2 staged once, lane-dense result).
    h1_parts = []
    for s in range(TILE_N):
        acc = (w1[0] * xp[s:s + 1, :]
               + w1[1] * xp1[s:s + 1, :]
               + w1[2] * xp2[s:s + 1, :]
               + b1)                                       # (C1, LANES)
        h1_parts.append(jnp.maximum(acc, 0.0))
    h1_all = jnp.concatenate(h1_parts, axis=1)             # (C1, TILE_N*LANES)

    # conv2 (1x1) + ReLU: one (C2, C1) @ (C1, TILE_N*LANES) MXU matmul.
    h2_all = jnp.dot(w2, h1_all,
                     preferred_element_type=jnp.float32,
                     precision=jax.lax.Precision.HIGHEST)
    h2_all = jnp.maximum(h2_all + b2, 0.0)                 # (C2, TILE_N*LANES)

    # Class-column iota used to scatter the per-class scalars into the (1, 2) row.
    col = jax.lax.broadcasted_iota(jnp.int32, (1, NR_CLASSES), 1)

    for s in range(TILE_N):
        h2_s = h2_all[:, s * LANES:(s + 1) * LANES]        # (C2, LANES)
        # MaxPool1d(2): neighbour max; pooled value j sits on lane 2*j.  Odd and
        # padded lanes carry finite junk which fcw zeros out.
        pooled = jnp.maximum(h2_s, pltpu.roll(h2_s, shift=LANES - 1, axis=1))
        # fc2 (Linear 1600 -> 2) + torch flatten order, folded in: elementwise
        # multiply with the lane-expanded weights, then lane + sublane reductions.
        row = fcb                                          # (1, NR_CLASSES)
        for t in range(NR_CLASSES):
            v = jnp.sum(pooled * fcw[t], axis=1, keepdims=True)   # (C2, 1)
            v = jnp.sum(v, axis=0, keepdims=True)                 # (1, 1)
            row = row + jnp.where(col == t, v, 0.0)
        out_ref[s:s + 1, :] = row


def fused_forward(xp, kp):
    n_pad = xp.shape[0]
    return pl.pallas_call(
        _c1d_fused_kernel,
        out_shape=jax.ShapeDtypeStruct((n_pad, NR_CLASSES), jnp.float32),
        grid=(n_pad // TILE_N,),
        in_specs=[
            pl.BlockSpec((TILE_N, LANES), lambda i: (i, 0)),
            pl.BlockSpec((KTAPS, C1, 1), lambda i: (0, 0, 0)),
            pl.BlockSpec((C1, 1), lambda i: (0, 0)),
            pl.BlockSpec((C2, C1), lambda i: (0, 0)),
            pl.BlockSpec((C2, 1), lambda i: (0, 0)),
            pl.BlockSpec((NR_CLASSES, C2, LANES), lambda i: (0, 0, 0)),
            pl.BlockSpec((1, NR_CLASSES), lambda i: (0, 0)),
        ],
        out_specs=pl.BlockSpec((TILE_N, NR_CLASSES), lambda i: (i, 0)),
        compiler_params=pltpu.CompilerParams(
            dimension_semantics=("parallel",)),
    )(xp, kp["w1"], kp["b1"], kp["w2"], kp["b2"], kp["fcw"], kp["fcb"])


# --------------------------------------------------------------------------
# Parameter preparation (torch layouts -> kernel layouts, done once)
# --------------------------------------------------------------------------
def prepare_params(p):
    w1 = jnp.transpose(p["conv1_w"][:, 0, :], (1, 0))[:, :, None]      # (3, 32, 1)
    b1 = p["conv1_b"][:, None]                                         # (32, 1)
    w2 = p["conv2_w"][:, :, 0]                                         # (32, 32) (out, in)
    b2 = p["conv2_b"][:, None]                                         # (32, 1)
    # fc2.weight (2, 1600), feature index = c*50 + j (torch flatten order).
    fcw = p["fc2_w"].reshape(NR_CLASSES, C2, POOL_LEN)                 # (2, 32, 50)
    # Scatter onto even lanes 0,2,...,98; odd / padded lanes get zero weight.
    fcw = jnp.stack([fcw, jnp.zeros_like(fcw)], axis=-1)
    fcw = fcw.reshape(NR_CLASSES, C2, 2 * POOL_LEN)
    fcw = jnp.pad(fcw, ((0, 0), (0, 0), (0, LANES - 2 * POOL_LEN)))    # (2, 32, 128)
    fcb = p["fc2_b"][None, :]                                          # (1, 2)
    return {"w1": w1, "b1": b1, "w2": w2, "b2": b2, "fcw": fcw, "fcb": fcb}


# --------------------------------------------------------------------------
# Full forward pass
# --------------------------------------------------------------------------
def c1d_forward(kparams, x):
    """x: (N, 1, L) — same NCL layout as the PyTorch module (Cin = 1, L = 100)."""
    x = x.astype(jnp.float32)
    n, cin, length = x.shape
    assert cin == 1 and length == SEQ_LEN
    n_pad = -(-n // TILE_N) * TILE_N
    # Lane 0 / lane 101 are the conv 'same' zeros; lanes >= 102 and rows >= n are
    # zero padding (padded rows' logits are sliced off below).
    xp = jnp.zeros((n_pad, LANES), jnp.float32).at[:n, 1:1 + SEQ_LEN].set(x[:, 0, :])
    logits = fused_forward(xp, kparams)
    return logits[:n]


# --------------------------------------------------------------------------
# Pure-JAX reference (torch-layout params) for a correctness sanity check
# --------------------------------------------------------------------------
def _reference_forward(p, x):
    x = x.astype(jnp.float32)
    n = x.shape[0]
    sig = jnp.pad(x[:, 0, :], ((0, 0), (1, 1)))                        # (N, 102)
    w1 = p["conv1_w"][:, 0, :]                                         # (32, 3)
    h1 = sum(sig[:, k:k + SEQ_LEN, None] * w1[:, k][None, None, :]
             for k in range(KTAPS))
    h1 = jnp.maximum(h1 + p["conv1_b"][None, None, :], 0.0)            # (N, 100, 32)
    h2 = jnp.einsum("nlc,oc->nlo", h1, p["conv2_w"][:, :, 0],
                    precision=jax.lax.Precision.HIGHEST)
    h2 = jnp.maximum(h2 + p["conv2_b"][None, None, :], 0.0)            # (N, 100, 32)
    pooled = jnp.maximum(h2[:, 0::2, :], h2[:, 1::2, :])               # (N, 50, 32)
    feats = pooled.transpose(0, 2, 1).reshape(n, C2 * POOL_LEN)        # torch flatten order
    return jnp.dot(feats, p["fc2_w"].T,
                   precision=jax.lax.Precision.HIGHEST) + p["fc2_b"][None, :]


# --------------------------------------------------------------------------
# Deterministic synthetic parameters (torch-native layouts)
# --------------------------------------------------------------------------
def init_params(key):
    ks = jax.random.split(key, 6)
    fin_fc = C2 * POOL_LEN
    return {
        "conv1_w": jax.random.normal(ks[0], (C1, 1, KTAPS), jnp.float32) / jnp.sqrt(3.0),
        "conv1_b": 0.01 * jax.random.normal(ks[1], (C1,), jnp.float32),
        "conv2_w": jax.random.normal(ks[2], (C2, C1, 1), jnp.float32) / jnp.sqrt(float(C1)),
        "conv2_b": 0.01 * jax.random.normal(ks[3], (C2,), jnp.float32),
        "fc2_w": jax.random.normal(ks[4], (NR_CLASSES, fin_fc), jnp.float32)
                 / jnp.sqrt(float(fin_fc)),
        "fc2_b": 0.01 * jax.random.normal(ks[5], (NR_CLASSES,), jnp.float32),
    }


if __name__ == "__main__":
    key = jax.random.PRNGKey(0)
    pkey, xkey, xkey2 = jax.random.split(key, 3)
    params = init_params(pkey)
    kparams = prepare_params(params)        # one-time layout prep, outside the hot path

    fwd = jax.jit(c1d_forward)

    # torch-equivalent input (N, Cin, L) = (2, 1, 100); one grid step.
    x = jax.random.normal(xkey, (2, 1, SEQ_LEN), jnp.float32)
    logits = jax.block_until_ready(fwd(kparams, x))
    assert logits.shape == (2, NR_CLASSES), logits.shape
    assert bool(jnp.all(jnp.isfinite(logits)))
    err = float(jnp.max(jnp.abs(logits - _reference_forward(params, x))))
    assert err < 1e-2, f"mismatch vs pure-JAX reference: {err}"

    # Larger batch exercising multiple (parallel) grid steps + remainder padding.
    x2 = jax.random.normal(xkey2, (10, 1, SEQ_LEN), jnp.float32)
    logits2 = jax.block_until_ready(fwd(kparams, x2))
    assert logits2.shape == (10, NR_CLASSES), logits2.shape
    err2 = float(jnp.max(jnp.abs(logits2 - _reference_forward(params, x2))))
    assert err2 < 1e-2, f"mismatch (multi-tile) vs pure-JAX reference: {err2}"

    print("KERNEL_OK")
</pallas_src>

<mosaic_0001>
module attributes {stable_mosaic.version = 11 : i64} {
  func.func @_c1d_fused_kernel(%arg0: i32, %arg1: memref<8x128xf32, #tpu.memory_space<vmem>>, %arg2: memref<3x32x1xf32, #tpu.memory_space<vmem>>, %arg3: memref<32x1xf32, #tpu.memory_space<vmem>>, %arg4: memref<32x32xf32, #tpu.memory_space<vmem>>, %arg5: memref<32x1xf32, #tpu.memory_space<vmem>>, %arg6: memref<2x32x128xf32, #tpu.memory_space<vmem>>, %arg7: memref<1x2xf32, #tpu.memory_space<vmem>>, %arg8: memref<8x2xf32, #tpu.memory_space<vmem>>) attributes {dimension_semantics = [#tpu.dimension_semantics<parallel>], iteration_bounds = array<i64: 1>, scalar_prefetch = 0 : i64, scratch_operands = 0 : i64, tpu.core_type = #tpu.core_type<tc>, window_params = [{transform_indices = @transform_0, window_bounds = array<i64: 8, 128>}, {pipeline_mode = #tpu.pipeline_mode<synchronous>, transform_indices = @transform_1, window_bounds = array<i64: 3, 32, 1>}, {pipeline_mode = #tpu.pipeline_mode<synchronous>, transform_indices = @transform_2, window_bounds = array<i64: 32, 1>}, {pipeline_mode = #tpu.pipeline_mode<synchronous>, transform_indices = @transform_3, window_bounds = array<i64: 32, 32>}, {pipeline_mode = #tpu.pipeline_mode<synchronous>, transform_indices = @transform_4, window_bounds = array<i64: 32, 1>}, {pipeline_mode = #tpu.pipeline_mode<synchronous>, transform_indices = @transform_5, window_bounds = array<i64: 2, 32, 128>}, {pipeline_mode = #tpu.pipeline_mode<synchronous>, transform_indices = @transform_6, window_bounds = array<i64: 1, 2>}, {transform_indices = @transform_7, window_bounds = array<i64: 8, 2>}]} {
    %c0 = arith.constant 0 : index
    %c0_0 = arith.constant 0 : index
    %c0_1 = arith.constant 0 : index
    %0 = vector.load %arg2[%c0, %c0_0, %c0_1] : memref<3x32x1xf32, #tpu.memory_space<vmem>>, vector<3x32x1xf32>
    %c0_2 = arith.constant 0 : index
    %c0_3 = arith.constant 0 : index
    %1 = vector.load %arg3[%c0_2, %c0_3] : memref<32x1xf32, #tpu.memory_space<vmem>>, vector<32x1xf32>
    %c0_4 = arith.constant 0 : index
    %c0_5 = arith.constant 0 : index
    %2 = vector.load %arg4[%c0_4, %c0_5] : memref<32x32xf32, #tpu.memory_space<vmem>>, vector<32x32xf32>
    %c0_6 = arith.constant 0 : index
    %c0_7 = arith.constant 0 : index
    %3 = vector.load %arg5[%c0_6, %c0_7] : memref<32x1xf32, #tpu.memory_space<vmem>>, vector<32x1xf32>
    %c0_8 = arith.constant 0 : index
    %c0_9 = arith.constant 0 : index
    %c0_10 = arith.constant 0 : index
    %4 = vector.load %arg6[%c0_8, %c0_9, %c0_10] : memref<2x32x128xf32, #tpu.memory_space<vmem>>, vector<2x32x128xf32>
    %c0_11 = arith.constant 0 : index
    %c0_12 = arith.constant 0 : index
    %5 = vector.load %arg7[%c0_11, %c0_12] : memref<1x2xf32, #tpu.memory_space<vmem>>, vector<1x2xf32>
    %c0_13 = arith.constant 0 : index
    %c0_14 = arith.constant 0 : index
    %6 = vector.load %arg1[%c0_13, %c0_14] : memref<8x128xf32, #tpu.memory_space<vmem>>, vector<8x128xf32>
    %c127_i32 = arith.constant 127 : i32
    %7 = tpu.dynamic_rotate %6 by %c127_i32 dim 1 : vector<8x128xf32>, i32 -> vector<8x128xf32>
    %c126_i32 = arith.constant 126 : i32
    %8 = tpu.dynamic_rotate %6 by %c126_i32 dim 1 : vector<8x128xf32>, i32 -> vector<8x128xf32>
    %9 = vector.extract_strided_slice %0 {offsets = [0, 0, 0], sizes = [1, 32, 1], strides = [1, 1, 1]} : vector<3x32x1xf32> to vector<1x32x1xf32>
    %10 = vector.shape_cast %9 : vector<1x32x1xf32> to vector<32x1xf32>
    %11 = vector.extract_strided_slice %6 {offsets = [0, 0], sizes = [1, 128], strides = [1, 1]} : vector<8x128xf32> to vector<1x128xf32>
    %12 = vector.broadcast %10 : vector<32x1xf32> to vector<32x128xf32>
    %13 = vector.broadcast %11 : vector<1x128xf32> to vector<32x128xf32>
    %14 = arith.mulf %12, %13 : vector<32x128xf32>
    %15 = vector.extract_strided_slice %0 {offsets = [1, 0, 0], sizes = [1, 32, 1], strides = [1, 1, 1]} : vector<3x32x1xf32> to vector<1x32x1xf32>
    %16 = vector.shape_cast %15 : vector<1x32x1xf32> to vector<32x1xf32>
    %17 = vector.extract_strided_slice %7 {offsets = [0, 0], sizes = [1, 128], strides = [1, 1]} : vector<8x128xf32> to vector<1x128xf32>
    %18 = vector.broadcast %16 : vector<32x1xf32> to vector<32x128xf32>
    %19 = vector.broadcast %17 : vector<1x128xf32> to vector<32x128xf32>
    %20 = arith.mulf %18, %19 : vector<32x128xf32>
    %21 = arith.addf %14, %20 : vector<32x128xf32>
    %22 = vector.extract_strided_slice %0 {offsets = [2, 0, 0], sizes = [1, 32, 1], strides = [1, 1, 1]} : vector<3x32x1xf32> to vector<1x32x1xf32>
    %23 = vector.shape_cast %22 : vector<1x32x1xf32> to vector<32x1xf32>
    %24 = vector.extract_strided_slice %8 {offsets = [0, 0], sizes = [1, 128], strides = [1, 1]} : vector<8x128xf32> to vector<1x128xf32>
    %25 = vector.broadcast %23 : vector<32x1xf32> to vector<32x128xf32>
    %26 = vector.broadcast %24 : vector<1x128xf32> to vector<32x128xf32>
    %27 = arith.mulf %25, %26 : vector<32x128xf32>
    %28 = arith.addf %21, %27 : vector<32x128xf32>
    %29 = vector.broadcast %1 : vector<32x1xf32> to vector<32x128xf32>
    %30 = arith.addf %28, %29 : vector<32x128xf32>
    %cst = arith.constant 0.000000e+00 : f32
    %31 = vector.broadcast %cst : f32 to vector<32x128xf32>
    %32 = arith.maximumf %30, %31 : vector<32x128xf32>
    %33 = vector.extract_strided_slice %0 {offsets = [0, 0, 0], sizes = [1, 32, 1], strides = [1, 1, 1]} : vector<3x32x1xf32> to vector<1x32x1xf32>
    %34 = vector.shape_cast %33 : vector<1x32x1xf32> to vector<32x1xf32>
    %35 = vector.extract_strided_slice %6 {offsets = [1, 0], sizes = [1, 128], strides = [1, 1]} : vector<8x128xf32> to vector<1x128xf32>
    %36 = vector.broadcast %34 : vector<32x1xf32> to vector<32x128xf32>
    %37 = vector.broadcast %35 : vector<1x128xf32> to vector<32x128xf32>
    %38 = arith.mulf %36, %37 : vector<32x128xf32>
    %39 = vector.extract_strided_slice %0 {offsets = [1, 0, 0], sizes = [1, 32, 1], strides = [1, 1, 1]} : vector<3x32x1xf32> to vector<1x32x1xf32>
    %40 = vector.shape_cast %39 : vector<1x32x1xf32> to vector<32x1xf32>
    %41 = vector.extract_strided_slice %7 {offsets = [1, 0], sizes = [1, 128], strides = [1, 1]} : vector<8x128xf32> to vector<1x128xf32>
    %42 = vector.broadcast %40 : vector<32x1xf32> to vector<32x128xf32>
    %43 = vector.broadcast %41 : vector<1x128xf32> to vector<32x128xf32>
    %44 = arith.mulf %42, %43 : vector<32x128xf32>
    %45 = arith.addf %38, %44 : vector<32x128xf32>
    %46 = vector.extract_strided_slice %0 {offsets = [2, 0, 0], sizes = [1, 32, 1], strides = [1, 1, 1]} : vector<3x32x1xf32> to vector<1x32x1xf32>
    %47 = vector.shape_cast %46 : vector<1x32x1xf32> to vector<32x1xf32>
    %48 = vector.extract_strided_slice %8 {offsets = [1, 0], sizes = [1, 128], strides = [1, 1]} : vector<8x128xf32> to vector<1x128xf32>
    %49 = vector.broadcast %47 : vector<32x1xf32> to vector<32x128xf32>
    %50 = vector.broadcast %48 : vector<1x128xf32> to vector<32x128xf32>
    %51 = arith.mulf %49, %50 : vector<32x128xf32>
    %52 = arith.addf %45, %51 : vector<32x128xf32>
    %53 = vector.broadcast %1 : vector<32x1xf32> to vector<32x128xf32>
    %54 = arith.addf %52, %53 : vector<32x128xf32>
    %cst_15 = arith.constant 0.000000e+00 : f32
    %55 = vector.broadcast %cst_15 : f32 to vector<32x128xf32>
    %56 = arith.maximumf %54, %55 : vector<32x128xf32>
    %57 = vector.extract_strided_slice %0 {offsets = [0, 0, 0], sizes = [1, 32, 1], strides = [1, 1, 1]} : vector<3x32x1xf32> to vector<1x32x1xf32>
    %58 = vector.shape_cast %57 : vector<1x32x1xf32> to vector<32x1xf32>
    %59 = vector.extract_strided_slice %6 {offsets = [2, 0], sizes = [1, 128], strides = [1, 1]} : vector<8x128xf32> to vector<1x128xf32>
    %60 = vector.broadcast %58 : vector<32x1xf32> to vector<32x128xf32>
    %61 = vector.broadcast %59 : vector<1x128xf32> to vector<32x128xf32>
    %62 = arith.mulf %60, %61 : vector<32x128xf32>
    %63 = vector.extract_strided_slice %0 {offsets = [1, 0, 0], sizes = [1, 32, 1], strides = [1, 1, 1]} : vector<3x32x1xf32> to vector<1x32x1xf32>
    %64 = vector.shape_cast %63 : vector<1x32x1xf32> to vector<32x1xf32>
    %65 = vector.extract_strided_slice %7 {offsets = [2, 0], sizes = [1, 128], strides = [1, 1]} : vector<8x128xf32> to vector<1x128xf32>
    %66 = vector.broadcast %64 : vector<32x1xf32> to vector<32x128xf32>
    %67 = vector.broadcast %65 : vector<1x128xf32> to vector<32x128xf32>
    %68 = arith.mulf %66, %67 : vector<32x128xf32>
    %69 = arith.addf %62, %68 : vector<32x128xf32>
    %70 = vector.extract_strided_slice %0 {offsets = [2, 0, 0], sizes = [1, 32, 1], strides = [1, 1, 1]} : vector<3x32x1xf32> to vector<1x32x1xf32>
    %71 = vector.shape_cast %70 : vector<1x32x1xf32> to vector<32x1xf32>
    %72 = vector.extract_strided_slice %8 {offsets = [2, 0], sizes = [1, 128], strides = [1, 1]} : vector<8x128xf32> to vector<1x128xf32>
    %73 = vector.broadcast %71 : vector<32x1xf32> to vector<32x128xf32>
    %74 = vector.broadcast %72 : vector<1x128xf32> to vector<32x128xf32>
    %75 = arith.mulf %73, %74 : vector<32x128xf32>
    %76 = arith.addf %69, %75 : vector<32x128xf32>
    %77 = vector.broadcast %1 : vector<32x1xf32> to vector<32x128xf32>
    %78 = arith.addf %76, %77 : vector<32x128xf32>
    %cst_16 = arith.constant 0.000000e+00 : f32
    %79 = vector.broadcast %cst_16 : f32 to vector<32x128xf32>
    %80 = arith.maximumf %78, %79 : vector<32x128xf32>
    %81 = vector.extract_strided_slice %0 {offsets = [0, 0, 0], sizes = [1, 32, 1], strides = [1, 1, 1]} : vector<3x32x1xf32> to vector<1x32x1xf32>
    %82 = vector.shape_cast %81 : vector<1x32x1xf32> to vector<32x1xf32>
    %83 = vector.extract_strided_slice %6 {offsets = [3, 0], sizes = [1, 128], strides = [1, 1]} : vector<8x128xf32> to vector<1x128xf32>
    %84 = vector.broadcast %82 : vector<32x1xf32> to vector<32x128xf32>
    %85 = vector.broadcast %83 : vector<1x128xf32> to vector<32x128xf32>
    %86 = arith.mulf %84, %85 : vector<32x128xf32>
    %87 = vector.extract_strided_slice %0 {offsets = [1, 0, 0], sizes = [1, 32, 1], strides = [1, 1, 1]} : vector<3x32x1xf32> to vector<1x32x1xf32>
    %88 = vector.shape_cast %87 : vector<1x32x1xf32> to vector<32x1xf32>
    %89 = vector.extract_strided_slice %7 {offsets = [3, 0], sizes = [1, 128], strides = [1, 1]} : vector<8x128xf32> to vector<1x128xf32>
    %90 = vector.broadcast %88 : vector<32x1xf32> to vector<32x128xf32>
    %91 = vector.broadcast %89 : vector<1x128xf32> to vector<32x128xf32>
    %92 = arith.mulf %90, %91 : vector<32x128xf32>
    %93 = arith.addf %86, %92 : vector<32x128xf32>
    %94 = vector.extract_strided_slice %0 {offsets = [2, 0, 0], sizes = [1, 32, 1], strides = [1, 1, 1]} : vector<3x32x1xf32> to vector<1x32x1xf32>
    %95 = vector.shape_cast %94 : vector<1x32x1xf32> to vector<32x1xf32>
    %96 = vector.extract_strided_slice %8 {offsets = [3, 0], sizes = [1, 128], strides = [1, 1]} : vector<8x128xf32> to vector<1x128xf32>
    %97 = vector.broadcast %95 : vector<32x1xf32> to vector<32x128xf32>
    %98 = vector.broadcast %96 : vector<1x128xf32> to vector<32x128xf32>
    %99 = arith.mulf %97, %98 : vector<32x128xf32>
    %100 = arith.addf %93, %99 : vector<32x128xf32>
    %101 = vector.broadcast %1 : vector<32x1xf32> to vector<32x128xf32>
    %102 = arith.addf %100, %101 : vector<32x128xf32>
    %cst_17 = arith.constant 0.000000e+00 : f32
    %103 = vector.broadcast %cst_17 : f32 to vector<32x128xf32>
    %104 = arith.maximumf %102, %103 : vector<32x128xf32>
    %105 = vector.extract_strided_slice %0 {offsets = [0, 0, 0], sizes = [1, 32, 1], strides = [1, 1, 1]} : vector<3x32x1xf32> to vector<1x32x1xf32>
    %106 = vector.shape_cast %105 : vector<1x32x1xf32> to vector<32x1xf32>
    %107 = vector.extract_strided_slice %6 {offsets = [4, 0], sizes = [1, 128], strides = [1, 1]} : vector<8x128xf32> to vector<1x128xf32>
    %108 = vector.broadcast %106 : vector<32x1xf32> to vector<32x128xf32>
    %109 = vector.broadcast %107 : vector<1x128xf32> to vector<32x128xf32>
    %110 = arith.mulf %108, %109 : vector<32x128xf32>
    %111 = vector.extract_strided_slice %0 {offsets = [1, 0, 0], sizes = [1, 32, 1], strides = [1, 1, 1]} : vector<3x32x1xf32> to vector<1x32x1xf32>
    %112 = vector.shape_cast %111 : vector<1x32x1xf32> to vector<32x1xf32>
    %113 = vector.extract_strided_slice %7 {offsets = [4, 0], sizes = [1, 128], strides = [1, 1]} : vector<8x128xf32> to vector<1x128xf32>
    %114 = vector.broadcast %112 : vector<32x1xf32> to vector<32x128xf32>
    %115 = vector.broadcast %113 : vector<1x128xf32> to vector<32x128xf32>
    %116 = arith.mulf %114, %115 : vector<32x128xf32>
    %117 = arith.addf %110, %116 : vector<32x128xf32>
    %118 = vector.extract_strided_slice %0 {offsets = [2, 0, 0], sizes = [1, 32, 1], strides = [1, 1, 1]} : vector<3x32x1xf32> to vector<1x32x1xf32>
    %119 = vector.shape_cast %118 : vector<1x32x1xf32> to vector<32x1xf32>
    %120 = vector.extract_strided_slice %8 {offsets = [4, 0], sizes = [1, 128], strides = [1, 1]} : vector<8x128xf32> to vector<1x128xf32>
    %121 = vector.broadcast %119 : vector<32x1xf32> to vector<32x128xf32>
    %122 = vector.broadcast %120 : vector<1x128xf32> to vector<32x128xf32>
    %123 = arith.mulf %121, %122 : vector<32x128xf32>
    %124 = arith.addf %117, %123 : vector<32x128xf32>
    %125 = vector.broadcast %1 : vector<32x1xf32> to vector<32x128xf32>
    %126 = arith.addf %124, %125 : vector<32x128xf32>
    %cst_18 = arith.constant 0.000000e+00 : f32
    %127 = vector.broadcast %cst_18 : f32 to vector<32x128xf32>
    %128 = arith.maximumf %126, %127 : vector<32x128xf32>
    %129 = vector.extract_strided_slice %0 {offsets = [0, 0, 0], sizes = [1, 32, 1], strides = [1, 1, 1]} : vector<3x32x1xf32> to vector<1x32x1xf32>
    %130 = vector.shape_cast %129 : vector<1x32x1xf32> to vector<32x1xf32>
    %131 = vector.extract_strided_slice %6 {offsets = [5, 0], sizes = [1, 128], strides = [1, 1]} : vector<8x128xf32> to vector<1x128xf32>
    %132 = vector.broadcast %130 : vector<32x1xf32> to vector<32x128xf32>
    %133 = vector.broadcast %131 : vector<1x128xf32> to vector<32x128xf32>
    %134 = arith.mulf %132, %133 : vector<32x128xf32>
    %135 = vector.extract_strided_slice %0 {offsets = [1, 0, 0], sizes = [1, 32, 1], strides = [1, 1, 1]} : vector<3x32x1xf32> to vector<1x32x1xf32>
    %136 = vector.shape_cast %135 : vector<1x32x1xf32> to vector<32x1xf32>
    %137 = vector.extract_strided_slice %7 {offsets = [5, 0], sizes = [1, 128], strides = [1, 1]} : vector<8x128xf32> to vector<1x128xf32>
    %138 = vector.broadcast %136 : vector<32x1xf32> to vector<32x128xf32>
    %139 = vector.broadcast %137 : vector<1x128xf32> to vector<32x128xf32>
    %140 = arith.mulf %138, %139 : vector<32x128xf32>
    %141 = arith.addf %134, %140 : vector<32x128xf32>
    %142 = vector.extract_strided_slice %0 {offsets = [2, 0, 0], sizes = [1, 32, 1], strides = [1, 1, 1]} : vector<3x32x1xf32> to vector<1x32x1xf32>
    %143 = vector.shape_cast %142 : vector<1x32x1xf32> to vector<32x1xf32>
    %144 = vector.extract_strided_slice %8 {offsets = [5, 0], sizes = [1, 128], strides = [1, 1]} : vector<8x128xf32> to vector<1x128xf32>
    %145 = vector.broadcast %143 : vector<32x1xf32> to vector<32x128xf32>
    %146 = vector.broadcast %144 : vector<1x128xf32> to vector<32x128xf32>
    %147 = arith.mulf %145, %146 : vector<32x128xf32>
    %148 = arith.addf %141, %147 : vector<32x128xf32>
    %149 = vector.broadcast %1 : vector<32x1xf32> to vector<32x128xf32>
    %150 = arith.addf %148, %149 : vector<32x128xf32>
    %cst_19 = arith.constant 0.000000e+00 : f32
    %151 = vector.broadcast %cst_19 : f32 to vector<32x128xf32>
    %152 = arith.maximumf %150, %151 : vector<32x128xf32>
    %153 = vector.extract_strided_slice %0 {offsets = [0, 0, 0], sizes = [1, 32, 1], strides = [1, 1, 1]} : vector<3x32x1xf32> to vector<1x32x1xf32>
    %154 = vector.shape_cast %153 : vector<1x32x1xf32> to vector<32x1xf32>
    %155 = vector.extract_strided_slice %6 {offsets = [6, 0], sizes = [1, 128], strides = [1, 1]} : vector<8x128xf32> to vector<1x128xf32>
    %156 = vector.broadcast %154 : vector<32x1xf32> to vector<32x128xf32>
    %157 = vector.broadcast %155 : vector<1x128xf32> to vector<32x128xf32>
    %158 = arith.mulf %156, %157 : vector<32x128xf32>
    %159 = vector.extract_strided_slice %0 {offsets = [1, 0, 0], sizes = [1, 32, 1], strides = [1, 1, 1]} : vector<3x32x1xf32> to vector<1x32x1xf32>
    %160 = vector.shape_cast %159 : vector<1x32x1xf32> to vector<32x1xf32>
    %161 = vector.extract_strided_slice %7 {offsets = [6, 0], sizes = [1, 128], strides = [1, 1]} : vector<8x128xf32> to vector<1x128xf32>
    %162 = vector.broadcast %160 : vector<32x1xf32> to vector<32x128xf32>
    %163 = vector.broadcast %161 : vector<1x128xf32> to vector<32x128xf32>
    %164 = arith.mulf %162, %163 : vector<32x128xf32>
    %165 = arith.addf %158, %164 : vector<32x128xf32>
    %166 = vector.extract_strided_slice %0 {offsets = [2, 0, 0], sizes = [1, 32, 1], strides = [1, 1, 1]} : vector<3x32x1xf32> to vector<1x32x1xf32>
    %167 = vector.shape_cast %166 : vector<1x32x1xf32> to vector<32x1xf32>
    %168 = vector.extract_strided_slice %8 {offsets = [6, 0], sizes = [1, 128], strides = [1, 1]} : vector<8x128xf32> to vector<1x128xf32>
    %169 = vector.broadcast %167 : vector<32x1xf32> to vector<32x128xf32>
    %170 = vector.broadcast %168 : vector<1x128xf32> to vector<32x128xf32>
    %171 = arith.mulf %169, %170 : vector<32x128xf32>
    %172 = arith.addf %165, %171 : vector<32x128xf32>
    %173 = vector.broadcast %1 : vector<32x1xf32> to vector<32x128xf32>
    %174 = arith.addf %172, %173 : vector<32x128xf32>
    %cst_20 = arith.constant 0.000000e+00 : f32
    %175 = vector.broadcast %cst_20 : f32 to vector<32x128xf32>
    %176 = arith.maximumf %174, %175 : vector<32x128xf32>
    %177 = vector.extract_strided_slice %0 {offsets = [0, 0, 0], sizes = [1, 32, 1], strides = [1, 1, 1]} : vector<3x32x1xf32> to vector<1x32x1xf32>
    %178 = vector.shape_cast %177 : vector<1x32x1xf32> to vector<32x1xf32>
    %179 = vector.extract_strided_slice %6 {offsets = [7, 0], sizes = [1, 128], strides = [1, 1]} : vector<8x128xf32> to vector<1x128xf32>
    %180 = vector.broadcast %178 : vector<32x1xf32> to vector<32x128xf32>
    %181 = vector.broadcast %179 : vector<1x128xf32> to vector<32x128xf32>
    %182 = arith.mulf %180, %181 : vector<32x128xf32>
    %183 = vector.extract_strided_slice %0 {offsets = [1, 0, 0], sizes = [1, 32, 1], strides = [1, 1, 1]} : vector<3x32x1xf32> to vector<1x32x1xf32>
    %184 = vector.shape_cast %183 : vector<1x32x1xf32> to vector<32x1xf32>
    %185 = vector.extract_strided_slice %7 {offsets = [7, 0], sizes = [1, 128], strides = [1, 1]} : vector<8x128xf32> to vector<1x128xf32>
    %186 = vector.broadcast %184 : vector<32x1xf32> to vector<32x128xf32>
    %187 = vector.broadcast %185 : vector<1x128xf32> to vector<32x128xf32>
    %188 = arith.mulf %186, %187 : vector<32x128xf32>
    %189 = arith.addf %182, %188 : vector<32x128xf32>
    %190 = vector.extract_strided_slice %0 {offsets = [2, 0, 0], sizes = [1, 32, 1], strides = [1, 1, 1]} : vector<3x32x1xf32> to vector<1x32x1xf32>
    %191 = vector.shape_cast %190 : vector<1x32x1xf32> to vector<32x1xf32>
    %192 = vector.extract_strided_slice %8 {offsets = [7, 0], sizes = [1, 128], strides = [1, 1]} : vector<8x128xf32> to vector<1x128xf32>
    %193 = vector.broadcast %191 : vector<32x1xf32> to vector<32x128xf32>
    %194 = vector.broadcast %192 : vector<1x128xf32> to vector<32x128xf32>
    %195 = arith.mulf %193, %194 : vector<32x128xf32>
    %196 = arith.addf %189, %195 : vector<32x128xf32>
    %197 = vector.broadcast %1 : vector<32x1xf32> to vector<32x128xf32>
    %198 = arith.addf %196, %197 : vector<32x128xf32>
    %cst_21 = arith.constant 0.000000e+00 : f32
    %199 = vector.broadcast %cst_21 : f32 to vector<32x128xf32>
    %200 = arith.maximumf %198, %199 : vector<32x128xf32>
    %201 = tpu.concatenate %32, %56, %80, %104, %128, %152, %176, %200 in 1 : vector<32x128xf32>, vector<32x128xf32>, vector<32x128xf32>, vector<32x128xf32>, vector<32x128xf32>, vector<32x128xf32>, vector<32x128xf32>, vector<32x128xf32> -> vector<32x1024xf32>
    %cst_22 = arith.constant dense<0.000000e+00> : vector<32x1024xf32>
    %202 = tpu.matmul %2, %201, %cst_22 {dimension_numbers = #tpu.dot_dimension_numbers<[1], [0], [0], [1], [0, 0, 1, 1], [], []>, precision = #tpu.contract_precision<fp32>} : vector<32x32xf32>, vector<32x1024xf32>, vector<32x1024xf32> -> vector<32x1024xf32>
    %203 = vector.broadcast %3 : vector<32x1xf32> to vector<32x1024xf32>
    %204 = arith.addf %202, %203 : vector<32x1024xf32>
    %cst_23 = arith.constant 0.000000e+00 : f32
    %205 = vector.broadcast %cst_23 : f32 to vector<32x1024xf32>
    %206 = arith.maximumf %204, %205 : vector<32x1024xf32>
    %207 = tpu.iota {dimensions = array<i32: 1>} : vector<1x2xi32>
    %208 = vector.extract_strided_slice %206 {offsets = [0, 0], sizes = [32, 128], strides = [1, 1]} : vector<32x1024xf32> to vector<32x128xf32>
    %c127_i32_24 = arith.constant 127 : i32
    %209 = tpu.dynamic_rotate %208 by %c127_i32_24 dim 1 : vector<32x128xf32>, i32 -> vector<32x128xf32>
    %210 = arith.maximumf %208, %209 : vector<32x128xf32>
    %211 = vector.extract_strided_slice %4 {offsets = [0, 0, 0], sizes = [1, 32, 128], strides = [1, 1, 1]} : vector<2x32x128xf32> to vector<1x32x128xf32>
    %212 = vector.shape_cast %211 : vector<1x32x128xf32> to vector<32x128xf32>
    %213 = arith.mulf %210, %212 : vector<32x128xf32>
    %cst_25 = arith.constant dense<0.000000e+00> : vector<32xf32>
    %214 = vector.multi_reduction <add>, %213, %cst_25 [1] : vector<32x128xf32> to vector<32xf32>
    %215 = vector.shape_cast %214 : vector<32xf32> to vector<32x1xf32>
    %cst_26 = arith.constant dense<0.000000e+00> : vector<1xf32>
    %216 = vector.multi_reduction <add>, %215, %cst_26 [0] : vector<32x1xf32> to vector<1xf32>
    %217 = vector.shape_cast %216 : vector<1xf32> to vector<1x1xf32>
    %c0_i32 = arith.constant 0 : i32
    %218 = vector.broadcast %c0_i32 : i32 to vector<1x2xi32>
    %219 = arith.cmpi eq, %207, %218 : vector<1x2xi32>
    %cst_27 = arith.constant 0.000000e+00 : f32
    %220 = vector.shape_cast %217 : vector<1x1xf32> to vector<1x1xf32>
    %221 = vector.broadcast %220 : vector<1x1xf32> to vector<1x2xf32>
    %222 = vector.broadcast %cst_27 : f32 to vector<1x2xf32>
    %223 = arith.select %219, %221, %222 : vector<1x2xi1>, vector<1x2xf32>
    %224 = arith.addf %5, %223 : vector<1x2xf32>
    %225 = vector.extract_strided_slice %4 {offsets = [1, 0, 0], sizes = [1, 32, 128], strides = [1, 1, 1]} : vector<2x32x128xf32> to vector<1x32x128xf32>
    %226 = vector.shape_cast %225 : vector<1x32x128xf32> to vector<32x128xf32>
    %227 = arith.mulf %210, %226 : vector<32x128xf32>
    %cst_28 = arith.constant dense<0.000000e+00> : vector<32xf32>
    %228 = vector.multi_reduction <add>, %227, %cst_28 [1] : vector<32x128xf32> to vector<32xf32>
    %229 = vector.shape_cast %228 : vector<32xf32> to vector<32x1xf32>
    %cst_29 = arith.constant dense<0.000000e+00> : vector<1xf32>
    %230 = vector.multi_reduction <add>, %229, %cst_29 [0] : vector<32x1xf32> to vector<1xf32>
    %231 = vector.shape_cast %230 : vector<1xf32> to vector<1x1xf32>
    %c1_i32 = arith.constant 1 : i32
    %232 = vector.broadcast %c1_i32 : i32 to vector<1x2xi32>
    %233 = arith.cmpi eq, %207, %232 : vector<1x2xi32>
    %cst_30 = arith.constant 0.000000e+00 : f32
    %234 = vector.shape_cast %231 : vector<1x1xf32> to vector<1x1xf32>
    %235 = vector.broadcast %234 : vector<1x1xf32> to vector<1x2xf32>
    %236 = vector.broadcast %cst_30 : f32 to vector<1x2xf32>
    %237 = arith.select %233, %235, %236 : vector<1x2xi1>, vector<1x2xf32>
    %238 = arith.addf %224, %237 : vector<1x2xf32>
    %c0_31 = arith.constant 0 : index
    %c0_32 = arith.constant 0 : index
    %239 = vector.load %arg8[%c0_31, %c0_32] : memref<8x2xf32, #tpu.memory_space<vmem>>, vector<1x2xf32>
    tpu.vector_store %arg8[%c0_31, %c0_32], %238 {strides = array<i32>} : memref<8x2xf32, #tpu.memory_space<vmem>>, vector<1x2xf32>,
    %240 = vector.extract_strided_slice %206 {offsets = [0, 128], sizes = [32, 128], strides = [1, 1]} : vector<32x1024xf32> to vector<32x128xf32>
    %c127_i32_33 = arith.constant 127 : i32
    %241 = tpu.dynamic_rotate %240 by %c127_i32_33 dim 1 : vector<32x128xf32>, i32 -> vector<32x128xf32>
    %242 = arith.maximumf %240, %241 : vector<32x128xf32>
    %243 = vector.extract_strided_slice %4 {offsets = [0, 0, 0], sizes = [1, 32, 128], strides = [1, 1, 1]} : vector<2x32x128xf32> to vector<1x32x128xf32>
    %244 = vector.shape_cast %243 : vector<1x32x128xf32> to vector<32x128xf32>
    %245 = arith.mulf %242, %244 : vector<32x128xf32>
    %cst_34 = arith.constant dense<0.000000e+00> : vector<32xf32>
    %246 = vector.multi_reduction <add>, %245, %cst_34 [1] : vector<32x128xf32> to vector<32xf32>
    %247 = vector.shape_cast %246 : vector<32xf32> to vector<32x1xf32>
    %cst_35 = arith.constant dense<0.000000e+00> : vector<1xf32>
    %248 = vector.multi_reduction <add>, %247, %cst_35 [0] : vector<32x1xf32> to vector<1xf32>
    %249 = vector.shape_cast %248 : vector<1xf32> to vector<1x1xf32>
    %c0_i32_36 = arith.constant 0 : i32
    %250 = vector.broadcast %c0_i32_36 : i32 to vector<1x2xi32>
    %251 = arith.cmpi eq, %207, %250 : vector<1x2xi32>
    %cst_37 = arith.constant 0.000000e+00 : f32
    %252 = vector.shape_cast %249 : vector<1x1xf32> to vector<1x1xf32>
    %253 = vector.broadcast %252 : vector<1x1xf32> to vector<1x2xf32>
    %254 = vector.broadcast %cst_37 : f32 to vector<1x2xf32>
    %255 = arith.select %251, %253, %254 : vector<1x2xi1>, vector<1x2xf32>
    %256 = arith.addf %5, %255 : vector<1x2xf32>
    %257 = vector.extract_strided_slice %4 {offsets = [1, 0, 0], sizes = [1, 32, 128], strides = [1, 1, 1]} : vector<2x32x128xf32> to vector<1x32x128xf32>
    %258 = vector.shape_cast %257 : vector<1x32x128xf32> to vector<32x128xf32>
    %259 = arith.mulf %242, %258 : vector<32x128xf32>
    %cst_38 = arith.constant dense<0.000000e+00> : vector<32xf32>
    %260 = vector.multi_reduction <add>, %259, %cst_38 [1] : vector<32x128xf32> to vector<32xf32>
    %261 = vector.shape_cast %260 : vector<32xf32> to vector<32x1xf32>
    %cst_39 = arith.constant dense<0.000000e+00> : vector<1xf32>
    %262 = vector.multi_reduction <add>, %261, %cst_39 [0] : vector<32x1xf32> to vector<1xf32>
    %263 = vector.shape_cast %262 : vector<1xf32> to vector<1x1xf32>
    %c1_i32_40 = arith.constant 1 : i32
    %264 = vector.broadcast %c1_i32_40 : i32 to vector<1x2xi32>
    %265 = arith.cmpi eq, %207, %264 : vector<1x2xi32>
    %cst_41 = arith.constant 0.000000e+00 : f32
    %266 = vector.shape_cast %263 : vector<1x1xf32> to vector<1x1xf32>
    %267 = vector.broadcast %266 : vector<1x1xf32> to vector<1x2xf32>
    %268 = vector.broadcast %cst_41 : f32 to vector<1x2xf32>
    %269 = arith.select %265, %267, %268 : vector<1x2xi1>, vector<1x2xf32>
    %270 = arith.addf %256, %269 : vector<1x2xf32>
    %c1 = arith.constant 1 : index
    %c0_42 = arith.constant 0 : index
    %271 = vector.load %arg8[%c1, %c0_42] : memref<8x2xf32, #tpu.memory_space<vmem>>, vector<1x2xf32>
    tpu.vector_store %arg8[%c1, %c0_42], %270 {strides = array<i32>} : memref<8x2xf32, #tpu.memory_space<vmem>>, vector<1x2xf32>,
    %272 = vector.extract_strided_slice %206 {offsets = [0, 256], sizes = [32, 128], strides = [1, 1]} : vector<32x1024xf32> to vector<32x128xf32>
    %c127_i32_43 = arith.constant 127 : i32
    %273 = tpu.dynamic_rotate %272 by %c127_i32_43 dim 1 : vector<32x128xf32>, i32 -> vector<32x128xf32>
    %274 = arith.maximumf %272, %273 : vector<32x128xf32>
    %275 = vector.extract_strided_slice %4 {offsets = [0, 0, 0], sizes = [1, 32, 128], strides = [1, 1, 1]} : vector<2x32x128xf32> to vector<1x32x128xf32>
    %276 = vector.shape_cast %275 : vector<1x32x128xf32> to vector<32x128xf32>
    %277 = arith.mulf %274, %276 : vector<32x128xf32>
    %cst_44 = arith.constant dense<0.000000e+00> : vector<32xf32>
    %278 = vector.multi_reduction <add>, %277, %cst_44 [1] : vector<32x128xf32> to vector<32xf32>
    %279 = vector.shape_cast %278 : vector<32xf32> to vector<32x1xf32>
    %cst_45 = arith.constant dense<0.000000e+00> : vector<1xf32>
    %280 = vector.multi_reduction <add>, %279, %cst_45 [0] : vector<32x1xf32> to vector<1xf32>
    %281 = vector.shape_cast %280 : vector<1xf32> to vector<1x1xf32>
    %c0_i32_46 = arith.constant 0 : i32
    %282 = vector.broadcast %c0_i32_46 : i32 to vector<1x2xi32>
    %283 = arith.cmpi eq, %207, %282 : vector<1x2xi32>
    %cst_47 = arith.constant 0.000000e+00 : f32
    %284 = vector.shape_cast %281 : vector<1x1xf32> to vector<1x1xf32>
    %285 = vector.broadcast %284 : vector<1x1xf32> to vector<1x2xf32>
    %286 = vector.broadcast %cst_47 : f32 to vector<1x2xf32>
    %287 = arith.select %283, %285, %286 : vector<1x2xi1>, vector<1x2xf32>
    %288 = arith.addf %5, %287 : vector<1x2xf32>
    %289 = vector.extract_strided_slice %4 {offsets = [1, 0, 0], sizes = [1, 32, 128], strides = [1, 1, 1]} : vector<2x32x128xf32> to vector<1x32x128xf32>
    %290 = vector.shape_cast %289 : vector<1x32x128xf32> to vector<32x128xf32>
    %291 = arith.mulf %274, %290 : vector<32x128xf32>
    %cst_48 = arith.constant dense<0.000000e+00> : vector<32xf32>
    %292 = vector.multi_reduction <add>, %291, %cst_48 [1] : vector<32x128xf32> to vector<32xf32>
    %293 = vector.shape_cast %292 : vector<32xf32> to vector<32x1xf32>
    %cst_49 = arith.constant dense<0.000000e+00> : vector<1xf32>
    %294 = vector.multi_reduction <add>, %293, %cst_49 [0] : vector<32x1xf32> to vector<1xf32>
    %295 = vector.shape_cast %294 : vector<1xf32> to vector<1x1xf32>
    %c1_i32_50 = arith.constant 1 : i32
    %296 = vector.broadcast %c1_i32_50 : i32 to vector<1x2xi32>
    %297 = arith.cmpi eq, %207, %296 : vector<1x2xi32>
    %cst_51 = arith.constant 0.000000e+00 : f32
    %298 = vector.shape_cast %295 : vector<1x1xf32> to vector<1x1xf32>
    %299 = vector.broadcast %298 : vector<1x1xf32> to vector<1x2xf32>
    %300 = vector.broadcast %cst_51 : f32 to vector<1x2xf32>
    %301 = arith.select %297, %299, %300 : vector<1x2xi1>, vector<1x2xf32>
    %302 = arith.addf %288, %301 : vector<1x2xf32>
    %c2 = arith.constant 2 : index
    %c0_52 = arith.constant 0 : index
    %303 = vector.load %arg8[%c2, %c0_52] : memref<8x2xf32, #tpu.memory_space<vmem>>, vector<1x2xf32>
    tpu.vector_store %arg8[%c2, %c0_52], %302 {strides = array<i32>} : memref<8x2xf32, #tpu.memory_space<vmem>>, vector<1x2xf32>,
    %304 = vector.extract_strided_slice %206 {offsets = [0, 384], sizes = [32, 128], strides = [1, 1]} : vector<32x1024xf32> to vector<32x128xf32>
    %c127_i32_53 = arith.constant 127 : i32
    %305 = tpu.dynamic_rotate %304 by %c127_i32_53 dim 1 : vector<32x128xf32>, i32 -> vector<32x128xf32>
    %306 = arith.maximumf %304, %305 : vector<32x128xf32>
    %307 = vector.extract_strided_slice %4 {offsets = [0, 0, 0], sizes = [1, 32, 128], strides = [1, 1, 1]} : vector<2x32x128xf32> to vector<1x32x128xf32>
    %308 = vector.shape_cast %307 : vector<1x32x128xf32> to vector<32x128xf32>
    %309 = arith.mulf %306, %308 : vector<32x128xf32>
    %cst_54 = arith.constant dense<0.000000e+00> : vector<32xf32>
    %310 = vector.multi_reduction <add>, %309, %cst_54 [1] : vector<32x128xf32> to vector<32xf32>
    %311 = vector.shape_cast %310 : vector<32xf32> to vector<32x1xf32>
    %cst_55 = arith.constant dense<0.000000e+00> : vector<1xf32>
    %312 = vector.multi_reduction <add>, %311, %cst_55 [0] : vector<32x1xf32> to vector<1xf32>
    %313 = vector.shape_cast %312 : vector<1xf32> to vector<1x1xf32>
    %c0_i32_56 = arith.constant 0 : i32
    %314 = vector.broadcast %c0_i32_56 : i32 to vector<1x2xi32>
    %315 = arith.cmpi eq, %207, %314 : vector<1x2xi32>
    %cst_57 = arith.constant 0.000000e+00 : f32
    %316 = vector.shape_cast %313 : vector<1x1xf32> to vector<1x1xf32>
    %317 = vector.broadcast %316 : vector<1x1xf32> to vector<1x2xf32>
    %318 = vector.broadcast %cst_57 : f32 to vector<1x2xf32>
    %319 = arith.select %315, %317, %318 : vector<1x2xi1>, vector<1x2xf32>
    %320 = arith.addf %5, %319 : vector<1x2xf32>
    %321 = vector.extract_strided_slice %4 {offsets = [1, 0, 0], sizes = [1, 32, 128], strides = [1, 1, 1]} : vector<2x32x128xf32> to vector<1x32x128xf32>
    %322 = vector.shape_cast %321 : vector<1x32x128xf32> to vector<32x128xf32>
    %323 = arith.mulf %306, %322 : vector<32x128xf32>
    %cst_58 = arith.constant dense<0.000000e+00> : vector<32xf32>
    %324 = vector.multi_reduction <add>, %323, %cst_58 [1] : vector<32x128xf32> to vector<32xf32>
    %325 = vector.shape_cast %324 : vector<32xf32> to vector<32x1xf32>
    %cst_59 = arith.constant dense<0.000000e+00> : vector<1xf32>
    %326 = vector.multi_reduction <add>, %325, %cst_59 [0] : vector<32x1xf32> to vector<1xf32>
    %327 = vector.shape_cast %326 : vector<1xf32> to vector<1x1xf32>
    %c1_i32_60 = arith.constant 1 : i32
    %328 = vector.broadcast %c1_i32_60 : i32 to vector<1x2xi32>
    %329 = arith.cmpi eq, %207, %328 : vector<1x2xi32>
    %cst_61 = arith.constant 0.000000e+00 : f32
    %330 = vector.shape_cast %327 : vector<1x1xf32> to vector<1x1xf32>
    %331 = vector.broadcast %330 : vector<1x1xf32> to vector<1x2xf32>
    %332 = vector.broadcast %cst_61 : f32 to vector<1x2xf32>
    %333 = arith.select %329, %331, %332 : vector<1x2xi1>, vector<1x2xf32>
    %334 = arith.addf %320, %333 : vector<1x2xf32>
    %c3 = arith.constant 3 : index
    %c0_62 = arith.constant 0 : index
    %335 = vector.load %arg8[%c3, %c0_62] : memref<8x2xf32, #tpu.memory_space<vmem>>, vector<1x2xf32>
    tpu.vector_store %arg8[%c3, %c0_62], %334 {strides = array<i32>} : memref<8x2xf32, #tpu.memory_space<vmem>>, vector<1x2xf32>,
    %336 = vector.extract_strided_slice %206 {offsets = [0, 512], sizes = [32, 128], strides = [1, 1]} : vector<32x1024xf32> to vector<32x128xf32>
    %c127_i32_63 = arith.constant 127 : i32
    %337 = tpu.dynamic_rotate %336 by %c127_i32_63 dim 1 : vector<32x128xf32>, i32 -> vector<32x128xf32>
    %338 = arith.maximumf %336, %337 : vector<32x128xf32>
    %339 = vector.extract_strided_slice %4 {offsets = [0, 0, 0], sizes = [1, 32, 128], strides = [1, 1, 1]} : vector<2x32x128xf32> to vector<1x32x128xf32>
    %340 = vector.shape_cast %339 : vector<1x32x128xf32> to vector<32x128xf32>
    %341 = arith.mulf %338, %340 : vector<32x128xf32>
    %cst_64 = arith.constant dense<0.000000e+00> : vector<32xf32>
    %342 = vector.multi_reduction <add>, %341, %cst_64 [1] : vector<32x128xf32> to vector<32xf32>
    %343 = vector.shape_cast %342 : vector<32xf32> to vector<32x1xf32>
    %cst_65 = arith.constant dense<0.000000e+00> : vector<1xf32>
    %344 = vector.multi_reduction <add>, %343, %cst_65 [0] : vector<32x1xf32> to vector<1xf32>
    %345 = vector.shape_cast %344 : vector<1xf32> to vector<1x1xf32>
    %c0_i32_66 = arith.constant 0 : i32
    %346 = vector.broadcast %c0_i32_66 : i32 to vector<1x2xi32>
    %347 = arith.cmpi eq, %207, %346 : vector<1x2xi32>
    %cst_67 = arith.constant 0.000000e+00 : f32
    %348 = vector.shape_cast %345 : vector<1x1xf32> to vector<1x1xf32>
    %349 = vector.broadcast %348 : vector<1x1xf32> to vector<1x2xf32>
    %350 = vector.broadcast %cst_67 : f32 to vector<1x2xf32>
    %351 = arith.select %347, %349, %350 : vector<1x2xi1>, vector<1x2xf32>
    %352 = arith.addf %5, %351 : vector<1x2xf32>
    %353 = vector.extract_strided_slice %4 {offsets = [1, 0, 0], sizes = [1, 32, 128], strides = [1, 1, 1]} : vector<2x32x128xf32> to vector<1x32x128xf32>
    %354 = vector.shape_cast %353 : vector<1x32x128xf32> to vector<32x128xf32>
    %355 = arith.mulf %338, %354 : vector<32x128xf32>
    %cst_68 = arith.constant dense<0.000000e+00> : vector<32xf32>
    %356 = vector.multi_reduction <add>, %355, %cst_68 [1] : vector<32x128xf32> to vector<32xf32>
    %357 = vector.shape_cast %356 : vector<32xf32> to vector<32x1xf32>
    %cst_69 = arith.constant dense<0.000000e+00> : vector<1xf32>
    %358 = vector.multi_reduction <add>, %357, %cst_69 [0] : vector<32x1xf32> to vector<1xf32>
    %359 = vector.shape_cast %358 : vector<1xf32> to vector<1x1xf32>
    %c1_i32_70 = arith.constant 1 : i32
    %360 = vector.broadcast %c1_i32_70 : i32 to vector<1x2xi32>
    %361 = arith.cmpi eq, %207, %360 : vector<1x2xi32>
    %cst_71 = arith.constant 0.000000e+00 : f32
    %362 = vector.shape_cast %359 : vector<1x1xf32> to vector<1x1xf32>
    %363 = vector.broadcast %362 : vector<1x1xf32> to vector<1x2xf32>
    %364 = vector.broadcast %cst_71 : f32 to vector<1x2xf32>
    %365 = arith.select %361, %363, %364 : vector<1x2xi1>, vector<1x2xf32>
    %366 = arith.addf %352, %365 : vector<1x2xf32>
    %c4 = arith.constant 4 : index
    %c0_72 = arith.constant 0 : index
    %367 = vector.load %arg8[%c4, %c0_72] : memref<8x2xf32, #tpu.memory_space<vmem>>, vector<1x2xf32>
    tpu.vector_store %arg8[%c4, %c0_72], %366 {strides = array<i32>} : memref<8x2xf32, #tpu.memory_space<vmem>>, vector<1x2xf32>,
    %368 = vector.extract_strided_slice %206 {offsets = [0, 640], sizes = [32, 128], strides = [1, 1]} : vector<32x1024xf32> to vector<32x128xf32>
    %c127_i32_73 = arith.constant 127 : i32
    %369 = tpu.dynamic_rotate %368 by %c127_i32_73 dim 1 : vector<32x128xf32>, i32 -> vector<32x128xf32>
    %370 = arith.maximumf %368, %369 : vector<32x128xf32>
    %371 = vector.extract_strided_slice %4 {offsets = [0, 0, 0], sizes = [1, 32, 128], strides = [1, 1, 1]} : vector<2x32x128xf32> to vector<1x32x128xf32>
    %372 = vector.shape_cast %371 : vector<1x32x128xf32> to vector<32x128xf32>
    %373 = arith.mulf %370, %372 : vector<32x128xf32>
    %cst_74 = arith.constant dense<0.000000e+00> : vector<32xf32>
    %374 = vector.multi_reduction <add>, %373, %cst_74 [1] : vector<32x128xf32> to vector<32xf32>
    %375 = vector.shape_cast %374 : vector<32xf32> to vector<32x1xf32>
    %cst_75 = arith.constant dense<0.000000e+00> : vector<1xf32>
    %376 = vector.multi_reduction <add>, %375, %cst_75 [0] : vector<32x1xf32> to vector<1xf32>
    %377 = vector.shape_cast %376 : vector<1xf32> to vector<1x1xf32>
    %c0_i32_76 = arith.constant 0 : i32
    %378 = vector.broadcast %c0_i32_76 : i32 to vector<1x2xi32>
    %379 = arith.cmpi eq, %207, %378 : vector<1x2xi32>
    %cst_77 = arith.constant 0.000000e+00 : f32
    %380 = vector.shape_cast %377 : vector<1x1xf32> to vector<1x1xf32>
    %381 = vector.broadcast %380 : vector<1x1xf32> to vector<1x2xf32>
    %382 = vector.broadcast %cst_77 : f32 to vector<1x2xf32>
    %383 = arith.select %379, %381, %382 : vector<1x2xi1>, vector<1x2xf32>
    %384 = arith.addf %5, %383 : vector<1x2xf32>
    %385 = vector.extract_strided_slice %4 {offsets = [1, 0, 0], sizes = [1, 32, 128], strides = [1, 1, 1]} : vector<2x32x128xf32> to vector<1x32x128xf32>
    %386 = vector.shape_cast %385 : vector<1x32x128xf32> to vector<32x128xf32>
    %387 = arith.mulf %370, %386 : vector<32x128xf32>
    %cst_78 = arith.constant dense<0.000000e+00> : vector<32xf32>
    %388 = vector.multi_reduction <add>, %387, %cst_78 [1] : vector<32x128xf32> to vector<32xf32>
    %389 = vector.shape_cast %388 : vector<32xf32> to vector<32x1xf32>
    %cst_79 = arith.constant dense<0.000000e+00> : vector<1xf32>
    %390 = vector.multi_reduction <add>, %389, %cst_79 [0] : vector<32x1xf32> to vector<1xf32>
    %391 = vector.shape_cast %390 : vector<1xf32> to vector<1x1xf32>
    %c1_i32_80 = arith.constant 1 : i32
    %392 = vector.broadcast %c1_i32_80 : i32 to vector<1x2xi32>
    %393 = arith.cmpi eq, %207, %392 : vector<1x2xi32>
    %cst_81 = arith.constant 0.000000e+00 : f32
    %394 = vector.shape_cast %391 : vector<1x1xf32> to vector<1x1xf32>
    %395 = vector.broadcast %394 : vector<1x1xf32> to vector<1x2xf32>
    %396 = vector.broadcast %cst_81 : f32 to vector<1x2xf32>
    %397 = arith.select %393, %395, %396 : vector<1x2xi1>, vector<1x2xf32>
    %398 = arith.addf %384, %397 : vector<1x2xf32>
    %c5 = arith.constant 5 : index
    %c0_82 = arith.constant 0 : index
    %399 = vector.load %arg8[%c5, %c0_82] : memref<8x2xf32, #tpu.memory_space<vmem>>, vector<1x2xf32>
    tpu.vector_store %arg8[%c5, %c0_82], %398 {strides = array<i32>} : memref<8x2xf32, #tpu.memory_space<vmem>>, vector<1x2xf32>,
    %400 = vector.extract_strided_slice %206 {offsets = [0, 768], sizes = [32, 128], strides = [1, 1]} : vector<32x1024xf32> to vector<32x128xf32>
    %c127_i32_83 = arith.constant 127 : i32
    %401 = tpu.dynamic_rotate %400 by %c127_i32_83 dim 1 : vector<32x128xf32>, i32 -> vector<32x128xf32>
    %402 = arith.maximumf %400, %401 : vector<32x128xf32>
    %403 = vector.extract_strided_slice %4 {offsets = [0, 0, 0], sizes = [1, 32, 128], strides = [1, 1, 1]} : vector<2x32x128xf32> to vector<1x32x128xf32>
    %404 = vector.shape_cast %403 : vector<1x32x128xf32> to vector<32x128xf32>
    %405 = arith.mulf %402, %404 : vector<32x128xf32>
    %cst_84 = arith.constant dense<0.000000e+00> : vector<32xf32>
    %406 = vector.multi_reduction <add>, %405, %cst_84 [1] : vector<32x128xf32> to vector<32xf32>
    %407 = vector.shape_cast %406 : vector<32xf32> to vector<32x1xf32>
    %cst_85 = arith.constant dense<0.000000e+00> : vector<1xf32>
    %408 = vector.multi_reduction <add>, %407, %cst_85 [0] : vector<32x1xf32> to vector<1xf32>
    %409 = vector.shape_cast %408 : vector<1xf32> to vector<1x1xf32>
    %c0_i32_86 = arith.constant 0 : i32
    %410 = vector.broadcast %c0_i32_86 : i32 to vector<1x2xi32>
    %411 = arith.cmpi eq, %207, %410 : vector<1x2xi32>
    %cst_87 = arith.constant 0.000000e+00 : f32
    %412 = vector.shape_cast %409 : vector<1x1xf32> to vector<1x1xf32>
    %413 = vector.broadcast %412 : vector<1x1xf32> to vector<1x2xf32>
    %414 = vector.broadcast %cst_87 : f32 to vector<1x2xf32>
    %415 = arith.select %411, %413, %414 : vector<1x2xi1>, vector<1x2xf32>
    %416 = arith.addf %5, %415 : vector<1x2xf32>
    %417 = vector.extract_strided_slice %4 {offsets = [1, 0, 0], sizes = [1, 32, 128], strides = [1, 1, 1]} : vector<2x32x128xf32> to vector<1x32x128xf32>
    %418 = vector.shape_cast %417 : vector<1x32x128xf32> to vector<32x128xf32>
    %419 = arith.mulf %402, %418 : vector<32x128xf32>
    %cst_88 = arith.constant dense<0.000000e+00> : vector<32xf32>
    %420 = vector.multi_reduction <add>, %419, %cst_88 [1] : vector<32x128xf32> to vector<32xf32>
    %421 = vector.shape_cast %420 : vector<32xf32> to vector<32x1xf32>
    %cst_89 = arith.constant dense<0.000000e+00> : vector<1xf32>
    %422 = vector.multi_reduction <add>, %421, %cst_89 [0] : vector<32x1xf32> to vector<1xf32>
    %423 = vector.shape_cast %422 : vector<1xf32> to vector<1x1xf32>
    %c1_i32_90 = arith.constant 1 : i32
    %424 = vector.broadcast %c1_i32_90 : i32 to vector<1x2xi32>
    %425 = arith.cmpi eq, %207, %424 : vector<1x2xi32>
    %cst_91 = arith.constant 0.000000e+00 : f32
    %426 = vector.shape_cast %423 : vector<1x1xf32> to vector<1x1xf32>
    %427 = vector.broadcast %426 : vector<1x1xf32> to vector<1x2xf32>
    %428 = vector.broadcast %cst_91 : f32 to vector<1x2xf32>
    %429 = arith.select %425, %427, %428 : vector<1x2xi1>, vector<1x2xf32>
    %430 = arith.addf %416, %429 : vector<1x2xf32>
    %c6 = arith.constant 6 : index
    %c0_92 = arith.constant 0 : index
    %431 = vector.load %arg8[%c6, %c0_92] : memref<8x2xf32, #tpu.memory_space<vmem>>, vector<1x2xf32>
    tpu.vector_store %arg8[%c6, %c0_92], %430 {strides = array<i32>} : memref<8x2xf32, #tpu.memory_space<vmem>>, vector<1x2xf32>,
    %432 = vector.extract_strided_slice %206 {offsets = [0, 896], sizes = [32, 128], strides = [1, 1]} : vector<32x1024xf32> to vector<32x128xf32>
    %c127_i32_93 = arith.constant 127 : i32
    %433 = tpu.dynamic_rotate %432 by %c127_i32_93 dim 1 : vector<32x128xf32>, i32 -> vector<32x128xf32>
    %434 = arith.maximumf %432, %433 : vector<32x128xf32>
    %435 = vector.extract_strided_slice %4 {offsets = [0, 0, 0], sizes = [1, 32, 128], strides = [1, 1, 1]} : vector<2x32x128xf32> to vector<1x32x128xf32>
    %436 = vector.shape_cast %435 : vector<1x32x128xf32> to vector<32x128xf32>
    %437 = arith.mulf %434, %436 : vector<32x128xf32>
    %cst_94 = arith.constant dense<0.000000e+00> : vector<32xf32>
    %438 = vector.multi_reduction <add>, %437, %cst_94 [1] : vector<32x128xf32> to vector<32xf32>
    %439 = vector.shape_cast %438 : vector<32xf32> to vector<32x1xf32>
    %cst_95 = arith.constant dense<0.000000e+00> : vector<1xf32>
    %440 = vector.multi_reduction <add>, %439, %cst_95 [0] : vector<32x1xf32> to vector<1xf32>
    %441 = vector.shape_cast %440 : vector<1xf32> to vector<1x1xf32>
    %c0_i32_96 = arith.constant 0 : i32
    %442 = vector.broadcast %c0_i32_96 : i32 to vector<1x2xi32>
    %443 = arith.cmpi eq, %207, %442 : vector<1x2xi32>
    %cst_97 = arith.constant 0.000000e+00 : f32
    %444 = vector.shape_cast %441 : vector<1x1xf32> to vector<1x1xf32>
    %445 = vector.broadcast %444 : vector<1x1xf32> to vector<1x2xf32>
    %446 = vector.broadcast %cst_97 : f32 to vector<1x2xf32>
    %447 = arith.select %443, %445, %446 : vector<1x2xi1>, vector<1x2xf32>
    %448 = arith.addf %5, %447 : vector<1x2xf32>
    %449 = vector.extract_strided_slice %4 {offsets = [1, 0, 0], sizes = [1, 32, 128], strides = [1, 1, 1]} : vector<2x32x128xf32> to vector<1x32x128xf32>
    %450 = vector.shape_cast %449 : vector<1x32x128xf32> to vector<32x128xf32>
    %451 = arith.mulf %434, %450 : vector<32x128xf32>
    %cst_98 = arith.constant dense<0.000000e+00> : vector<32xf32>
    %452 = vector.multi_reduction <add>, %451, %cst_98 [1] : vector<32x128xf32> to vector<32xf32>
    %453 = vector.shape_cast %452 : vector<32xf32> to vector<32x1xf32>
    %cst_99 = arith.constant dense<0.000000e+00> : vector<1xf32>
    %454 = vector.multi_reduction <add>, %453, %cst_99 [0] : vector<32x1xf32> to vector<1xf32>
    %455 = vector.shape_cast %454 : vector<1xf32> to vector<1x1xf32>
    %c1_i32_100 = arith.constant 1 : i32
    %456 = vector.broadcast %c1_i32_100 : i32 to vector<1x2xi32>
    %457 = arith.cmpi eq, %207, %456 : vector<1x2xi32>
    %cst_101 = arith.constant 0.000000e+00 : f32
    %458 = vector.shape_cast %455 : vector<1x1xf32> to vector<1x1xf32>
    %459 = vector.broadcast %458 : vector<1x1xf32> to vector<1x2xf32>
    %460 = vector.broadcast %cst_101 : f32 to vector<1x2xf32>
    %461 = arith.select %457, %459, %460 : vector<1x2xi1>, vector<1x2xf32>
    %462 = arith.addf %448, %461 : vector<1x2xf32>
    %c7 = arith.constant 7 : index
    %c0_102 = arith.constant 0 : index
    %463 = vector.load %arg8[%c7, %c0_102] : memref<8x2xf32, #tpu.memory_space<vmem>>, vector<1x2xf32>
    tpu.vector_store %arg8[%c7, %c0_102], %462 {strides = array<i32>} : memref<8x2xf32, #tpu.memory_space<vmem>>, vector<1x2xf32>,
    return
  }
  func.func @transform_0(%arg0: i32) -> (i32, i32) {
    %c0_i32 = arith.constant 0 : i32
    %c0_i32_0 = arith.constant 0 : i32
    return %arg0, %c0_i32 : i32, i32
  }
  func.func @transform_1(%arg0: i32) -> (i32, i32, i32) {
    %c0_i32 = arith.constant 0 : i32
    %c0_i32_0 = arith.constant 0 : i32
    %c0_i32_1 = arith.constant 0 : i32
    %c0_i32_2 = arith.constant 0 : i32
    return %c0_i32, %c0_i32_0, %c0_i32_1 : i32, i32, i32
  }
  func.func @transform_2(%arg0: i32) -> (i32, i32) {
    %c0_i32 = arith.constant 0 : i32
    %c0_i32_0 = arith.constant 0 : i32
    %c0_i32_1 = arith.constant 0 : i32
    return %c0_i32, %c0_i32_0 : i32, i32
  }
  func.func @transform_3(%arg0: i32) -> (i32, i32) {
    %c0_i32 = arith.constant 0 : i32
    %c0_i32_0 = arith.constant 0 : i32
    %c0_i32_1 = arith.constant 0 : i32
    return %c0_i32, %c0_i32_0 : i32, i32
  }
  func.func @transform_4(%arg0: i32) -> (i32, i32) {
    %c0_i32 = arith.constant 0 : i32
    %c0_i32_0 = arith.constant 0 : i32
    %c0_i32_1 = arith.constant 0 : i32
    return %c0_i32, %c0_i32_0 : i32, i32
  }
  func.func @transform_5(%arg0: i32) -> (i32, i32, i32) {
    %c0_i32 = arith.constant 0 : i32
    %c0_i32_0 = arith.constant 0 : i32
    %c0_i32_1 = arith.constant 0 : i32
    %c0_i32_2 = arith.constant 0 : i32
    return %c0_i32, %c0_i32_0, %c0_i32_1 : i32, i32, i32
  }
  func.func @transform_6(%arg0: i32) -> (i32, i32) {
    %c0_i32 = arith.constant 0 : i32
    %c0_i32_0 = arith.constant 0 : i32
    %c0_i32_1 = arith.constant 0 : i32
    return %c0_i32, %c0_i32_0 : i32, i32
  }
  func.func @transform_7(%arg0: i32) -> (i32, i32) {
    %c0_i32 = arith.constant 0 : i32
    %c0_i32_0 = arith.constant 0 : i32
    return %arg0, %c0_i32 : i32, i32
  }
}

</mosaic_0001>

<llo_original>
// kernel: c1d_forward.1
$region0: #{c1d_forward.1}
  #allocation0 [shape = 'u32[]', space=smem, size = 0x4, offset = 0x4, fixed_abs, tag = 'smem constant byte address 0x4 - core index']
  #allocation1 [shape = 'u32[144,128]{1,0:T(1,128)}', space=vmem, size = 0x12000, scoped, tag = 'internal scratch']
  %s0 = inlined_call_operand.vmem [shape: f32[8,128], index: 0, kind: input, shape index: {}]
  %s1 = inlined_call_operand.vmem [shape: f32[3,32,1], index: 1, kind: input, shape index: {}]
  %s2 = inlined_call_operand.vmem [shape: f32[32,1], index: 2, kind: input, shape index: {}]
  %s3 = inlined_call_operand.vmem [shape: f32[32,32], index: 3, kind: input, shape index: {}]
  %s4 = inlined_call_operand.vmem [shape: f32[32,1], index: 4, kind: input, shape index: {}]
  %s5 = inlined_call_operand.vmem [shape: f32[2,32,128], index: 5, kind: input, shape index: {}]
  %s6 = inlined_call_operand.vmem [shape: f32[1,2], index: 6, kind: input, shape index: {}]
  %s7 = inlined_call_operand.vmem [shape: f32[8,2], index: 7, kind: output, shape index: {}]
  %s8 = sld [smem:[#allocation0]]
  $region38: #{c1d_forward.1} parent=0
    _
  %s10 = ssub.s32 1, %s8
  %s11 = scalar_select 0, %s10, %s8
  // Predicated region
  $region2: #{c1d_forward.1} parent=0 // pred_check
    _
  $region3: #{c1d_forward.1} parent=0 // pred_check_branch
    %13 = sbr.rel (0) target = $region5
  $region4: #{c1d_forward.1} parent=0 // pred_region
    _
  $region5: #{c1d_forward.1} parent=0 // pred_fallthru
    _
  // Predicated region
  $region6: #{c1d_forward.1} parent=0 // pred_check
    _
  $region7: #{c1d_forward.1} parent=0 // pred_check_branch
    %15 = sbr.rel (0) target = $region9
  $region8: #{c1d_forward.1} parent=0 // pred_region
    _
  $region9: #{c1d_forward.1} parent=0 // pred_fallthru
    _
  // Predicated region
  $region10: #{c1d_forward.1} parent=0 // pred_check
    _
  $region11: #{c1d_forward.1} parent=0 // pred_check_branch
    %17 = sbr.rel (0) target = $region13
  $region12: #{c1d_forward.1} parent=0 // pred_region
    _
  $region13: #{c1d_forward.1} parent=0 // pred_fallthru
    _
  // Predicated region
  $region14: #{c1d_forward.1} parent=0 // pred_check
    _
  $region15: #{c1d_forward.1} parent=0 // pred_check_branch
    %19 = sbr.rel (0) target = $region17
  $region16: #{c1d_forward.1} parent=0 // pred_region
    _
  $region17: #{c1d_forward.1} parent=0 // pred_fallthru
    _
  // Predicated region
  $region18: #{c1d_forward.1} parent=0 // pred_check
    _
  $region19: #{c1d_forward.1} parent=0 // pred_check_branch
    %21 = sbr.rel (0) target = $region21
  $region20: #{c1d_forward.1} parent=0 // pred_region
    _
  $region21: #{c1d_forward.1} parent=0 // pred_fallthru
    _
  // Predicated region
  $region22: #{c1d_forward.1} parent=0 // pred_check
    _
  $region23: #{c1d_forward.1} parent=0 // pred_check_branch
    %23 = sbr.rel (0) target = $region25
  $region24: #{c1d_forward.1} parent=0 // pred_region
    _
  $region25: #{c1d_forward.1} parent=0 // pred_fallthru
    _
  // Predicated region
  $region26: #{c1d_forward.1} parent=0 // pred_check
    _
  $region27: #{c1d_forward.1} parent=0 // pred_check_branch
    %25 = sbr.rel (0) target = $region29
  $region28: #{c1d_forward.1} parent=0 // pred_region
    _
  $region29: #{c1d_forward.1} parent=0 // pred_fallthru
    _
  %v26 = vld [vmem:[%s1] sm:$0xff]
  %v27 = vld [vmem:[%s1 + $0x8] sm:$0xff]
  %v28 = vld [vmem:[%s1 + $0x10] sm:$0xff]
  %v29 = vld [vmem:[%s1 + $0x18] sm:$0xff]
  %v30 = vld [vmem:[%s1 + $0x20] sm:$0xff]
  %v31 = vld [vmem:[%s1 + $0x28] sm:$0xff]
  %v32 = vld [vmem:[%s1 + $0x30] sm:$0xff]
  %v33 = vld [vmem:[%s1 + $0x38] sm:$0xff]
  %v34 = vld [vmem:[%s1 + $0x40] sm:$0xff]
  %v35 = vld [vmem:[%s1 + $0x48] sm:$0xff]
  %v36 = vld [vmem:[%s1 + $0x50] sm:$0xff]
  %v37 = vld [vmem:[%s1 + $0x58] sm:$0xff]
  %v38 = vld [vmem:[%s2] sm:$0xff]
  %v39 = vld [vmem:[%s2 + $0x8] sm:$0xff]
  %v40 = vld [vmem:[%s2 + $0x10] sm:$0xff]
  %v41 = vld [vmem:[%s2 + $0x18] sm:$0xff]
  %v42 = vld [vmem:[%s3] sm:$0xff]
  %v43 = vld [vmem:[%s3 + $0x8] sm:$0xff]
  %v44 = vld [vmem:[%s3 + $0x10] sm:$0xff]
  %v45 = vld [vmem:[%s3 + $0x18] sm:$0xff]
  %v46 = vld [vmem:[%s4] sm:$0xff]
  %v47 = vld [vmem:[%s4 + $0x8] sm:$0xff]
  %v48 = vld [vmem:[%s4 + $0x10] sm:$0xff]
  %v49 = vld [vmem:[%s4 + $0x18] sm:$0xff]
  %v50 = vld [vmem:[%s5] sm:$0xff]
  %v51 = vld [vmem:[%s5 + $0x8] sm:$0xff]
  %v52 = vld [vmem:[%s5 + $0x10] sm:$0xff]
  %v53 = vld [vmem:[%s5 + $0x18] sm:$0xff]
  %v54 = vld [vmem:[%s5 + $0x20] sm:$0xff]
  %v55 = vld [vmem:[%s5 + $0x28] sm:$0xff]
  %v56 = vld [vmem:[%s5 + $0x30] sm:$0xff]
  %v57 = vld [vmem:[%s5 + $0x38] sm:$0xff]
  %v58 = vld [vmem:[%s6] sm:$0x1]
  %v59 = vld [vmem:[%s0] sm:$0xff]
  %60 = vrot.lane.b32.xlu0 %v59, 127
  %v61 = vpop.permute.xlu0 %60
  %62 = vrot.lane.b32.xlu0 %v59, 126
  %v63 = vpop.permute.xlu0 %62
  %65 = vset.pattern.permute.xlu0 0
  %66 = vperm.xlu0 %65, %v26
  %v67 = vpop.permute.xlu0 %66
  %70 = vset.pattern.permute.xlu0 0
  %71 = vperm.xlu0 %70, %v27
  %v72 = vpop.permute.xlu0 %71
  %75 = vset.pattern.permute.xlu0 0
  %76 = vperm.xlu0 %75, %v28
  %v77 = vpop.permute.xlu0 %76
  %80 = vset.pattern.permute.xlu0 0
  %81 = vperm.xlu0 %80, %v29
  %v82 = vpop.permute.xlu0 %81
  %v84 = vlaneseq
  %v85 = vshrl.u32 %v84, 7
  %v86 = vsub.s32 0, %v85
  %v87 = vrot.slane %v59, %v86
  %v88 = vmul.f32 %v67, %v87
  %v89 = vmul.f32 %v72, %v87
  %v90 = vmul.f32 %v77, %v87
  %v91 = vmul.f32 %v82, %v87
  %93 = vset.pattern.permute.xlu0 0
  %94 = vperm.xlu0 %93, %v30
  %v95 = vpop.permute.xlu0 %94
  %98 = vset.pattern.permute.xlu0 0
  %99 = vperm.xlu0 %98, %v31
  %v100 = vpop.permute.xlu0 %99
  %103 = vset.pattern.permute.xlu0 0
  %104 = vperm.xlu0 %103, %v32
  %v105 = vpop.permute.xlu0 %104
  %108 = vset.pattern.permute.xlu0 0
  %109 = vperm.xlu0 %108, %v33
  %v110 = vpop.permute.xlu0 %109
  %v112 = vlaneseq
  %v113 = vshrl.u32 %v112, 7
  %v114 = vsub.s32 0, %v113
  %v115 = vrot.slane %v61, %v114
  %v116 = vmul.f32 %v95, %v115
  %v117 = vmul.f32 %v100, %v115
  %v118 = vmul.f32 %v105, %v115
  %v119 = vmul.f32 %v110, %v115
  %v120 = vadd.f32 %v88, %v116
  %v121 = vadd.f32 %v89, %v117
  %v122 = vadd.f32 %v90, %v118
  %v123 = vadd.f32 %v91, %v119
  %125 = vset.pattern.permute.xlu0 0
  %126 = vperm.xlu0 %125, %v34
  %v127 = vpop.permute.xlu0 %126
  %130 = vset.pattern.permute.xlu0 0
  %131 = vperm.xlu0 %130, %v35
  %v132 = vpop.permute.xlu0 %131
  %135 = vset.pattern.permute.xlu0 0
  %136 = vperm.xlu0 %135, %v36
  %v137 = vpop.permute.xlu0 %136
  %140 = vset.pattern.permute.xlu0 0
  %141 = vperm.xlu0 %140, %v37
  %v142 = vpop.permute.xlu0 %141
  %v144 = vlaneseq
  %v145 = vshrl.u32 %v144, 7
  %v146 = vsub.s32 0, %v145
  %v147 = vrot.slane %v63, %v146
  %v148 = vmul.f32 %v127, %v147
  %v149 = vmul.f32 %v132, %v147
  %v150 = vmul.f32 %v137, %v147
  %v151 = vmul.f32 %v142, %v147
  %v152 = vadd.f32 %v120, %v148
  %v153 = vadd.f32 %v121, %v149
  %v154 = vadd.f32 %v122, %v150
  %v155 = vadd.f32 %v123, %v151
  %157 = vset.pattern.permute.xlu0 0
  %158 = vperm.xlu0 %157, %v38
  %v159 = vpop.permute.xlu0 %158
  %162 = vset.pattern.permute.xlu0 0
  %163 = vperm.xlu0 %162, %v39
  %v164 = vpop.permute.xlu0 %163
  %167 = vset.pattern.permute.xlu0 0
  %168 = vperm.xlu0 %167, %v40
  %v169 = vpop.permute.xlu0 %168
  %172 = vset.pattern.permute.xlu0 0
  %173 = vperm.xlu0 %172, %v41
  %v174 = vpop.permute.xlu0 %173
  %v176 = vadd.f32 %v152, %v159
  %v177 = vadd.f32 %v153, %v164
  %v178 = vadd.f32 %v154, %v169
  %v179 = vadd.f32 %v155, %v174
  %v180 = vmax.f32 %v176, 0.0
  %v181 = vmax.f32 %v177, 0.0
  %v182 = vmax.f32 %v178, 0.0
  %v183 = vmax.f32 %v179, 0.0
  %v184 = vlaneseq
  %v185 = vshrl.u32 %v184, 7
  %v186 = vsub.s32 1, %v185
  %v187 = vrot.slane %v59, %v186
  %v188 = vmul.f32 %v67, %v187
  %v189 = vmul.f32 %v72, %v187
  %v190 = vmul.f32 %v77, %v187
  %v191 = vmul.f32 %v82, %v187
  %v192 = vlaneseq
  %v193 = vshrl.u32 %v192, 7
  %v194 = vsub.s32 1, %v193
  %v195 = vrot.slane %v61, %v194
  %v196 = vmul.f32 %v95, %v195
  %v197 = vmul.f32 %v100, %v195
  %v198 = vmul.f32 %v105, %v195
  %v199 = vmul.f32 %v110, %v195
  %v200 = vadd.f32 %v188, %v196
  %v201 = vadd.f32 %v189, %v197
  %v202 = vadd.f32 %v190, %v198
  %v203 = vadd.f32 %v191, %v199
  %v204 = vlaneseq
  %v205 = vshrl.u32 %v204, 7
  %v206 = vsub.s32 1, %v205
  %v207 = vrot.slane %v63, %v206
  %v208 = vmul.f32 %v127, %v207
  %v209 = vmul.f32 %v132, %v207
  %v210 = vmul.f32 %v137, %v207
  %v211 = vmul.f32 %v142, %v207
  %v212 = vadd.f32 %v200, %v208
  %v213 = vadd.f32 %v201, %v209
  %v214 = vadd.f32 %v202, %v210
  %v215 = vadd.f32 %v203, %v211
  %v216 = vadd.f32 %v212, %v159
  %v217 = vadd.f32 %v213, %v164
  %v218 = vadd.f32 %v214, %v169
  %v219 = vadd.f32 %v215, %v174
  %v220 = vmax.f32 %v216, 0.0
  %v221 = vmax.f32 %v217, 0.0
  %v222 = vmax.f32 %v218, 0.0
  %v223 = vmax.f32 %v219, 0.0
  %v224 = vlaneseq
  %v225 = vshrl.u32 %v224, 7
  %v226 = vsub.s32 2, %v225
  %v227 = vrot.slane %v59, %v226
  %v228 = vmul.f32 %v67, %v227
  %v229 = vmul.f32 %v72, %v227
  %v230 = vmul.f32 %v77, %v227
  %v231 = vmul.f32 %v82, %v227
  %v232 = vlaneseq
  %v233 = vshrl.u32 %v232, 7
  %v234 = vsub.s32 2, %v233
  %v235 = vrot.slane %v61, %v234
  %v236 = vmul.f32 %v95, %v235
  %v237 = vmul.f32 %v100, %v235
  %v238 = vmul.f32 %v105, %v235
  %v239 = vmul.f32 %v110, %v235
  %v240 = vadd.f32 %v228, %v236
  %v241 = vadd.f32 %v229, %v237
  %v242 = vadd.f32 %v230, %v238
  %v243 = vadd.f32 %v231, %v239
  %v244 = vlaneseq
  %v245 = vshrl.u32 %v244, 7
  %v246 = vsub.s32 2, %v245
  %v247 = vrot.slane %v63, %v246
  %v248 = vmul.f32 %v127, %v247
  %v249 = vmul.f32 %v132, %v247
  %v250 = vmul.f32 %v137, %v247
  %v251 = vmul.f32 %v142, %v247
  %v252 = vadd.f32 %v240, %v248
  %v253 = vadd.f32 %v241, %v249
  %v254 = vadd.f32 %v242, %v250
  %v255 = vadd.f32 %v243, %v251
  %v256 = vadd.f32 %v252, %v159
  %v257 = vadd.f32 %v253, %v164
  %v258 = vadd.f32 %v254, %v169
  %v259 = vadd.f32 %v255, %v174
  %v260 = vmax.f32 %v256, 0.0
  %v261 = vmax.f32 %v257, 0.0
  %v262 = vmax.f32 %v258, 0.0
  %v263 = vmax.f32 %v259, 0.0
  %v264 = vlaneseq
  %v265 = vshrl.u32 %v264, 7
  %v266 = vsub.s32 3, %v265
  %v267 = vrot.slane %v59, %v266
  %v268 = vmul.f32 %v67, %v267
  %v269 = vmul.f32 %v72, %v267
  %v270 = vmul.f32 %v77, %v267
  %v271 = vmul.f32 %v82, %v267
  %v272 = vlaneseq
  %v273 = vshrl.u32 %v272, 7
  %v274 = vsub.s32 3, %v273
  %v275 = vrot.slane %v61, %v274
  %v276 = vmul.f32 %v95, %v275
  %v277 = vmul.f32 %v100, %v275
  %v278 = vmul.f32 %v105, %v275
  %v279 = vmul.f32 %v110, %v275
  %v280 = vadd.f32 %v268, %v276
  %v281 = vadd.f32 %v269, %v277
  %v282 = vadd.f32 %v270, %v278
  %v283 = vadd.f32 %v271, %v279
  %v284 = vlaneseq
  %v285 = vshrl.u32 %v284, 7
  %v286 = vsub.s32 3, %v285
  %v287 = vrot.slane %v63, %v286
  %v288 = vmul.f32 %v127, %v287
  %v289 = vmul.f32 %v132, %v287
  %v290 = vmul.f32 %v137, %v287
  %v291 = vmul.f32 %v142, %v287
  %v292 = vadd.f32 %v280, %v288
  %v293 = vadd.f32 %v281, %v289
  %v294 = vadd.f32 %v282, %v290
  %v295 = vadd.f32 %v283, %v291
  %v296 = vadd.f32 %v292, %v159
  %v297 = vadd.f32 %v293, %v164
  %v298 = vadd.f32 %v294, %v169
  %v299 = vadd.f32 %v295, %v174
  %v300 = vmax.f32 %v296, 0.0
  %v301 = vmax.f32 %v297, 0.0
  %v302 = vmax.f32 %v298, 0.0
  %v303 = vmax.f32 %v299, 0.0
  %v304 = vlaneseq
  %v305 = vshrl.u32 %v304, 7
  %v306 = vsub.s32 4, %v305
  %v307 = vrot.slane %v59, %v306
  %v308 = vmul.f32 %v67, %v307
  %v309 = vmul.f32 %v72, %v307
  %v310 = vmul.f32 %v77, %v307
  %v311 = vmul.f32 %v82, %v307
  %v312 = vlaneseq
  %v313 = vshrl.u32 %v312, 7
  %v314 = vsub.s32 4, %v313
  %v315 = vrot.slane %v61, %v314
  %v316 = vmul.f32 %v95, %v315
  %v317 = vmul.f32 %v100, %v315
  %v318 = vmul.f32 %v105, %v315
  %v319 = vmul.f32 %v110, %v315
  %v320 = vadd.f32 %v308, %v316
  %v321 = vadd.f32 %v309, %v317
  %v322 = vadd.f32 %v310, %v318
  %v323 = vadd.f32 %v311, %v319
  %v324 = vlaneseq
  %v325 = vshrl.u32 %v324, 7
  %v326 = vsub.s32 4, %v325
  %v327 = vrot.slane %v63, %v326
  %v328 = vmul.f32 %v127, %v327
  %v329 = vmul.f32 %v132, %v327
  %v330 = vmul.f32 %v137, %v327
  %v331 = vmul.f32 %v142, %v327
  %v332 = vadd.f32 %v320, %v328
  %v333 = vadd.f32 %v321, %v329
  %v334 = vadd.f32 %v322, %v330
  %v335 = vadd.f32 %v323, %v331
  %v336 = vadd.f32 %v332, %v159
  %v337 = vadd.f32 %v333, %v164
  %v338 = vadd.f32 %v334, %v169
  %v339 = vadd.f32 %v335, %v174
  %v340 = vmax.f32 %v336, 0.0
  %v341 = vmax.f32 %v337, 0.0
  %v342 = vmax.f32 %v338, 0.0
  %v343 = vmax.f32 %v339, 0.0
  %v344 = vlaneseq
  %v345 = vshrl.u32 %v344, 7
  %v346 = vsub.s32 5, %v345
  %v347 = vrot.slane %v59, %v346
  %v348 = vmul.f32 %v67, %v347
  %v349 = vmul.f32 %v72, %v347
  %v350 = vmul.f32 %v77, %v347
  %v351 = vmul.f32 %v82, %v347
  %v352 = vlaneseq
  %v353 = vshrl.u32 %v352, 7
  %v354 = vsub.s32 5, %v353
  %v355 = vrot.slane %v61, %v354
  %v356 = vmul.f32 %v95, %v355
  %v357 = vmul.f32 %v100, %v355
  %v358 = vmul.f32 %v105, %v355
  %v359 = vmul.f32 %v110, %v355
  %v360 = vadd.f32 %v348, %v356
  %v361 = vadd.f32 %v349, %v357
  %v362 = vadd.f32 %v350, %v358
  %v363 = vadd.f32 %v351, %v359
  %v364 = vlaneseq
  %v365 = vshrl.u32 %v364, 7
  %v366 = vsub.s32 5, %v365
  %v367 = vrot.slane %v63, %v366
  %v368 = vmul.f32 %v127, %v367
  %v369 = vmul.f32 %v132, %v367
  %v370 = vmul.f32 %v137, %v367
  %v371 = vmul.f32 %v142, %v367
  %v372 = vadd.f32 %v360, %v368
  %v373 = vadd.f32 %v361, %v369
  %v374 = vadd.f32 %v362, %v370
  %v375 = vadd.f32 %v363, %v371
  %v376 = vadd.f32 %v372, %v159
  %v377 = vadd.f32 %v373, %v164
  %v378 = vadd.f32 %v374, %v169
  %v379 = vadd.f32 %v375, %v174
  %v380 = vmax.f32 %v376, 0.0
  %v381 = vmax.f32 %v377, 0.0
  %v382 = vmax.f32 %v378, 0.0
  %v383 = vmax.f32 %v379, 0.0
  %v384 = vlaneseq
  %v385 = vshrl.u32 %v384, 7
  %v386 = vsub.s32 6, %v385
  %v387 = vrot.slane %v59, %v386
  %v388 = vmul.f32 %v67, %v387
  %v389 = vmul.f32 %v72, %v387
  %v390 = vmul.f32 %v77, %v387
  %v391 = vmul.f32 %v82, %v387
  %v392 = vlaneseq
  %v393 = vshrl.u32 %v392, 7
  %v394 = vsub.s32 6, %v393
  %v395 = vrot.slane %v61, %v394
  %v396 = vmul.f32 %v95, %v395
  %v397 = vmul.f32 %v100, %v395
  %v398 = vmul.f32 %v105, %v395
  %v399 = vmul.f32 %v110, %v395
  %v400 = vadd.f32 %v388, %v396
  %v401 = vadd.f32 %v389, %v397
  %v402 = vadd.f32 %v390, %v398
  %v403 = vadd.f32 %v391, %v399
  %v404 = vlaneseq
  %v405 = vshrl.u32 %v404, 7
  %v406 = vsub.s32 6, %v405
  %v407 = vrot.slane %v63, %v406
  %v408 = vmul.f32 %v127, %v407
  %v409 = vmul.f32 %v132, %v407
  %v410 = vmul.f32 %v137, %v407
  %v411 = vmul.f32 %v142, %v407
  %v412 = vadd.f32 %v400, %v408
  %v413 = vadd.f32 %v401, %v409
  %v414 = vadd.f32 %v402, %v410
  %v415 = vadd.f32 %v403, %v411
  %v416 = vadd.f32 %v412, %v159
  %v417 = vadd.f32 %v413, %v164
  %v418 = vadd.f32 %v414, %v169
  %v419 = vadd.f32 %v415, %v174
  %v420 = vmax.f32 %v416, 0.0
  %v421 = vmax.f32 %v417, 0.0
  %v422 = vmax.f32 %v418, 0.0
  %v423 = vmax.f32 %v419, 0.0
  %v424 = vlaneseq
  %v425 = vshrl.u32 %v424, 7
  %v426 = vsub.s32 7, %v425
  %v427 = vrot.slane %v59, %v426
  %v428 = vmul.f32 %v67, %v427
  %v429 = vmul.f32 %v72, %v427
  %v430 = vmul.f32 %v77, %v427
  %v431 = vmul.f32 %v82, %v427
  %v432 = vlaneseq
  %v433 = vshrl.u32 %v432, 7
  %v434 = vsub.s32 7, %v433
  %v435 = vrot.slane %v61, %v434
  %v436 = vmul.f32 %v95, %v435
  %v437 = vmul.f32 %v100, %v435
  %v438 = vmul.f32 %v105, %v435
  %v439 = vmul.f32 %v110, %v435
  %v440 = vadd.f32 %v428, %v436
  %v441 = vadd.f32 %v429, %v437
  %v442 = vadd.f32 %v430, %v438
  %v443 = vadd.f32 %v431, %v439
  %v444 = vlaneseq
  %v445 = vshrl.u32 %v444, 7
  %v446 = vsub.s32 7, %v445
  %v447 = vrot.slane %v63, %v446
  %v448 = vmul.f32 %v127, %v447
  %v449 = vmul.f32 %v132, %v447
  %v450 = vmul.f32 %v137, %v447
  %v451 = vmul.f32 %v142, %v447
  %v452 = vadd.f32 %v440, %v448
  %v453 = vadd.f32 %v441, %v449
  %v454 = vadd.f32 %v442, %v450
  %v455 = vadd.f32 %v443, %v451
  %v456 = vadd.f32 %v452, %v159
  %v457 = vadd.f32 %v453, %v164
  %v458 = vadd.f32 %v454, %v169
  %v459 = vadd.f32 %v455, %v174
  %v460 = vmax.f32 %v456, 0.0
  %v461 = vmax.f32 %v457, 0.0
  %v462 = vmax.f32 %v458, 0.0
  %v463 = vmax.f32 %v459, 0.0
  %465 = vset.pattern.permute.xlu0 0
  %466 = vperm.xlu0 %465, %v46
  %v467 = vpop.permute.xlu0 %466
  %470 = vset.pattern.permute.xlu0 0
  %471 = vperm.xlu0 %470, %v47
  %v472 = vpop.permute.xlu0 %471
  %475 = vset.pattern.permute.xlu0 0
  %476 = vperm.xlu0 %475, %v48
  %v477 = vpop.permute.xlu0 %476
  %480 = vset.pattern.permute.xlu0 0
  %481 = vperm.xlu0 %480, %v49
  %v482 = vpop.permute.xlu0 %481
  %vm484 = vcmask 261120
  %v486 = vsel %vm484, %v42, 0
  %v489 = vsel %vm484, %v43, 0
  %v492 = vsel %vm484, %v44, 0
  %v495 = vsel %vm484, %v45, 0
  %v497 = vand.u32 %v220, 4294901760
  %498 = vmatprep.subr.mxu0 %v497
  %v499 = vand.u32 %v180, 4294901760
  %500 = vmatpush1.msra.mxu0 %v499
  %v501 = vand.u32 %v221, 4294901760
  %502 = vmatprep.subr.mxu0 %v501
  %v503 = vand.u32 %v181, 4294901760
  %504 = vmatpush1.msra.mxu0 %v503
  %v505 = vand.u32 %v222, 4294901760
  %506 = vmatprep.subr.mxu0 %v505
  %v507 = vand.u32 %v182, 4294901760
  %508 = vmatpush1.msra.mxu0 %v507
  %v509 = vand.u32 %v223, 4294901760
  %510 = vmatprep.subr.mxu0 %v509
  %v511 = vand.u32 %v183, 4294901760
  %512 = vmatpush1.msra.mxu0 %v511
  %513 = vmatprep.subr.mxu0 0.0
  %514 = vmatpush1.msra.mxu0 0.0
  %515 = vmatprep.subr.mxu0 0.0
  %516 = vmatpush1.msra.mxu0 0.0
  %517 = vmatprep.subr.mxu0 0.0
  %518 = vmatpush1.msra.mxu0 0.0
  %519 = vmatprep.subr.mxu0 0.0
  %520 = vmatpush1.msra.mxu0 0.0
  %521 = vmatprep.subr.mxu0 0.0
  %522 = vmatpush1.msra.mxu0 0.0
  %523 = vmatprep.subr.mxu0 0.0
  %524 = vmatpush1.msra.mxu0 0.0
  %525 = vmatprep.subr.mxu0 0.0
  %526 = vmatpush1.msra.mxu0 0.0
  %527 = vmatprep.subr.mxu0 0.0
  %528 = vmatpush1.msra.mxu0 0.0
  %529 = vmatprep.subr.mxu0 0.0
  %530 = vmatpush1.msra.mxu0 0.0
  %531 = vmatprep.subr.mxu0 0.0
  %532 = vmatpush1.msra.mxu0 0.0
  %533 = vmatprep.subr.mxu0 0.0
  %534 = vmatpush1.msra.mxu0 0.0
  %535 = vmatprep.subr.mxu0 0.0
  %536 = vmatpush1.msra.mxu0 0.0
  %537 = vmatprep.subr.mxu0 0.0
  %538 = vmatpush1.msra.mxu0 0.0
  %539 = vmatprep.subr.mxu0 0.0
  %540 = vmatpush1.msra.mxu0 0.0
  %541 = vmatprep.subr.mxu0 0.0
  %542 = vmatpush1.msra.mxu0 0.0
  %543 = vmatprep.subr.mxu0 0.0
  %544 = vmatpush1.msra.mxu0 0.0
  %545 = vmatprep.subr.mxu0 0.0
  %546 = vmatpush1.msra.mxu0 0.0
  %547 = vmatprep.subr.mxu0 0.0
  %548 = vmatpush1.msra.mxu0 0.0
  %549 = vmatprep.subr.mxu0 0.0
  %550 = vmatpush1.msra.mxu0 0.0
  %551 = vmatprep.subr.mxu0 0.0
  %552 = vmatpush1.msra.mxu0 0.0
  %553 = vmatprep.subr.mxu0 0.0
  %554 = vmatpush1.msra.mxu0 0.0
  %555 = vmatprep.subr.mxu0 0.0
  %556 = vmatpush1.msra.mxu0 0.0
  %557 = vmatprep.subr.mxu0 0.0
  %558 = vmatpush1.msra.mxu0 0.0
  %559 = vmatprep.subr.mxu0 0.0
  %560 = vmatpush1.msra.mxu0 0.0
  %561 = vmatprep.subr.mxu0 0.0
  %562 = vmatpush1.msra.mxu0 0.0
  %563 = vmatprep.subr.mxu0 0.0
  %564 = vmatpush1.msra.mxu0 0.0
  %565 = vmatprep.subr.mxu0 0.0
  %566 = vmatpush1.msra.mxu0 0.0
  %567 = vmatprep.subr.mxu0 0.0
  %568 = vmatpush1.msra.mxu0 0.0
  %569 = vmatprep.mubr.f32.mxu0 0.0
  %v570 = vand.u32 %v486, 4294901760
  %v571 = vsub.f32 %v486, %v570
  %v572 = vand.u32 %v571, 4294901760
  %v573 = vsub.f32 %v571, %v572
  %v574 = vand.u32 %v573, 4294901760
  %575 = vmatmul.mubr.f32.gmra.mrb[0].mxu0 %v574
  %v576 = vpop.f32.mrb[0].mxu0
  %v577 = vadd.f32 %v467, %v576
  %v578 = vpop.f32.mrb[0].mxu0
  %v579 = vadd.f32 %v467, %v578
  %580 = vmatprep.mubr.f32.mxu0 0.0
  %v581 = vand.u32 %v489, 4294901760
  %v582 = vsub.f32 %v489, %v581
  %v583 = vand.u32 %v582, 4294901760
  %v584 = vsub.f32 %v582, %v583
  %v585 = vand.u32 %v584, 4294901760
  %586 = vmatmul.mubr.f32.gmra.mrb[0].mxu0 %v585
  %v587 = vpop.f32.mrb[0].mxu0
  %v588 = vadd.f32 %v472, %v587
  %v589 = vpop.f32.mrb[0].mxu0
  %v590 = vadd.f32 %v472, %v589
  %591 = vmatprep.mubr.f32.mxu0 0.0
  %v592 = vand.u32 %v492, 4294901760
  %v593 = vsub.f32 %v492, %v592
  %v594 = vand.u32 %v593, 4294901760
  %v595 = vsub.f32 %v593, %v594
  %v596 = vand.u32 %v595, 4294901760
  %597 = vmatmul.mubr.f32.gmra.mrb[0].mxu0 %v596
  %v598 = vpop.f32.mrb[0].mxu0
  %v599 = vadd.f32 %v477, %v598
  %v600 = vpop.f32.mrb[0].mxu0
  %v601 = vadd.f32 %v477, %v600
  %602 = vmatprep.mubr.f32.mxu0 0.0
  %v603 = vand.u32 %v495, 4294901760
  %v604 = vsub.f32 %v495, %v603
  %v605 = vand.u32 %v604, 4294901760
  %v606 = vsub.f32 %v604, %v605
  %v607 = vand.u32 %v606, 4294901760
  %608 = vmatmul.mubr.f32.gmra.mrb[0].mxu0 %v607
  %v609 = vpop.f32.mrb[0].mxu0
  %v610 = vadd.f32 %v482, %v609
  %v611 = vpop.f32.mrb[0].mxu0
  %v612 = vadd.f32 %v482, %v611
  %613 = vdwg.mxu0
  %v614 = vand.u32 %v220, 4294901760
  %v615 = vsub.f32 %v220, %v614
  %v616 = vand.u32 %v615, 4294901760
  %v617 = vsub.f32 %v615, %v616
  %v618 = vand.u32 %v617, 4294901760
  %619 = vmatprep.subr.mxu0 %v618
  %v620 = vand.u32 %v180, 4294901760
  %v621 = vsub.f32 %v180, %v620
  %v622 = vand.u32 %v621, 4294901760
  %v623 = vsub.f32 %v621, %v622
  %v624 = vand.u32 %v623, 4294901760
  %625 = vmatpush1.msra.mxu0 %v624
  %v626 = vand.u32 %v221, 4294901760
  %v627 = vsub.f32 %v221, %v626
  %v628 = vand.u32 %v627, 4294901760
  %v629 = vsub.f32 %v627, %v628
  %v630 = vand.u32 %v629, 4294901760
  %631 = vmatprep.subr.mxu0 %v630
  %v632 = vand.u32 %v181, 4294901760
  %v633 = vsub.f32 %v181, %v632
  %v634 = vand.u32 %v633, 4294901760
  %v635 = vsub.f32 %v633, %v634
  %v636 = vand.u32 %v635, 4294901760
  %637 = vmatpush1.msra.mxu0 %v636
  %v638 = vand.u32 %v222, 4294901760
  %v639 = vsub.f32 %v222, %v638
  %v640 = vand.u32 %v639, 4294901760
  %v641 = vsub.f32 %v639, %v640
  %v642 = vand.u32 %v641, 4294901760
  %643 = vmatprep.subr.mxu0 %v642
  %v644 = vand.u32 %v182, 4294901760
  %v645 = vsub.f32 %v182, %v644
  %v646 = vand.u32 %v645, 4294901760
  %v647 = vsub.f32 %v645, %v646
  %v648 = vand.u32 %v647, 4294901760
  %649 = vmatpush1.msra.mxu0 %v648
  %v650 = vand.u32 %v223, 4294901760
  %v651 = vsub.f32 %v223, %v650
  %v652 = vand.u32 %v651, 4294901760
  %v653 = vsub.f32 %v651, %v652
  %v654 = vand.u32 %v653, 4294901760
  %655 = vmatprep.subr.mxu0 %v654
  %v656 = vand.u32 %v183, 4294901760
  %v657 = vsub.f32 %v183, %v656
  %v658 = vand.u32 %v657, 4294901760
  %v659 = vsub.f32 %v657, %v658
  %v660 = vand.u32 %v659, 4294901760
  %661 = vmatpush1.msra.mxu0 %v660
  %662 = vmatprep.subr.mxu0 0.0
  %663 = vmatpush1.msra.mxu0 0.0
  %664 = vmatprep.subr.mxu0 0.0
  %665 = vmatpush1.msra.mxu0 0.0
  %666 = vmatprep.subr.mxu0 0.0
  %667 = vmatpush1.msra.mxu0 0.0
  %668 = vmatprep.subr.mxu0 0.0
  %669 = vmatpush1.msra.mxu0 0.0
  %670 = vmatprep.subr.mxu0 0.0
  %671 = vmatpush1.msra.mxu0 0.0
  %672 = vmatprep.subr.mxu0 0.0
  %673 = vmatpush1.msra.mxu0 0.0
  %674 = vmatprep.subr.mxu0 0.0
  %675 = vmatpush1.msra.mxu0 0.0
  %676 = vmatprep.subr.mxu0 0.0
  %677 = vmatpush1.msra.mxu0 0.0
  %678 = vmatprep.subr.mxu0 0.0
  %679 = vmatpush1.msra.mxu0 0.0
  %680 = vmatprep.subr.mxu0 0.0
  %681 = vmatpush1.msra.mxu0 0.0
  %682 = vmatprep.subr.mxu0 0.0
  %683 = vmatpush1.msra.mxu0 0.0
  %684 = vmatprep.subr.mxu0 0.0
  %685 = vmatpush1.msra.mxu0 0.0
  %686 = vmatprep.subr.mxu0 0.0
  %687 = vmatpush1.msra.mxu0 0.0
  %688 = vmatprep.subr.mxu0 0.0
  %689 = vmatpush1.msra.mxu0 0.0
  %690 = vmatprep.subr.mxu0 0.0
  %691 = vmatpush1.msra.mxu0 0.0
  %692 = vmatprep.subr.mxu0 0.0
  %693 = vmatpush1.msra.mxu0 0.0
  %694 = vmatprep.subr.mxu0 0.0
  %695 = vmatpush1.msra.mxu0 0.0
  %696 = vmatprep.subr.mxu0 0.0
  %697 = vmatpush1.msra.mxu0 0.0
  %698 = vmatprep.subr.mxu0 0.0
  %699 = vmatpush1.msra.mxu0 0.0
  %700 = vmatprep.subr.mxu0 0.0
  %701 = vmatpush1.msra.mxu0 0.0
  %702 = vmatprep.subr.mxu0 0.0
  %703 = vmatpush1.msra.mxu0 0.0
  %704 = vmatprep.subr.mxu0 0.0
  %705 = vmatpush1.msra.mxu0 0.0
  %706 = vmatprep.subr.mxu0 0.0
  %707 = vmatpush1.msra.mxu0 0.0
  %708 = vmatprep.subr.mxu0 0.0
  %709 = vmatpush1.msra.mxu0 0.0
  %710 = vmatprep.subr.mxu0 0.0
  %711 = vmatpush1.msra.mxu0 0.0
  %712 = vmatprep.subr.mxu0 0.0
  %713 = vmatpush1.msra.mxu0 0.0
  %714 = vmatprep.subr.mxu0 0.0
  %715 = vmatpush1.msra.mxu0 0.0
  %716 = vmatprep.subr.mxu0 0.0
  %717 = vmatpush1.msra.mxu0 0.0
  %718 = vmatprep.mubr.f32.mxu0 0.0
  %v719 = vand.u32 %v486, 4294901760
  %720 = vmatmul.mubr.f32.gmra.mrb[0].mxu0 %v719
  %v721 = vpop.f32.mrb[0].mxu0
  %v722 = vadd.f32 %v577, %v721
  %v723 = vpop.f32.mrb[0].mxu0
  %v724 = vadd.f32 %v579, %v723
  %725 = vmatprep.mubr.f32.mxu0 0.0
  %v726 = vand.u32 %v489, 4294901760
  %727 = vmatmul.mubr.f32.gmra.mrb[0].mxu0 %v726
  %v728 = vpop.f32.mrb[0].mxu0
  %v729 = vadd.f32 %v588, %v728
  %v730 = vpop.f32.mrb[0].mxu0
  %v731 = vadd.f32 %v590, %v730
  %732 = vmatprep.mubr.f32.mxu0 0.0
  %v733 = vand.u32 %v492, 4294901760
  %734 = vmatmul.mubr.f32.gmra.mrb[0].mxu0 %v733
  %v735 = vpop.f32.mrb[0].mxu0
  %v736 = vadd.f32 %v599, %v735
  %v737 = vpop.f32.mrb[0].mxu0
  %v738 = vadd.f32 %v601, %v737
  %739 = vmatprep.mubr.f32.mxu0 0.0
  %v740 = vand.u32 %v495, 4294901760
  %741 = vmatmul.mubr.f32.gmra.mrb[0].mxu0 %v740
  %v742 = vpop.f32.mrb[0].mxu0
  %v743 = vadd.f32 %v610, %v742
  %v744 = vpop.f32.mrb[0].mxu0
  %v745 = vadd.f32 %v612, %v744
  %746 = vdwg.mxu0
  %v747 = vand.u32 %v220, 4294901760
  %v748 = vsub.f32 %v220, %v747
  %749 = vmatprep.subr.mxu0 %v748
  %v750 = vand.u32 %v180, 4294901760
  %v751 = vsub.f32 %v180, %v750
  %752 = vmatpush1.msra.mxu0 %v751
  %v753 = vand.u32 %v221, 4294901760
  %v754 = vsub.f32 %v221, %v753
  %755 = vmatprep.subr.mxu0 %v754
  %v756 = vand.u32 %v181, 4294901760
  %v757 = vsub.f32 %v181, %v756
  %758 = vmatpush1.msra.mxu0 %v757
  %v759 = vand.u32 %v222, 4294901760
  %v760 = vsub.f32 %v222, %v759
  %761 = vmatprep.subr.mxu0 %v760
  %v762 = vand.u32 %v182, 4294901760
  %v763 = vsub.f32 %v182, %v762
  %764 = vmatpush1.msra.mxu0 %v763
  %v765 = vand.u32 %v223, 4294901760
  %v766 = vsub.f32 %v223, %v765
  %767 = vmatprep.subr.mxu0 %v766
  %v768 = vand.u32 %v183, 4294901760
  %v769 = vsub.f32 %v183, %v768
  %770 = vmatpush1.msra.mxu0 %v769
  %771 = vmatprep.subr.mxu0 0.0
  %772 = vmatpush1.msra.mxu0 0.0
  %773 = vmatprep.subr.mxu0 0.0
  %774 = vmatpush1.msra.mxu0 0.0
  %775 = vmatprep.subr.mxu0 0.0
  %776 = vmatpush1.msra.mxu0 0.0
  %777 = vmatprep.subr.mxu0 0.0
  %778 = vmatpush1.msra.mxu0 0.0
  %779 = vmatprep.subr.mxu0 0.0
  %780 = vmatpush1.msra.mxu0 0.0
  %781 = vmatprep.subr.mxu0 0.0
  %782 = vmatpush1.msra.mxu0 0.0
  %783 = vmatprep.subr.mxu0 0.0
  %784 = vmatpush1.msra.mxu0 0.0
  %785 = vmatprep.subr.mxu0 0.0
  %786 = vmatpush1.msra.mxu0 0.0
  %787 = vmatprep.subr.mxu0 0.0
  %788 = vmatpush1.msra.mxu0 0.0
  %789 = vmatprep.subr.mxu0 0.0
  %790 = vmatpush1.msra.mxu0 0.0
  %791 = vmatprep.subr.mxu0 0.0
  %792 = vmatpush1.msra.mxu0 0.0
  %793 = vmatprep.subr.mxu0 0.0
  %794 = vmatpush1.msra.mxu0 0.0
  %795 = vmatprep.subr.mxu0 0.0
  %796 = vmatpush1.msra.mxu0 0.0
  %797 = vmatprep.subr.mxu0 0.0
  %798 = vmatpush1.msra.mxu0 0.0
  %799 = vmatprep.subr.mxu0 0.0
  %800 = vmatpush1.msra.mxu0 0.0
  %801 = vmatprep.subr.mxu0 0.0
  %802 = vmatpush1.msra.mxu0 0.0
  %803 = vmatprep.subr.mxu0 0.0
  %804 = vmatpush1.msra.mxu0 0.0
  %805 = vmatprep.subr.mxu0 0.0
  %806 = vmatpush1.msra.mxu0 0.0
  %807 = vmatprep.subr.mxu0 0.0
  %808 = vmatpush1.msra.mxu0 0.0
  %809 = vmatprep.subr.mxu0 0.0
  %810 = vmatpush1.msra.mxu0 0.0
  %811 = vmatprep.subr.mxu0 0.0
  %812 = vmatpush1.msra.mxu0 0.0
  %813 = vmatprep.subr.mxu0 0.0
  %814 = vmatpush1.msra.mxu0 0.0
  %815 = vmatprep.subr.mxu0 0.0
  %816 = vmatpush1.msra.mxu0 0.0
  %817 = vmatprep.subr.mxu0 0.0
  %818 = vmatpush1.msra.mxu0 0.0
  %819 = vmatprep.subr.mxu0 0.0
  %820 = vmatpush1.msra.mxu0 0.0
  %821 = vmatprep.subr.mxu0 0.0
  %822 = vmatpush1.msra.mxu0 0.0
  %823 = vmatprep.subr.mxu0 0.0
  %824 = vmatpush1.msra.mxu0 0.0
  %825 = vmatprep.subr.mxu0 0.0
  %826 = vmatpush1.msra.mxu0 0.0
  %827 = vmatprep.mubr.f32.mxu0 0.0
  %v828 = vand.u32 %v486, 4294901760
  %v829 = vsub.f32 %v486, %v828
  %830 = vmatmul.mubr.f32.gmra.mrb[0].mxu0 %v829
  %v831 = vpop.f32.mrb[0].mxu0
  %v832 = vadd.f32 %v722, %v831
  %v833 = vpop.f32.mrb[0].mxu0
  %v834 = vadd.f32 %v724, %v833
  %835 = vmatprep.mubr.f32.mxu0 0.0
  %v836 = vand.u32 %v489, 4294901760
  %v837 = vsub.f32 %v489, %v836
  %838 = vmatmul.mubr.f32.gmra.mrb[0].mxu0 %v837
  %v839 = vpop.f32.mrb[0].mxu0
  %v840 = vadd.f32 %v729, %v839
  %v841 = vpop.f32.mrb[0].mxu0
  %v842 = vadd.f32 %v731, %v841
  %843 = vmatprep.mubr.f32.mxu0 0.0
  %v844 = vand.u32 %v492, 4294901760
  %v845 = vsub.f32 %v492, %v844
  %846 = vmatmul.mubr.f32.gmra.mrb[0].mxu0 %v845
  %v847 = vpop.f32.mrb[0].mxu0
  %v848 = vadd.f32 %v736, %v847
  %v849 = vpop.f32.mrb[0].mxu0
  %v850 = vadd.f32 %v738, %v849
  %851 = vmatprep.mubr.f32.mxu0 0.0
  %v852 = vand.u32 %v495, 4294901760
  %v853 = vsub.f32 %v495, %v852
  %854 = vmatmul.mubr.f32.gmra.mrb[0].mxu0 %v853
  %v855 = vpop.f32.mrb[0].mxu0
  %v856 = vadd.f32 %v743, %v855
  %v857 = vpop.f32.mrb[0].mxu0
  %v858 = vadd.f32 %v745, %v857
  %859 = vdwg.mxu0
  %v860 = vand.u32 %v220, 4294901760
  %861 = vmatprep.subr.mxu0 %v860
  %v862 = vand.u32 %v180, 4294901760
  %863 = vmatpush1.msra.mxu0 %v862
  %v864 = vand.u32 %v221, 4294901760
  %865 = vmatprep.subr.mxu0 %v864
  %v866 = vand.u32 %v181, 4294901760
  %867 = vmatpush1.msra.mxu0 %v866
  %v868 = vand.u32 %v222, 4294901760
  %869 = vmatprep.subr.mxu0 %v868
  %v870 = vand.u32 %v182, 4294901760
  %871 = vmatpush1.msra.mxu0 %v870
  %v872 = vand.u32 %v223, 4294901760
  %873 = vmatprep.subr.mxu0 %v872
  %v874 = vand.u32 %v183, 4294901760
  %875 = vmatpush1.msra.mxu0 %v874
  %876 = vmatprep.subr.mxu0 0.0
  %877 = vmatpush1.msra.mxu0 0.0
  %878 = vmatprep.subr.mxu0 0.0
  %879 = vmatpush1.msra.mxu0 0.0
  %880 = vmatprep.subr.mxu0 0.0
  %881 = vmatpush1.msra.mxu0 0.0
  %882 = vmatprep.subr.mxu0 0.0
  %883 = vmatpush1.msra.mxu0 0.0
  %884 = vmatprep.subr.mxu0 0.0
  %885 = vmatpush1.msra.mxu0 0.0
  %886 = vmatprep.subr.mxu0 0.0
  %887 = vmatpush1.msra.mxu0 0.0
  %888 = vmatprep.subr.mxu0 0.0
  %889 = vmatpush1.msra.mxu0 0.0
  %890 = vmatprep.subr.mxu0 0.0
  %891 = vmatpush1.msra.mxu0 0.0
  %892 = vmatprep.subr.mxu0 0.0
  %893 = vmatpush1.msra.mxu0 0.0
  %894 = vmatprep.subr.mxu0 0.0
  %895 = vmatpush1.msra.mxu0 0.0
  %896 = vmatprep.subr.mxu0 0.0
  %897 = vmatpush1.msra.mxu0 0.0
  %898 = vmatprep.subr.mxu0 0.0
  %899 = vmatpush1.msra.mxu0 0.0
  %900 = vmatprep.subr.mxu0 0.0
  %901 = vmatpush1.msra.mxu0 0.0
  %902 = vmatprep.subr.mxu0 0.0
  %903 = vmatpush1.msra.mxu0 0.0
  %904 = vmatprep.subr.mxu0 0.0
  %905 = vmatpush1.msra.mxu0 0.0
  %906 = vmatprep.subr.mxu0 0.0
  %907 = vmatpush1.msra.mxu0 0.0
  %908 = vmatprep.subr.mxu0 0.0
  %909 = vmatpush1.msra.mxu0 0.0
  %910 = vmatprep.subr.mxu0 0.0
  %911 = vmatpush1.msra.mxu0 0.0
  %912 = vmatprep.subr.mxu0 0.0
  %913 = vmatpush1.msra.mxu0 0.0
  %914 = vmatprep.subr.mxu0 0.0
  %915 = vmatpush1.msra.mxu0 0.0
  %916 = vmatprep.subr.mxu0 0.0
  %917 = vmatpush1.msra.mxu0 0.0
  %918 = vmatprep.subr.mxu0 0.0
  %919 = vmatpush1.msra.mxu0 0.0
  %920 = vmatprep.subr.mxu0 0.0
  %921 = vmatpush1.msra.mxu0 0.0
  %922 = vmatprep.subr.mxu0 0.0
  %923 = vmatpush1.msra.mxu0 0.0
  %924 = vmatprep.subr.mxu0 0.0
  %925 = vmatpush1.msra.mxu0 0.0
  %926 = vmatprep.subr.mxu0 0.0
  %927 = vmatpush1.msra.mxu0 0.0
  %928 = vmatprep.subr.mxu0 0.0
  %929 = vmatpush1.msra.mxu0 0.0
  %930 = vmatprep.subr.mxu0 0.0
  %931 = vmatpush1.msra.mxu0 0.0
  %932 = vmatprep.mubr.f32.mxu0 0.0
  %v933 = vand.u32 %v486, 4294901760
  %v934 = vsub.f32 %v486, %v933
  %v935 = vand.u32 %v934, 4294901760
  %936 = vmatmul.mubr.f32.gmra.mrb[0].mxu0 %v935
  %v937 = vpop.f32.mrb[0].mxu0
  %v938 = vadd.f32 %v832, %v937
  %v939 = vpop.f32.mrb[0].mxu0
  %v940 = vadd.f32 %v834, %v939
  %941 = vmatprep.mubr.f32.mxu0 0.0
  %v942 = vand.u32 %v489, 4294901760
  %v943 = vsub.f32 %v489, %v942
  %v944 = vand.u32 %v943, 4294901760
  %945 = vmatmul.mubr.f32.gmra.mrb[0].mxu0 %v944
  %v946 = vpop.f32.mrb[0].mxu0
  %v947 = vadd.f32 %v840, %v946
  %v948 = vpop.f32.mrb[0].mxu0
  %v949 = vadd.f32 %v842, %v948
  %950 = vmatprep.mubr.f32.mxu0 0.0
  %v951 = vand.u32 %v492, 4294901760
  %v952 = vsub.f32 %v492, %v951
  %v953 = vand.u32 %v952, 4294901760
  %954 = vmatmul.mubr.f32.gmra.mrb[0].mxu0 %v953
  %v955 = vpop.f32.mrb[0].mxu0
  %v956 = vadd.f32 %v848, %v955
  %v957 = vpop.f32.mrb[0].mxu0
  %v958 = vadd.f32 %v850, %v957
  %959 = vmatprep.mubr.f32.mxu0 0.0
  %v960 = vand.u32 %v495, 4294901760
  %v961 = vsub.f32 %v495, %v960
  %v962 = vand.u32 %v961, 4294901760
  %963 = vmatmul.mubr.f32.gmra.mrb[0].mxu0 %v962
  %v964 = vpop.f32.mrb[0].mxu0
  %v965 = vadd.f32 %v856, %v964
  %v966 = vpop.f32.mrb[0].mxu0
  %v967 = vadd.f32 %v858, %v966
  %968 = vdwg.mxu0
  %v969 = vand.u32 %v220, 4294901760
  %v970 = vsub.f32 %v220, %v969
  %v971 = vand.u32 %v970, 4294901760
  %972 = vmatprep.subr.mxu0 %v971
  %v973 = vand.u32 %v180, 4294901760
  %v974 = vsub.f32 %v180, %v973
  %v975 = vand.u32 %v974, 4294901760
  %976 = vmatpush1.msra.mxu0 %v975
  %v977 = vand.u32 %v221, 4294901760
  %v978 = vsub.f32 %v221, %v977
  %v979 = vand.u32 %v978, 4294901760
  %980 = vmatprep.subr.mxu0 %v979
  %v981 = vand.u32 %v181, 4294901760
  %v982 = vsub.f32 %v181, %v981
  %v983 = vand.u32 %v982, 4294901760
  %984 = vmatpush1.msra.mxu0 %v983
  %v985 = vand.u32 %v222, 4294901760
  %v986 = vsub.f32 %v222, %v985
  %v987 = vand.u32 %v986, 4294901760
  %988 = vmatprep.subr.mxu0 %v987
  %v989 = vand.u32 %v182, 4294901760
  %v990 = vsub.f32 %v182, %v989
  %v991 = vand.u32 %v990, 4294901760
  %992 = vmatpush1.msra.mxu0 %v991
  %v993 = vand.u32 %v223, 4294901760
  %v994 = vsub.f32 %v223, %v993
  %v995 = vand.u32 %v994, 4294901760
  %996 = vmatprep.subr.mxu0 %v995
  %v997 = vand.u32 %v183, 4294901760
  %v998 = vsub.f32 %v183, %v997
  %v999 = vand.u32 %v998, 4294901760
  %1000 = vmatpush1.msra.mxu0 %v999
  %1001 = vmatprep.subr.mxu0 0.0
  %1002 = vmatpush1.msra.mxu0 0.0
  %1003 = vmatprep.subr.mxu0 0.0
  %1004 = vmatpush1.msra.mxu0 0.0
  %1005 = vmatprep.subr.mxu0 0.0
  %1006 = vmatpush1.msra.mxu0 0.0
  %1007 = vmatprep.subr.mxu0 0.0
  %1008 = vmatpush1.msra.mxu0 0.0
  %1009 = vmatprep.subr.mxu0 0.0
  %1010 = vmatpush1.msra.mxu0 0.0
  %1011 = vmatprep.subr.mxu0 0.0
  %1012 = vmatpush1.msra.mxu0 0.0
  %1013 = vmatprep.subr.mxu0 0.0
  %1014 = vmatpush1.msra.mxu0 0.0
  %1015 = vmatprep.subr.mxu0 0.0
  %1016 = vmatpush1.msra.mxu0 0.0
  %1017 = vmatprep.subr.mxu0 0.0
  %1018 = vmatpush1.msra.mxu0 0.0
  %1019 = vmatprep.subr.mxu0 0.0
  %1020 = vmatpush1.msra.mxu0 0.0
  %1021 = vmatprep.subr.mxu0 0.0
  %1022 = vmatpush1.msra.mxu0 0.0
  %1023 = vmatprep.subr.mxu0 0.0
  %1024 = vmatpush1.msra.mxu0 0.0
  %1025 = vmatprep.subr.mxu0 0.0
  %1026 = vmatpush1.msra.mxu0 0.0
  %1027 = vmatprep.subr.mxu0 0.0
  %1028 = vmatpush1.msra.mxu0 0.0
  %1029 = vmatprep.subr.mxu0 0.0
  %1030 = vmatpush1.msra.mxu0 0.0
  %1031 = vmatprep.subr.mxu0 0.0
  %1032 = vmatpush1.msra.mxu0 0.0
  %1033 = vmatprep.subr.mxu0 0.0
  %1034 = vmatpush1.msra.mxu0 0.0
  %1035 = vmatprep.subr.mxu0 0.0
  %1036 = vmatpush1.msra.mxu0 0.0
  %1037 = vmatprep.subr.mxu0 0.0
  %1038 = vmatpush1.msra.mxu0 0.0
  %1039 = vmatprep.subr.mxu0 0.0
  %1040 = vmatpush1.msra.mxu0 0.0
  %1041 = vmatprep.subr.mxu0 0.0
  %1042 = vmatpush1.msra.mxu0 0.0
  %1043 = vmatprep.subr.mxu0 0.0
  %1044 = vmatpush1.msra.mxu0 0.0
  %1045 = vmatprep.subr.mxu0 0.0
  %1046 = vmatpush1.msra.mxu0 0.0
  %1047 = vmatprep.subr.mxu0 0.0
  %1048 = vmatpush1.msra.mxu0 0.0
  %1049 = vmatprep.subr.mxu0 0.0
  %1050 = vmatpush1.msra.mxu0 0.0
  %1051 = vmatprep.subr.mxu0 0.0
  %1052 = vmatpush1.msra.mxu0 0.0
  %1053 = vmatprep.subr.mxu0 0.0
  %1054 = vmatpush1.msra.mxu0 0.0
  %1055 = vmatprep.subr.mxu0 0.0
  %1056 = vmatpush1.msra.mxu0 0.0
  %1057 = vmatprep.mubr.f32.mxu0 0.0
  %v1058 = vand.u32 %v486, 4294901760
  %1059 = vmatmul.mubr.f32.gmra.mrb[0].mxu0 %v1058
  %v1060 = vpop.f32.mrb[0].mxu0
  %v1061 = vadd.f32 %v938, %v1060
  %v1062 = vpop.f32.mrb[0].mxu0
  %v1063 = vadd.f32 %v940, %v1062
  %1064 = vmatprep.mubr.f32.mxu0 0.0
  %v1065 = vand.u32 %v489, 4294901760
  %1066 = vmatmul.mubr.f32.gmra.mrb[0].mxu0 %v1065
  %v1067 = vpop.f32.mrb[0].mxu0
  %v1068 = vadd.f32 %v947, %v1067
  %v1069 = vpop.f32.mrb[0].mxu0
  %v1070 = vadd.f32 %v949, %v1069
  %1071 = vmatprep.mubr.f32.mxu0 0.0
  %v1072 = vand.u32 %v492, 4294901760
  %1073 = vmatmul.mubr.f32.gmra.mrb[0].mxu0 %v1072
  %v1074 = vpop.f32.mrb[0].mxu0
  %v1075 = vadd.f32 %v956, %v1074
  %v1076 = vpop.f32.mrb[0].mxu0
  %v1077 = vadd.f32 %v958, %v1076
  %1078 = vmatprep.mubr.f32.mxu0 0.0
  %v1079 = vand.u32 %v495, 4294901760
  %1080 = vmatmul.mubr.f32.gmra.mrb[0].mxu0 %v1079
  %v1081 = vpop.f32.mrb[0].mxu0
  %v1082 = vadd.f32 %v965, %v1081
  %v1083 = vpop.f32.mrb[0].mxu0
  %v1084 = vadd.f32 %v967, %v1083
  %1085 = vdwg.mxu0
  %v1086 = vand.u32 %v220, 4294901760
  %1087 = vmatprep.subr.mxu0 %v1086
  %v1088 = vand.u32 %v180, 4294901760
  %1089 = vmatpush1.msra.mxu0 %v1088
  %v1090 = vand.u32 %v221, 4294901760
  %1091 = vmatprep.subr.mxu0 %v1090
  %v1092 = vand.u32 %v181, 4294901760
  %1093 = vmatpush1.msra.mxu0 %v1092
  %v1094 = vand.u32 %v222, 4294901760
  %1095 = vmatprep.subr.mxu0 %v1094
  %v1096 = vand.u32 %v182, 4294901760
  %1097 = vmatpush1.msra.mxu0 %v1096
  %v1098 = vand.u32 %v223, 4294901760
  %1099 = vmatprep.subr.mxu0 %v1098
  %v1100 = vand.u32 %v183, 4294901760
  %1101 = vmatpush1.msra.mxu0 %v1100
  %1102 = vmatprep.subr.mxu0 0.0
  %1103 = vmatpush1.msra.mxu0 0.0
  %1104 = vmatprep.subr.mxu0 0.0
  %1105 = vmatpush1.msra.mxu0 0.0
  %1106 = vmatprep.subr.mxu0 0.0
  %1107 = vmatpush1.msra.mxu0 0.0
  %1108 = vmatprep.subr.mxu0 0.0
  %1109 = vmatpush1.msra.mxu0 0.0
  %1110 = vmatprep.subr.mxu0 0.0
  %1111 = vmatpush1.msra.mxu0 0.0
  %1112 = vmatprep.subr.mxu0 0.0
  %1113 = vmatpush1.msra.mxu0 0.0
  %1114 = vmatprep.subr.mxu0 0.0
  %1115 = vmatpush1.msra.mxu0 0.0
  %1116 = vmatprep.subr.mxu0 0.0
  %1117 = vmatpush1.msra.mxu0 0.0
  %1118 = vmatprep.subr.mxu0 0.0
  %1119 = vmatpush1.msra.mxu0 0.0
  %1120 = vmatprep.subr.mxu0 0.0
  %1121 = vmatpush1.msra.mxu0 0.0
  %1122 = vmatprep.subr.mxu0 0.0
  %1123 = vmatpush1.msra.mxu0 0.0
  %1124 = vmatprep.subr.mxu0 0.0
  %1125 = vmatpush1.msra.mxu0 0.0
  %1126 = vmatprep.subr.mxu0 0.0
  %1127 = vmatpush1.msra.mxu0 0.0
  %1128 = vmatprep.subr.mxu0 0.0
  %1129 = vmatpush1.msra.mxu0 0.0
  %1130 = vmatprep.subr.mxu0 0.0
  %1131 = vmatpush1.msra.mxu0 0.0
  %1132 = vmatprep.subr.mxu0 0.0
  %1133 = vmatpush1.msra.mxu0 0.0
  %1134 = vmatprep.subr.mxu0 0.0
  %1135 = vmatpush1.msra.mxu0 0.0
  %1136 = vmatprep.subr.mxu0 0.0
  %1137 = vmatpush1.msra.mxu0 0.0
  %1138 = vmatprep.subr.mxu0 0.0
  %1139 = vmatpush1.msra.mxu0 0.0
  %1140 = vmatprep.subr.mxu0 0.0
  %1141 = vmatpush1.msra.mxu0 0.0
  %1142 = vmatprep.subr.mxu0 0.0
  %1143 = vmatpush1.msra.mxu0 0.0
  %1144 = vmatprep.subr.mxu0 0.0
  %1145 = vmatpush1.msra.mxu0 0.0
  %1146 = vmatprep.subr.mxu0 0.0
  %1147 = vmatpush1.msra.mxu0 0.0
  %1148 = vmatprep.subr.mxu0 0.0
  %1149 = vmatpush1.msra.mxu0 0.0
  %1150 = vmatprep.subr.mxu0 0.0
  %1151 = vmatpush1.msra.mxu0 0.0
  %1152 = vmatprep.subr.mxu0 0.0
  %1153 = vmatpush1.msra.mxu0 0.0
  %1154 = vmatprep.subr.mxu0 0.0
  %1155 = vmatpush1.msra.mxu0 0.0
  %1156 = vmatprep.subr.mxu0 0.0
  %1157 = vmatpush1.msra.mxu0 0.0
  %1158 = vmatprep.mubr.f32.mxu0 0.0
  %v1159 = vand.u32 %v486, 4294901760
  %1160 = vmatmul.mubr.f32.gmra.mrb[0].mxu0 %v1159
  %v1161 = vpop.f32.mrb[0].mxu0
  %v1162 = vadd.f32 %v1061, %v1161
  %v1163 = vpop.f32.mrb[0].mxu0
  %v1164 = vadd.f32 %v1063, %v1163
  %1165 = vmatprep.mubr.f32.mxu0 0.0
  %v1166 = vand.u32 %v489, 4294901760
  %1167 = vmatmul.mubr.f32.gmra.mrb[0].mxu0 %v1166
  %v1168 = vpop.f32.mrb[0].mxu0
  %v1169 = vadd.f32 %v1068, %v1168
  %v1170 = vpop.f32.mrb[0].mxu0
  %v1171 = vadd.f32 %v1070, %v1170
  %1172 = vmatprep.mubr.f32.mxu0 0.0
  %v1173 = vand.u32 %v492, 4294901760
  %1174 = vmatmul.mubr.f32.gmra.mrb[0].mxu0 %v1173
  %v1175 = vpop.f32.mrb[0].mxu0
  %v1176 = vadd.f32 %v1075, %v1175
  %v1177 = vpop.f32.mrb[0].mxu0
  %v1178 = vadd.f32 %v1077, %v1177
  %1179 = vmatprep.mubr.f32.mxu0 0.0
  %v1180 = vand.u32 %v495, 4294901760
  %1181 = vmatmul.mubr.f32.gmra.mrb[0].mxu0 %v1180
  %v1182 = vpop.f32.mrb[0].mxu0
  %v1183 = vadd.f32 %v1082, %v1182
  %v1184 = vpop.f32.mrb[0].mxu0
  %v1185 = vadd.f32 %v1084, %v1184
  %1186 = vdwg.mxu0
  %v1187 = vand.u32 %v300, 4294901760
  %1188 = vmatprep.subr.mxu0 %v1187
  %v1189 = vand.u32 %v260, 4294901760
  %1190 = vmatpush1.msra.mxu0 %v1189
  %v1191 = vand.u32 %v301, 4294901760
  %1192 = vmatprep.subr.mxu0 %v1191
  %v1193 = vand.u32 %v261, 4294901760
  %1194 = vmatpush1.msra.mxu0 %v1193
  %v1195 = vand.u32 %v302, 4294901760
  %1196 = vmatprep.subr.mxu0 %v1195
  %v1197 = vand.u32 %v262, 4294901760
  %1198 = vmatpush1.msra.mxu0 %v1197
  %v1199 = vand.u32 %v303, 4294901760
  %1200 = vmatprep.subr.mxu0 %v1199
  %v1201 = vand.u32 %v263, 4294901760
  %1202 = vmatpush1.msra.mxu0 %v1201
  %1203 = vmatprep.subr.mxu0 0.0
  %1204 = vmatpush1.msra.mxu0 0.0
  %1205 = vmatprep.subr.mxu0 0.0
  %1206 = vmatpush1.msra.mxu0 0.0
  %1207 = vmatprep.subr.mxu0 0.0
  %1208 = vmatpush1.msra.mxu0 0.0
  %1209 = vmatprep.subr.mxu0 0.0
  %1210 = vmatpush1.msra.mxu0 0.0
  %1211 = vmatprep.subr.mxu0 0.0
  %1212 = vmatpush1.msra.mxu0 0.0
  %1213 = vmatprep.subr.mxu0 0.0
  %1214 = vmatpush1.msra.mxu0 0.0
  %1215 = vmatprep.subr.mxu0 0.0
  %1216 = vmatpush1.msra.mxu0 0.0
  %1217 = vmatprep.subr.mxu0 0.0
  %1218 = vmatpush1.msra.mxu0 0.0
  %1219 = vmatprep.subr.mxu0 0.0
  %1220 = vmatpush1.msra.mxu0 0.0
  %1221 = vmatprep.subr.mxu0 0.0
  %1222 = vmatpush1.msra.mxu0 0.0
  %1223 = vmatprep.subr.mxu0 0.0
  %1224 = vmatpush1.msra.mxu0 0.0
  %1225 = vmatprep.subr.mxu0 0.0
  %1226 = vmatpush1.msra.mxu0 0.0
  %1227 = vmatprep.subr.mxu0 0.0
  %1228 = vmatpush1.msra.mxu0 0.0
  %1229 = vmatprep.subr.mxu0 0.0
  %1230 = vmatpush1.msra.mxu0 0.0
  %1231 = vmatprep.subr.mxu0 0.0
  %1232 = vmatpush1.msra.mxu0 0.0
  %1233 = vmatprep.subr.mxu0 0.0
  %1234 = vmatpush1.msra.mxu0 0.0
  %1235 = vmatprep.subr.mxu0 0.0
  %1236 = vmatpush1.msra.mxu0 0.0
  %1237 = vmatprep.subr.mxu0 0.0
  %1238 = vmatpush1.msra.mxu0 0.0
  %1239 = vmatprep.subr.mxu0 0.0
  %1240 = vmatpush1.msra.mxu0 0.0
  %1241 = vmatprep.subr.mxu0 0.0
  %1242 = vmatpush1.msra.mxu0 0.0
  %1243 = vmatprep.subr.mxu0 0.0
  %1244 = vmatpush1.msra.mxu0 0.0
  %1245 = vmatprep.subr.mxu0 0.0
  %1246 = vmatpush1.msra.mxu0 0.0
  %1247 = vmatprep.subr.mxu0 0.0
  %1248 = vmatpush1.msra.mxu0 0.0
  %1249 = vmatprep.subr.mxu0 0.0
  %1250 = vmatpush1.msra.mxu0 0.0
  %1251 = vmatprep.subr.mxu0 0.0
  %1252 = vmatpush1.msra.mxu0 0.0
  %1253 = vmatprep.subr.mxu0 0.0
  %1254 = vmatpush1.msra.mxu0 0.0
  %1255 = vmatprep.subr.mxu0 0.0
  %1256 = vmatpush1.msra.mxu0 0.0
  %1257 = vmatprep.subr.mxu0 0.0
  %1258 = vmatpush1.msra.mxu0 0.0
  %1259 = vmatprep.mubr.f32.mxu0 0.0
  %v1260 = vand.u32 %v486, 4294901760
  %v1261 = vsub.f32 %v486, %v1260
  %v1262 = vand.u32 %v1261, 4294901760
  %v1263 = vsub.f32 %v1261, %v1262
  %v1264 = vand.u32 %v1263, 4294901760
  %1265 = vmatmul.mubr.f32.gmra.mrb[0].mxu0 %v1264
  %v1266 = vpop.f32.mrb[0].mxu0
  %v1267 = vadd.f32 %v467, %v1266
  %v1268 = vpop.f32.mrb[0].mxu0
  %v1269 = vadd.f32 %v467, %v1268
  %1270 = vmatprep.mubr.f32.mxu0 0.0
  %v1271 = vand.u32 %v489, 4294901760
  %v1272 = vsub.f32 %v489, %v1271
  %v1273 = vand.u32 %v1272, 4294901760
  %v1274 = vsub.f32 %v1272, %v1273
  %v1275 = vand.u32 %v1274, 4294901760
  %1276 = vmatmul.mubr.f32.gmra.mrb[0].mxu0 %v1275
  %v1277 = vpop.f32.mrb[0].mxu0
  %v1278 = vadd.f32 %v472, %v1277
  %v1279 = vpop.f32.mrb[0].mxu0
  %v1280 = vadd.f32 %v472, %v1279
  %1281 = vmatprep.mubr.f32.mxu0 0.0
  %v1282 = vand.u32 %v492, 4294901760
  %v1283 = vsub.f32 %v492, %v1282
  %v1284 = vand.u32 %v1283, 4294901760
  %v1285 = vsub.f32 %v1283, %v1284
  %v1286 = vand.u32 %v1285, 4294901760
  %1287 = vmatmul.mubr.f32.gmra.mrb[0].mxu0 %v1286
  %v1288 = vpop.f32.mrb[0].mxu0
  %v1289 = vadd.f32 %v477, %v1288
  %v1290 = vpop.f32.mrb[0].mxu0
  %v1291 = vadd.f32 %v477, %v1290
  %1292 = vmatprep.mubr.f32.mxu0 0.0
  %v1293 = vand.u32 %v495, 4294901760
  %v1294 = vsub.f32 %v495, %v1293
  %v1295 = vand.u32 %v1294, 4294901760
  %v1296 = vsub.f32 %v1294, %v1295
  %v1297 = vand.u32 %v1296, 4294901760
  %1298 = vmatmul.mubr.f32.gmra.mrb[0].mxu0 %v1297
  %v1299 = vpop.f32.mrb[0].mxu0
  %v1300 = vadd.f32 %v482, %v1299
  %v1301 = vpop.f32.mrb[0].mxu0
  %v1302 = vadd.f32 %v482, %v1301
  %1303 = vdwg.mxu0
  %v1304 = vand.u32 %v300, 4294901760
  %v1305 = vsub.f32 %v300, %v1304
  %v1306 = vand.u32 %v1305, 4294901760
  %v1307 = vsub.f32 %v1305, %v1306
  %v1308 = vand.u32 %v1307, 4294901760
  %1309 = vmatprep.subr.mxu0 %v1308
  %v1310 = vand.u32 %v260, 4294901760
  %v1311 = vsub.f32 %v260, %v1310
  %v1312 = vand.u32 %v1311, 4294901760
  %v1313 = vsub.f32 %v1311, %v1312
  %v1314 = vand.u32 %v1313, 4294901760
  %1315 = vmatpush1.msra.mxu0 %v1314
  %v1316 = vand.u32 %v301, 4294901760
  %v1317 = vsub.f32 %v301, %v1316
  %v1318 = vand.u32 %v1317, 4294901760
  %v1319 = vsub.f32 %v1317, %v1318
  %v1320 = vand.u32 %v1319, 4294901760
  %1321 = vmatprep.subr.mxu0 %v1320
  %v1322 = vand.u32 %v261, 4294901760
  %v1323 = vsub.f32 %v261, %v1322
  %v1324 = vand.u32 %v1323, 4294901760
  %v1325 = vsub.f32 %v1323, %v1324
  %v1326 = vand.u32 %v1325, 4294901760
  %1327 = vmatpush1.msra.mxu0 %v1326
  %v1328 = vand.u32 %v302, 4294901760
  %v1329 = vsub.f32 %v302, %v1328
  %v1330 = vand.u32 %v1329, 4294901760
  %v1331 = vsub.f32 %v1329, %v1330
  %v1332 = vand.u32 %v1331, 4294901760
  %1333 = vmatprep.subr.mxu0 %v1332
  %v1334 = vand.u32 %v262, 4294901760
  %v1335 = vsub.f32 %v262, %v1334
  %v1336 = vand.u32 %v1335, 4294901760
  %v1337 = vsub.f32 %v1335, %v1336
  %v1338 = vand.u32 %v1337, 4294901760
  %1339 = vmatpush1.msra.mxu0 %v1338
  %v1340 = vand.u32 %v303, 4294901760
  %v1341 = vsub.f32 %v303, %v1340
  %v1342 = vand.u32 %v1341, 4294901760
  %v1343 = vsub.f32 %v1341, %v1342
  %v1344 = vand.u32 %v1343, 4294901760
  %1345 = vmatprep.subr.mxu0 %v1344
  %v1346 = vand.u32 %v263, 4294901760
  %v1347 = vsub.f32 %v263, %v1346
  %v1348 = vand.u32 %v1347, 4294901760
  %v1349 = vsub.f32 %v1347, %v1348
  %v1350 = vand.u32 %v1349, 4294901760
  %1351 = vmatpush1.msra.mxu0 %v1350
  %1352 = vmatprep.subr.mxu0 0.0
  %1353 = vmatpush1.msra.mxu0 0.0
  %1354 = vmatprep.subr.mxu0 0.0
  %1355 = vmatpush1.msra.mxu0 0.0
  %1356 = vmatprep.subr.mxu0 0.0
  %1357 = vmatpush1.msra.mxu0 0.0
  %1358 = vmatprep.subr.mxu0 0.0
  %1359 = vmatpush1.msra.mxu0 0.0
  %1360 = vmatprep.subr.mxu0 0.0
  %1361 = vmatpush1.msra.mxu0 0.0
  %1362 = vmatprep.subr.mxu0 0.0
  %1363 = vmatpush1.msra.mxu0 0.0
  %1364 = vmatprep.subr.mxu0 0.0
  %1365 = vmatpush1.msra.mxu0 0.0
  %1366 = vmatprep.subr.mxu0 0.0
  %1367 = vmatpush1.msra.mxu0 0.0
  %1368 = vmatprep.subr.mxu0 0.0
  %1369 = vmatpush1.msra.mxu0 0.0
  %1370 = vmatprep.subr.mxu0 0.0
  %1371 = vmatpush1.msra.mxu0 0.0
  %1372 = vmatprep.subr.mxu0 0.0
  %1373 = vmatpush1.msra.mxu0 0.0
  %1374 = vmatprep.subr.mxu0 0.0
  %1375 = vmatpush1.msra.mxu0 0.0
  %1376 = vmatprep.subr.mxu0 0.0
  %1377 = vmatpush1.msra.mxu0 0.0
  %1378 = vmatprep.subr.mxu0 0.0
  %1379 = vmatpush1.msra.mxu0 0.0
  %1380 = vmatprep.subr.mxu0 0.0
  %1381 = vmatpush1.msra.mxu0 0.0
  %1382 = vmatprep.subr.mxu0 0.0
  %1383 = vmatpush1.msra.mxu0 0.0
  %1384 = vmatprep.subr.mxu0 0.0
  %1385 = vmatpush1.msra.mxu0 0.0
  %1386 = vmatprep.subr.mxu0 0.0
  %1387 = vmatpush1.msra.mxu0 0.0
  %1388 = vmatprep.subr.mxu0 0.0
  %1389 = vmatpush1.msra.mxu0 0.0
  %1390 = vmatprep.subr.mxu0 0.0
  %1391 = vmatpush1.msra.mxu0 0.0
  %1392 = vmatprep.subr.mxu0 0.0
  %1393 = vmatpush1.msra.mxu0 0.0
  %1394 = vmatprep.subr.mxu0 0.0
  %1395 = vmatpush1.msra.mxu0 0.0
  %1396 = vmatprep.subr.mxu0 0.0
  %1397 = vmatpush1.msra.mxu0 0.0
  %1398 = vmatprep.subr.mxu0 0.0
  %1399 = vmatpush1.msra.mxu0 0.0
  %1400 = vmatprep.subr.mxu0 0.0
  %1401 = vmatpush1.msra.mxu0 0.0
  %1402 = vmatprep.subr.mxu0 0.0
  %1403 = vmatpush1.msra.mxu0 0.0
  %1404 = vmatprep.subr.mxu0 0.0
  %1405 = vmatpush1.msra.mxu0 0.0
  %1406 = vmatprep.subr.mxu0 0.0
  %1407 = vmatpush1.msra.mxu0 0.0
  %1408 = vmatprep.mubr.f32.mxu0 0.0
  %v1409 = vand.u32 %v486, 4294901760
  %1410 = vmatmul.mubr.f32.gmra.mrb[0].mxu0 %v1409
  %v1411 = vpop.f32.mrb[0].mxu0
  %v1412 = vadd.f32 %v1267, %v1411
  %v1413 = vpop.f32.mrb[0].mxu0
  %v1414 = vadd.f32 %v1269, %v1413
  %1415 = vmatprep.mubr.f32.mxu0 0.0
  %v1416 = vand.u32 %v489, 4294901760
  %1417 = vmatmul.mubr.f32.gmra.mrb[0].mxu0 %v1416
  %v1418 = vpop.f32.mrb[0].mxu0
  %v1419 = vadd.f32 %v1278, %v1418
  %v1420 = vpop.f32.mrb[0].mxu0
  %v1421 = vadd.f32 %v1280, %v1420
  %1422 = vmatprep.mubr.f32.mxu0 0.0
  %v1423 = vand.u32 %v492, 4294901760
  %1424 = vmatmul.mubr.f32.gmra.mrb[0].mxu0 %v1423
  %v1425 = vpop.f32.mrb[0].mxu0
  %v1426 = vadd.f32 %v1289, %v1425
  %v1427 = vpop.f32.mrb[0].mxu0
  %v1428 = vadd.f32 %v1291, %v1427
  %1429 = vmatprep.mubr.f32.mxu0 0.0
  %v1430 = vand.u32 %v495, 4294901760
  %1431 = vmatmul.mubr.f32.gmra.mrb[0].mxu0 %v1430
  %v1432 = vpop.f32.mrb[0].mxu0
  %v1433 = vadd.f32 %v1300, %v1432
  %v1434 = vpop.f32.mrb[0].mxu0
  %v1435 = vadd.f32 %v1302, %v1434
  %1436 = vdwg.mxu0
  %v1437 = vand.u32 %v300, 4294901760
  %v1438 = vsub.f32 %v300, %v1437
  %1439 = vmatprep.subr.mxu0 %v1438
  %v1440 = vand.u32 %v260, 4294901760
  %v1441 = vsub.f32 %v260, %v1440
  %1442 = vmatpush1.msra.mxu0 %v1441
  %v1443 = vand.u32 %v301, 4294901760
  %v1444 = vsub.f32 %v301, %v1443
  %1445 = vmatprep.subr.mxu0 %v1444
  %v1446 = vand.u32 %v261, 4294901760
  %v1447 = vsub.f32 %v261, %v1446
  %1448 = vmatpush1.msra.mxu0 %v1447
  %v1449 = vand.u32 %v302, 4294901760
  %v1450 = vsub.f32 %v302, %v1449
  %1451 = vmatprep.subr.mxu0 %v1450
  %v1452 = vand.u32 %v262, 4294901760
  %v1453 = vsub.f32 %v262, %v1452
  %1454 = vmatpush1.msra.mxu0 %v1453
  %v1455 = vand.u32 %v303, 4294901760
  %v1456 = vsub.f32 %v303, %v1455
  %1457 = vmatprep.subr.mxu0 %v1456
  %v1458 = vand.u32 %v263, 4294901760
  %v1459 = vsub.f32 %v263, %v1458
  %1460 = vmatpush1.msra.mxu0 %v1459
  %1461 = vmatprep.subr.mxu0 0.0
  %1462 = vmatpush1.msra.mxu0 0.0
  %1463 = vmatprep.subr.mxu0 0.0
  %1464 = vmatpush1.msra.mxu0 0.0
  %1465 = vmatprep.subr.mxu0 0.0
  %1466 = vmatpush1.msra.mxu0 0.0
  %1467 = vmatprep.subr.mxu0 0.0
  %1468 = vmatpush1.msra.mxu0 0.0
  %1469 = vmatprep.subr.mxu0 0.0
  %1470 = vmatpush1.msra.mxu0 0.0
  %1471 = vmatprep.subr.mxu0 0.0
  %1472 = vmatpush1.msra.mxu0 0.0
  %1473 = vmatprep.subr.mxu0 0.0
  %1474 = vmatpush1.msra.mxu0 0.0
  %1475 = vmatprep.subr.mxu0 0.0
  %1476 = vmatpush1.msra.mxu0 0.0
  %1477 = vmatprep.subr.mxu0 0.0
  %1478 = vmatpush1.msra.mxu0 0.0
  %1479 = vmatprep.subr.mxu0 0.0
  %1480 = vmatpush1.msra.mxu0 0.0
  %1481 = vmatprep.subr.mxu0 0.0
  %1482 = vmatpush1.msra.mxu0 0.0
  %1483 = vmatprep.subr.mxu0 0.0
  %1484 = vmatpush1.msra.mxu0 0.0
  %1485 = vmatprep.subr.mxu0 0.0
  %1486 = vmatpush1.msra.mxu0 0.0
  %1487 = vmatprep.subr.mxu0 0.0
  %1488 = vmatpush1.msra.mxu0 0.0
  %1489 = vmatprep.subr.mxu0 0.0
  %1490 = vmatpush1.msra.mxu0 0.0
  %1491 = vmatprep.subr.mxu0 0.0
  %1492 = vmatpush1.msra.mxu0 0.0
  %1493 = vmatprep.subr.mxu0 0.0
  %1494 = vmatpush1.msra.mxu0 0.0
  %1495 = vmatprep.subr.mxu0 0.0
  %1496 = vmatpush1.msra.mxu0 0.0
  %1497 = vmatprep.subr.mxu0 0.0
  %1498 = vmatpush1.msra.mxu0 0.0
  %1499 = vmatprep.subr.mxu0 0.0
  %1500 = vmatpush1.msra.mxu0 0.0
  %1501 = vmatprep.subr.mxu0 0.0
  %1502 = vmatpush1.msra.mxu0 0.0
  %1503 = vmatprep.subr.mxu0 0.0
  %1504 = vmatpush1.msra.mxu0 0.0
  %1505 = vmatprep.subr.mxu0 0.0
  %1506 = vmatpush1.msra.mxu0 0.0
  %1507 = vmatprep.subr.mxu0 0.0
  %1508 = vmatpush1.msra.mxu0 0.0
  %1509 = vmatprep.subr.mxu0 0.0
  %1510 = vmatpush1.msra.mxu0 0.0
  %1511 = vmatprep.subr.mxu0 0.0
  %1512 = vmatpush1.msra.mxu0 0.0
  %1513 = vmatprep.subr.mxu0 0.0
  %1514 = vmatpush1.msra.mxu0 0.0
  %1515 = vmatprep.subr.mxu0 0.0
  %1516 = vmatpush1.msra.mxu0 0.0
  %1517 = vmatprep.mubr.f32.mxu0 0.0
  %v1518 = vand.u32 %v486, 4294901760
  %v1519 = vsub.f32 %v486, %v1518
  %1520 = vmatmul.mubr.f32.gmra.mrb[0].mxu0 %v1519
  %v1521 = vpop.f32.mrb[0].mxu0
  %v1522 = vadd.f32 %v1412, %v1521
  %v1523 = vpop.f32.mrb[0].mxu0
  %v1524 = vadd.f32 %v1414, %v1523
  %1525 = vmatprep.mubr.f32.mxu0 0.0
  %v1526 = vand.u32 %v489, 4294901760
  %v1527 = vsub.f32 %v489, %v1526
  %1528 = vmatmul.mubr.f32.gmra.mrb[0].mxu0 %v1527
  %v1529 = vpop.f32.mrb[0].mxu0
  %v1530 = vadd.f32 %v1419, %v1529
  %v1531 = vpop.f32.mrb[0].mxu0
  %v1532 = vadd.f32 %v1421, %v1531
  %1533 = vmatprep.mubr.f32.mxu0 0.0
  %v1534 = vand.u32 %v492, 4294901760
  %v1535 = vsub.f32 %v492, %v1534
  %1536 = vmatmul.mubr.f32.gmra.mrb[0].mxu0 %v1535
  %v1537 = vpop.f32.mrb[0].mxu0
  %v1538 = vadd.f32 %v1426, %v1537
  %v1539 = vpop.f32.mrb[0].mxu0
  %v1540 = vadd.f32 %v1428, %v1539
  %1541 = vmatprep.mubr.f32.mxu0 0.0
  %v1542 = vand.u32 %v495, 4294901760
  %v1543 = vsub.f32 %v495, %v1542
  %1544 = vmatmul.mubr.f32.gmra.mrb[0].mxu0 %v1543
  %v1545 = vpop.f32.mrb[0].mxu0
  %v1546 = vadd.f32 %v1433, %v1545
  %v1547 = vpop.f32.mrb[0].mxu0
  %v1548 = vadd.f32 %v1435, %v1547
  %1549 = vdwg.mxu0
  %v1550 = vand.u32 %v300, 4294901760
  %1551 = vmatprep.subr.mxu0 %v1550
  %v1552 = vand.u32 %v260, 4294901760
  %1553 = vmatpush1.msra.mxu0 %v1552
  %v1554 = vand.u32 %v301, 4294901760
  %1555 = vmatprep.subr.mxu0 %v1554
  %v1556 = vand.u32 %v261, 4294901760
  %1557 = vmatpush1.msra.mxu0 %v1556
  %v1558 = vand.u32 %v302, 4294901760
  %1559 = vmatprep.subr.mxu0 %v1558
  %v1560 = vand.u32 %v262, 4294901760
  %1561 = vmatpush1.msra.mxu0 %v1560
  %v1562 = vand.u32 %v303, 4294901760
  %1563 = vmatprep.subr.mxu0 %v1562
  %v1564 = vand.u32 %v263, 4294901760
  %1565 = vmatpush1.msra.mxu0 %v1564
  %1566 = vmatprep.subr.mxu0 0.0
  %1567 = vmatpush1.msra.mxu0 0.0
  %1568 = vmatprep.subr.mxu0 0.0
  %1569 = vmatpush1.msra.mxu0 0.0
  %1570 = vmatprep.subr.mxu0 0.0
  %1571 = vmatpush1.msra.mxu0 0.0
  %1572 = vmatprep.subr.mxu0 0.0
  %1573 = vmatpush1.msra.mxu0 0.0
  %1574 = vmatprep.subr.mxu0 0.0
  %1575 = vmatpush1.msra.mxu0 0.0
  %1576 = vmatprep.subr.mxu0 0.0
  %1577 = vmatpush1.msra.mxu0 0.0
  %1578 = vmatprep.subr.mxu0 0.0
  %1579 = vmatpush1.msra.mxu0 0.0
  %1580 = vmatprep.subr.mxu0 0.0
  %1581 = vmatpush1.msra.mxu0 0.0
  %1582 = vmatprep.subr.mxu0 0.0
  %1583 = vmatpush1.msra.mxu0 0.0
  %1584 = vmatprep.subr.mxu0 0.0
  %1585 = vmatpush1.msra.mxu0 0.0
  %1586 = vmatprep.subr.mxu0 0.0
  %1587 = vmatpush1.msra.mxu0 0.0
  %1588 = vmatprep.subr.mxu0 0.0
  %1589 = vmatpush1.msra.mxu0 0.0
  %1590 = vmatprep.subr.mxu0 0.0
  %1591 = vmatpush1.msra.mxu0 0.0
  %1592 = vmatprep.subr.mxu0 0.0
  %1593 = vmatpush1.msra.mxu0 0.0
  %1594 = vmatprep.subr.mxu0 0.0
  %1595 = vmatpush1.msra.mxu0 0.0
  %1596 = vmatprep.subr.mxu0 0.0
  %1597 = vmatpush1.msra.mxu0 0.0
  %1598 = vmatprep.subr.mxu0 0.0
  %1599 = vmatpush1.msra.mxu0 0.0
  %1600 = vmatprep.subr.mxu0 0.0
  %1601 = vmatpush1.msra.mxu0 0.0
  %1602 = vmatprep.subr.mxu0 0.0
  %1603 = vmatpush1.msra.mxu0 0.0
  %1604 = vmatprep.subr.mxu0 0.0
  %1605 = vmatpush1.msra.mxu0 0.0
  %1606 = vmatprep.subr.mxu0 0.0
  %1607 = vmatpush1.msra.mxu0 0.0
  %1608 = vmatprep.subr.mxu0 0.0
  %1609 = vmatpush1.msra.mxu0 0.0
  %1610 = vmatprep.subr.mxu0 0.0
  %1611 = vmatpush1.msra.mxu0 0.0
  %1612 = vmatprep.subr.mxu0 0.0
  %1613 = vmatpush1.msra.mxu0 0.0
  %1614 = vmatprep.subr.mxu0 0.0
  %1615 = vmatpush1.msra.mxu0 0.0
  %1616 = vmatprep.subr.mxu0 0.0
  %1617 = vmatpush1.msra.mxu0 0.0
  %1618 = vmatprep.subr.mxu0 0.0
  %1619 = vmatpush1.msra.mxu0 0.0
  %1620 = vmatprep.subr.mxu0 0.0
  %1621 = vmatpush1.msra.mxu0 0.0
  %1622 = vmatprep.mubr.f32.mxu0 0.0
  %v1623 = vand.u32 %v486, 4294901760
  %v1624 = vsub.f32 %v486, %v1623
  %v1625 = vand.u32 %v1624, 4294901760
  %1626 = vmatmul.mubr.f32.gmra.mrb[0].mxu0 %v1625
  %v1627 = vpop.f32.mrb[0].mxu0
  %v1628 = vadd.f32 %v1522, %v1627
  %v1629 = vpop.f32.mrb[0].mxu0
  %v1630 = vadd.f32 %v1524, %v1629
  %1631 = vmatprep.mubr.f32.mxu0 0.0
  %v1632 = vand.u32 %v489, 4294901760
  %v1633 = vsub.f32 %v489, %v1632
  %v1634 = vand.u32 %v1633, 4294901760
  %1635 = vmatmul.mubr.f32.gmra.mrb[0].mxu0 %v1634
  %v1636 = vpop.f32.mrb[0].mxu0
  %v1637 = vadd.f32 %v1530, %v1636
  %v1638 = vpop.f32.mrb[0].mxu0
  %v1639 = vadd.f32 %v1532, %v1638
  %1640 = vmatprep.mubr.f32.mxu0 0.0
  %v1641 = vand.u32 %v492, 4294901760
  %v1642 = vsub.f32 %v492, %v1641
  %v1643 = vand.u32 %v1642, 4294901760
  %1644 = vmatmul.mubr.f32.gmra.mrb[0].mxu0 %v1643
  %v1645 = vpop.f32.mrb[0].mxu0
  %v1646 = vadd.f32 %v1538, %v1645
  %v1647 = vpop.f32.mrb[0].mxu0
  %v1648 = vadd.f32 %v1540, %v1647
  %1649 = vmatprep.mubr.f32.mxu0 0.0
  %v1650 = vand.u32 %v495, 4294901760
  %v1651 = vsub.f32 %v495, %v1650
  %v1652 = vand.u32 %v1651, 4294901760
  %1653 = vmatmul.mubr.f32.gmra.mrb[0].mxu0 %v1652
  %v1654 = vpop.f32.mrb[0].mxu0
  %v1655 = vadd.f32 %v1546, %v1654
  %v1656 = vpop.f32.mrb[0].mxu0
  %v1657 = vadd.f32 %v1548, %v1656
  %1658 = vdwg.mxu0
  %v1659 = vand.u32 %v300, 4294901760
  %v1660 = vsub.f32 %v300, %v1659
  %v1661 = vand.u32 %v1660, 4294901760
  %1662 = vmatprep.subr.mxu0 %v1661
  %v1663 = vand.u32 %v260, 4294901760
  %v1664 = vsub.f32 %v260, %v1663
  %v1665 = vand.u32 %v1664, 4294901760
  %1666 = vmatpush1.msra.mxu0 %v1665
  %v1667 = vand.u32 %v301, 4294901760
  %v1668 = vsub.f32 %v301, %v1667
  %v1669 = vand.u32 %v1668, 4294901760
  %1670 = vmatprep.subr.mxu0 %v1669
  %v1671 = vand.u32 %v261, 4294901760
  %v1672 = vsub.f32 %v261, %v1671
  %v1673 = vand.u32 %v1672, 4294901760
  %1674 = vmatpush1.msra.mxu0 %v1673
  %v1675 = vand.u32 %v302, 4294901760
  %v1676 = vsub.f32 %v302, %v1675
  %v1677 = vand.u32 %v1676, 4294901760
  %1678 = vmatprep.subr.mxu0 %v1677
  %v1679 = vand.u32 %v262, 4294901760
  %v1680 = vsub.f32 %v262, %v1679
  %v1681 = vand.u32 %v1680, 4294901760
  %1682 = vmatpush1.msra.mxu0 %v1681
  %v1683 = vand.u32 %v303, 4294901760
  %v1684 = vsub.f32 %v303, %v1683
  %v1685 = vand.u32 %v1684, 4294901760
  %1686 = vmatprep.subr.mxu0 %v1685
  %v1687 = vand.u32 %v263, 4294901760
  %v1688 = vsub.f32 %v263, %v1687
  %v1689 = vand.u32 %v1688, 4294901760
  %1690 = vmatpush1.msra.mxu0 %v1689
  %1691 = vmatprep.subr.mxu0 0.0
  %1692 = vmatpush1.msra.mxu0 0.0
  %1693 = vmatprep.subr.mxu0 0.0
  %1694 = vmatpush1.msra.mxu0 0.0
  %1695 = vmatprep.subr.mxu0 0.0
  %1696 = vmatpush1.msra.mxu0 0.0
  %1697 = vmatprep.subr.mxu0 0.0
  %1698 = vmatpush1.msra.mxu0 0.0
  %1699 = vmatprep.subr.mxu0 0.0
  %1700 = vmatpush1.msra.mxu0 0.0
  %1701 = vmatprep.subr.mxu0 0.0
  %1702 = vmatpush1.msra.mxu0 0.0
  %1703 = vmatprep.subr.mxu0 0.0
  %1704 = vmatpush1.msra.mxu0 0.0
  %1705 = vmatprep.subr.mxu0 0.0
  %1706 = vmatpush1.msra.mxu0 0.0
  %1707 = vmatprep.subr.mxu0 0.0
  %1708 = vmatpush1.msra.mxu0 0.0
  %1709 = vmatprep.subr.mxu0 0.0
  %1710 = vmatpush1.msra.mxu0 0.0
  %1711 = vmatprep.subr.mxu0 0.0
  %1712 = vmatpush1.msra.mxu0 0.0
  %1713 = vmatprep.subr.mxu0 0.0
  %1714 = vmatpush1.msra.mxu0 0.0
  %1715 = vmatprep.subr.mxu0 0.0
  %1716 = vmatpush1.msra.mxu0 0.0
  %1717 = vmatprep.subr.mxu0 0.0
  %1718 = vmatpush1.msra.mxu0 0.0
  %1719 = vmatprep.subr.mxu0 0.0
  %1720 = vmatpush1.msra.mxu0 0.0
  %1721 = vmatprep.subr.mxu0 0.0
  %1722 = vmatpush1.msra.mxu0 0.0
  %1723 = vmatprep.subr.mxu0 0.0
  %1724 = vmatpush1.msra.mxu0 0.0
  %1725 = vmatprep.subr.mxu0 0.0
  %1726 = vmatpush1.msra.mxu0 0.0
  %1727 = vmatprep.subr.mxu0 0.0
  %1728 = vmatpush1.msra.mxu0 0.0
  %1729 = vmatprep.subr.mxu0 0.0
  %1730 = vmatpush1.msra.mxu0 0.0
  %1731 = vmatprep.subr.mxu0 0.0
  %1732 = vmatpush1.msra.mxu0 0.0
  %1733 = vmatprep.subr.mxu0 0.0
  %1734 = vmatpush1.msra.mxu0 0.0
  %1735 = vmatprep.subr.mxu0 0.0
  %1736 = vmatpush1.msra.mxu0 0.0
  %1737 = vmatprep.subr.mxu0 0.0
  %1738 = vmatpush1.msra.mxu0 0.0
  %1739 = vmatprep.subr.mxu0 0.0
  %1740 = vmatpush1.msra.mxu0 0.0
  %1741 = vmatprep.subr.mxu0 0.0
  %1742 = vmatpush1.msra.mxu0 0.0
  %1743 = vmatprep.subr.mxu0 0.0
  %1744 = vmatpush1.msra.mxu0 0.0
  %1745 = vmatprep.subr.mxu0 0.0
  %1746 = vmatpush1.msra.mxu0 0.0
  %1747 = vmatprep.mubr.f32.mxu0 0.0
  %v1748 = vand.u32 %v486, 4294901760
  %1749 = vmatmul.mubr.f32.gmra.mrb[0].mxu0 %v1748
  %v1750 = vpop.f32.mrb[0].mxu0
  %v1751 = vadd.f32 %v1628, %v1750
  %v1752 = vpop.f32.mrb[0].mxu0
  %v1753 = vadd.f32 %v1630, %v1752
  %1754 = vmatprep.mubr.f32.mxu0 0.0
  %v1755 = vand.u32 %v489, 4294901760
  %1756 = vmatmul.mubr.f32.gmra.mrb[0].mxu0 %v1755
  %v1757 = vpop.f32.mrb[0].mxu0
  %v1758 = vadd.f32 %v1637, %v1757
  %v1759 = vpop.f32.mrb[0].mxu0
  %v1760 = vadd.f32 %v1639, %v1759
  %1761 = vmatprep.mubr.f32.mxu0 0.0
  %v1762 = vand.u32 %v492, 4294901760
  %1763 = vmatmul.mubr.f32.gmra.mrb[0].mxu0 %v1762
  %v1764 = vpop.f32.mrb[0].mxu0
  %v1765 = vadd.f32 %v1646, %v1764
  %v1766 = vpop.f32.mrb[0].mxu0
  %v1767 = vadd.f32 %v1648, %v1766
  %1768 = vmatprep.mubr.f32.mxu0 0.0
  %v1769 = vand.u32 %v495, 4294901760
  %1770 = vmatmul.mubr.f32.gmra.mrb[0].mxu0 %v1769
  %v1771 = vpop.f32.mrb[0].mxu0
  %v1772 = vadd.f32 %v1655, %v1771
  %v1773 = vpop.f32.mrb[0].mxu0
  %v1774 = vadd.f32 %v1657, %v1773
  %1775 = vdwg.mxu0
  %v1776 = vand.u32 %v300, 4294901760
  %1777 = vmatprep.subr.mxu0 %v1776
  %v1778 = vand.u32 %v260, 4294901760
  %1779 = vmatpush1.msra.mxu0 %v1778
  %v1780 = vand.u32 %v301, 4294901760
  %1781 = vmatprep.subr.mxu0 %v1780
  %v1782 = vand.u32 %v261, 4294901760
  %1783 = vmatpush1.msra.mxu0 %v1782
  %v1784 = vand.u32 %v302, 4294901760
  %1785 = vmatprep.subr.mxu0 %v1784
  %v1786 = vand.u32 %v262, 4294901760
  %1787 = vmatpush1.msra.mxu0 %v1786
  %v1788 = vand.u32 %v303, 4294901760
  %1789 = vmatprep.subr.mxu0 %v1788
  %v1790 = vand.u32 %v263, 4294901760
  %1791 = vmatpush1.msra.mxu0 %v1790
  %1792 = vmatprep.subr.mxu0 0.0
  %1793 = vmatpush1.msra.mxu0 0.0
  %1794 = vmatprep.subr.mxu0 0.0
  %1795 = vmatpush1.msra.mxu0 0.0
  %1796 = vmatprep.subr.mxu0 0.0
  %1797 = vmatpush1.msra.mxu0 0.0
  %1798 = vmatprep.subr.mxu0 0.0
  %1799 = vmatpush1.msra.mxu0 0.0
  %1800 = vmatprep.subr.mxu0 0.0
  %1801 = vmatpush1.msra.mxu0 0.0
  %1802 = vmatprep.subr.mxu0 0.0
  %1803 = vmatpush1.msra.mxu0 0.0
  %1804 = vmatprep.subr.mxu0 0.0
  %1805 = vmatpush1.msra.mxu0 0.0
  %1806 = vmatprep.subr.mxu0 0.0
  %1807 = vmatpush1.msra.mxu0 0.0
  %1808 = vmatprep.subr.mxu0 0.0
  %1809 = vmatpush1.msra.mxu0 0.0
  %1810 = vmatprep.subr.mxu0 0.0
  %1811 = vmatpush1.msra.mxu0 0.0
  %1812 = vmatprep.subr.mxu0 0.0
  %1813 = vmatpush1.msra.mxu0 0.0
  %1814 = vmatprep.subr.mxu0 0.0
  %1815 = vmatpush1.msra.mxu0 0.0
  %1816 = vmatprep.subr.mxu0 0.0
  %1817 = vmatpush1.msra.mxu0 0.0
  %1818 = vmatprep.subr.mxu0 0.0
  %1819 = vmatpush1.msra.mxu0 0.0
  %1820 = vmatprep.subr.mxu0 0.0
  %1821 = vmatpush1.msra.mxu0 0.0
  %1822 = vmatprep.subr.mxu0 0.0
  %1823 = vmatpush1.msra.mxu0 0.0
  %1824 = vmatprep.subr.mxu0 0.0
  %1825 = vmatpush1.msra.mxu0 0.0
  %1826 = vmatprep.subr.mxu0 0.0
  %1827 = vmatpush1.msra.mxu0 0.0
  %1828 = vmatprep.subr.mxu0 0.0
  %1829 = vmatpush1.msra.mxu0 0.0
  %1830 = vmatprep.subr.mxu0 0.0
  %1831 = vmatpush1.msra.mxu0 0.0
  %1832 = vmatprep.subr.mxu0 0.0
  %1833 = vmatpush1.msra.mxu0 0.0
  %1834 = vmatprep.subr.mxu0 0.0
  %1835 = vmatpush1.msra.mxu0 0.0
  %1836 = vmatprep.subr.mxu0 0.0
  %1837 = vmatpush1.msra.mxu0 0.0
  %1838 = vmatprep.subr.mxu0 0.0
  %1839 = vmatpush1.msra.mxu0 0.0
  %1840 = vmatprep.subr.mxu0 0.0
  %1841 = vmatpush1.msra.mxu0 0.0
  %1842 = vmatprep.subr.mxu0 0.0
  %1843 = vmatpush1.msra.mxu0 0.0
  %1844 = vmatprep.subr.mxu0 0.0
  %1845 = vmatpush1.msra.mxu0 0.0
  %1846 = vmatprep.subr.mxu0 0.0
  %1847 = vmatpush1.msra.mxu0 0.0
  %1848 = vmatprep.mubr.f32.mxu0 0.0
  %v1849 = vand.u32 %v486, 4294901760
  %1850 = vmatmul.mubr.f32.gmra.mrb[0].mxu0 %v1849
  %v1851 = vpop.f32.mrb[0].mxu0
  %v1852 = vadd.f32 %v1751, %v1851
  %v1853 = vpop.f32.mrb[0].mxu0
  %v1854 = vadd.f32 %v1753, %v1853
  %1855 = vmatprep.mubr.f32.mxu0 0.0
  %v1856 = vand.u32 %v489, 4294901760
  %1857 = vmatmul.mubr.f32.gmra.mrb[0].mxu0 %v1856
  %v1858 = vpop.f32.mrb[0].mxu0
  %v1859 = vadd.f32 %v1758, %v1858
  %v1860 = vpop.f32.mrb[0].mxu0
  %v1861 = vadd.f32 %v1760, %v1860
  %1862 = vmatprep.mubr.f32.mxu0 0.0
  %v1863 = vand.u32 %v492, 4294901760
  %1864 = vmatmul.mubr.f32.gmra.mrb[0].mxu0 %v1863
  %v1865 = vpop.f32.mrb[0].mxu0
  %v1866 = vadd.f32 %v1765, %v1865
  %v1867 = vpop.f32.mrb[0].mxu0
  %v1868 = vadd.f32 %v1767, %v1867
  %1869 = vmatprep.mubr.f32.mxu0 0.0
  %v1870 = vand.u32 %v495, 4294901760
  %1871 = vmatmul.mubr.f32.gmra.mrb[0].mxu0 %v1870
  %v1872 = vpop.f32.mrb[0].mxu0
  %v1873 = vadd.f32 %v1772, %v1872
  %v1874 = vpop.f32.mrb[0].mxu0
  %v1875 = vadd.f32 %v1774, %v1874
  %1876 = vdwg.mxu0
  %v1877 = vand.u32 %v380, 4294901760
  %1878 = vmatprep.subr.mxu0 %v1877
  %v1879 = vand.u32 %v340, 4294901760
  %1880 = vmatpush1.msra.mxu0 %v1879
  %v1881 = vand.u32 %v381, 4294901760
  %1882 = vmatprep.subr.mxu0 %v1881
  %v1883 = vand.u32 %v341, 4294901760
  %1884 = vmatpush1.msra.mxu0 %v1883
  %v1885 = vand.u32 %v382, 4294901760
  %1886 = vmatprep.subr.mxu0 %v1885
  %v1887 = vand.u32 %v342, 4294901760
  %1888 = vmatpush1.msra.mxu0 %v1887
  %v1889 = vand.u32 %v383, 4294901760
  %1890 = vmatprep.subr.mxu0 %v1889
  %v1891 = vand.u32 %v343, 4294901760
  %1892 = vmatpush1.msra.mxu0 %v1891
  %1893 = vmatprep.subr.mxu0 0.0
  %1894 = vmatpush1.msra.mxu0 0.0
  %1895 = vmatprep.subr.mxu0 0.0
  %1896 = vmatpush1.msra.mxu0 0.0
  %1897 = vmatprep.subr.mxu0 0.0
  %1898 = vmatpush1.msra.mxu0 0.0
  %1899 = vmatprep.subr.mxu0 0.0
  %1900 = vmatpush1.msra.mxu0 0.0
  %1901 = vmatprep.subr.mxu0 0.0
  %1902 = vmatpush1.msra.mxu0 0.0
  %1903 = vmatprep.subr.mxu0 0.0
  %1904 = vmatpush1.msra.mxu0 0.0
  %1905 = vmatprep.subr.mxu0 0.0
  %1906 = vmatpush1.msra.mxu0 0.0
  %1907 = vmatprep.subr.mxu0 0.0
  %1908 = vmatpush1.msra.mxu0 0.0
  %1909 = vmatprep.subr.mxu0 0.0
  %1910 = vmatpush1.msra.mxu0 0.0
  %1911 = vmatprep.subr.mxu0 0.0
  %1912 = vmatpush1.msra.mxu0 0.0
  %1913 = vmatprep.subr.mxu0 0.0
  %1914 = vmatpush1.msra.mxu0 0.0
  %1915 = vmatprep.subr.mxu0 0.0
  %1916 = vmatpush1.msra.mxu0 0.0
  %1917 = vmatprep.subr.mxu0 0.0
  %1918 = vmatpush1.msra.mxu0 0.0
  %1919 = vmatprep.subr.mxu0 0.0
  %1920 = vmatpush1.msra.mxu0 0.0
  %1921 = vmatprep.subr.mxu0 0.0
  %1922 = vmatpush1.msra.mxu0 0.0
  %1923 = vmatprep.subr.mxu0 0.0
  %1924 = vmatpush1.msra.mxu0 0.0
  %1925 = vmatprep.subr.mxu0 0.0
  %1926 = vmatpush1.msra.mxu0 0.0
  %1927 = vmatprep.subr.mxu0 0.0
  %1928 = vmatpush1.msra.mxu0 0.0
  %1929 = vmatprep.subr.mxu0 0.0
  %1930 = vmatpush1.msra.mxu0 0.0
  %1931 = vmatprep.subr.mxu0 0.0
  %1932 = vmatpush1.msra.mxu0 0.0
  %1933 = vmatprep.subr.mxu0 0.0
  %1934 = vmatpush1.msra.mxu0 0.0
  %1935 = vmatprep.subr.mxu0 0.0
  %1936 = vmatpush1.msra.mxu0 0.0
  %1937 = vmatprep.subr.mxu0 0.0
  %1938 = vmatpush1.msra.mxu0 0.0
  %1939 = vmatprep.subr.mxu0 0.0
  %1940 = vmatpush1.msra.mxu0 0.0
  %1941 = vmatprep.subr.mxu0 0.0
  %1942 = vmatpush1.msra.mxu0 0.0
  %1943 = vmatprep.subr.mxu0 0.0
  %1944 = vmatpush1.msra.mxu0 0.0
  %1945 = vmatprep.subr.mxu0 0.0
  %1946 = vmatpush1.msra.mxu0 0.0
  %1947 = vmatprep.subr.mxu0 0.0
  %1948 = vmatpush1.msra.mxu0 0.0
  %1949 = vmatprep.mubr.f32.mxu0 0.0
  %v1950 = vand.u32 %v486, 4294901760
  %v1951 = vsub.f32 %v486, %v1950
  %v1952 = vand.u32 %v1951, 4294901760
  %v1953 = vsub.f32 %v1951, %v1952
  %v1954 = vand.u32 %v1953, 4294901760
  %1955 = vmatmul.mubr.f32.gmra.mrb[0].mxu0 %v1954
  %v1956 = vpop.f32.mrb[0].mxu0
  %v1957 = vadd.f32 %v467, %v1956
  %v1958 = vpop.f32.mrb[0].mxu0
  %v1959 = vadd.f32 %v467, %v1958
  %1960 = vmatprep.mubr.f32.mxu0 0.0
  %v1961 = vand.u32 %v489, 4294901760
  %v1962 = vsub.f32 %v489, %v1961
  %v1963 = vand.u32 %v1962, 4294901760
  %v1964 = vsub.f32 %v1962, %v1963
  %v1965 = vand.u32 %v1964, 4294901760
  %1966 = vmatmul.mubr.f32.gmra.mrb[0].mxu0 %v1965
  %v1967 = vpop.f32.mrb[0].mxu0
  %v1968 = vadd.f32 %v472, %v1967
  %v1969 = vpop.f32.mrb[0].mxu0
  %v1970 = vadd.f32 %v472, %v1969
  %1971 = vmatprep.mubr.f32.mxu0 0.0
  %v1972 = vand.u32 %v492, 4294901760
  %v1973 = vsub.f32 %v492, %v1972
  %v1974 = vand.u32 %v1973, 4294901760
  %v1975 = vsub.f32 %v1973, %v1974
  %v1976 = vand.u32 %v1975, 4294901760
  %1977 = vmatmul.mubr.f32.gmra.mrb[0].mxu0 %v1976
  %v1978 = vpop.f32.mrb[0].mxu0
  %v1979 = vadd.f32 %v477, %v1978
  %v1980 = vpop.f32.mrb[0].mxu0
  %v1981 = vadd.f32 %v477, %v1980
  %1982 = vmatprep.mubr.f32.mxu0 0.0
  %v1983 = vand.u32 %v495, 4294901760
  %v1984 = vsub.f32 %v495, %v1983
  %v1985 = vand.u32 %v1984, 4294901760
  %v1986 = vsub.f32 %v1984, %v1985
  %v1987 = vand.u32 %v1986, 4294901760
  %1988 = vmatmul.mubr.f32.gmra.mrb[0].mxu0 %v1987
  %v1989 = vpop.f32.mrb[0].mxu0
  %v1990 = vadd.f32 %v482, %v1989
  %v1991 = vpop.f32.mrb[0].mxu0
  %v1992 = vadd.f32 %v482, %v1991
  %1993 = vdwg.mxu0
  %v1994 = vand.u32 %v380, 4294901760
  %v1995 = vsub.f32 %v380, %v1994
  %v1996 = vand.u32 %v1995, 4294901760
  %v1997 = vsub.f32 %v1995, %v1996
  %v1998 = vand.u32 %v1997, 4294901760
  %1999 = vmatprep.subr.mxu0 %v1998
  %v2000 = vand.u32 %v340, 4294901760
  %v2001 = vsub.f32 %v340, %v2000
  %v2002 = vand.u32 %v2001, 4294901760
  %v2003 = vsub.f32 %v2001, %v2002
  %v2004 = vand.u32 %v2003, 4294901760
  %2005 = vmatpush1.msra.mxu0 %v2004
  %v2006 = vand.u32 %v381, 4294901760
  %v2007 = vsub.f32 %v381, %v2006
  %v2008 = vand.u32 %v2007, 4294901760
  %v2009 = vsub.f32 %v2007, %v2008
  %v2010 = vand.u32 %v2009, 4294901760
  %2011 = vmatprep.subr.mxu0 %v2010
  %v2012 = vand.u32 %v341, 4294901760
  %v2013 = vsub.f32 %v341, %v2012
  %v2014 = vand.u32 %v2013, 4294901760
  %v2015 = vsub.f32 %v2013, %v2014
  %v2016 = vand.u32 %v2015, 4294901760
  %2017 = vmatpush1.msra.mxu0 %v2016
  %v2018 = vand.u32 %v382, 4294901760
  %v2019 = vsub.f32 %v382, %v2018
  %v2020 = vand.u32 %v2019, 4294901760
  %v2021 = vsub.f32 %v2019, %v2020
  %v2022 = vand.u32 %v2021, 4294901760
  %2023 = vmatprep.subr.mxu0 %v2022
  %v2024 = vand.u32 %v342, 4294901760
  %v2025 = vsub.f32 %v342, %v2024
  %v2026 = vand.u32 %v2025, 4294901760
  %v2027 = vsub.f32 %v2025, %v2026
  %v2028 = vand.u32 %v2027, 4294901760
  %2029 = vmatpush1.msra.mxu0 %v2028
  %v2030 = vand.u32 %v383, 4294901760
  %v2031 = vsub.f32 %v383, %v2030
  %v2032 = vand.u32 %v2031, 4294901760
  %v2033 = vsub.f32 %v2031, %v2032
  %v2034 = vand.u32 %v2033, 4294901760
  %2035 = vmatprep.subr.mxu0 %v2034
  %v2036 = vand.u32 %v343, 4294901760
  %v2037 = vsub.f32 %v343, %v2036
  %v2038 = vand.u32 %v2037, 4294901760
  %v2039 = vsub.f32 %v2037, %v2038
  %v2040 = vand.u32 %v2039, 4294901760
  %2041 = vmatpush1.msra.mxu0 %v2040
  %2042 = vmatprep.subr.mxu0 0.0
  %2043 = vmatpush1.msra.mxu0 0.0
  %2044 = vmatprep.subr.mxu0 0.0
  %2045 = vmatpush1.msra.mxu0 0.0
  %2046 = vmatprep.subr.mxu0 0.0
  %2047 = vmatpush1.msra.mxu0 0.0
  %2048 = vmatprep.subr.mxu0 0.0
  %2049 = vmatpush1.msra.mxu0 0.0
  %2050 = vmatprep.subr.mxu0 0.0
  %2051 = vmatpush1.msra.mxu0 0.0
  %2052 = vmatprep.subr.mxu0 0.0
  %2053 = vmatpush1.msra.mxu0 0.0
  %2054 = vmatprep.subr.mxu0 0.0
  %2055 = vmatpush1.msra.mxu0 0.0
  %2056 = vmatprep.subr.mxu0 0.0
  %2057 = vmatpush1.msra.mxu0 0.0
  %2058 = vmatprep.subr.mxu0 0.0
  %2059 = vmatpush1.msra.mxu0 0.0
  %2060 = vmatprep.subr.mxu0 0.0
  %2061 = vmatpush1.msra.mxu0 0.0
  %2062 = vmatprep.subr.mxu0 0.0
  %2063 = vmatpush1.msra.mxu0 0.0
  %2064 = vmatprep.subr.mxu0 0.0
  %2065 = vmatpush1.msra.mxu0 0.0
  %2066 = vmatprep.subr.mxu0 0.0
  %2067 = vmatpush1.msra.mxu0 0.0
  %2068 = vmatprep.subr.mxu0 0.0
  %2069 = vmatpush1.msra.mxu0 0.0
  %2070 = vmatprep.subr.mxu0 0.0
  %2071 = vmatpush1.msra.mxu0 0.0
  %2072 = vmatprep.subr.mxu0 0.0
  %2073 = vmatpush1.msra.mxu0 0.0
  %2074 = vmatprep.subr.mxu0 0.0
  %2075 = vmatpush1.msra.mxu0 0.0
  %2076 = vmatprep.subr.mxu0 0.0
  %2077 = vmatpush1.msra.mxu0 0.0
  %2078 = vmatprep.subr.mxu0 0.0
  %2079 = vmatpush1.msra.mxu0 0.0
  %2080 = vmatprep.subr.mxu0 0.0
  %2081 = vmatpush1.msra.mxu0 0.0
  %2082 = vmatprep.subr.mxu0 0.0
  %2083 = vmatpush1.msra.mxu0 0.0
  %2084 = vmatprep.subr.mxu0 0.0
  %2085 = vmatpush1.msra.mxu0 0.0
  %2086 = vmatprep.subr.mxu0 0.0
  %2087 = vmatpush1.msra.mxu0 0.0
  %2088 = vmatprep.subr.mxu0 0.0
  %2089 = vmatpush1.msra.mxu0 0.0
  %2090 = vmatprep.subr.mxu0 0.0
  %2091 = vmatpush1.msra.mxu0 0.0
  %2092 = vmatprep.subr.mxu0 0.0
  %2093 = vmatpush1.msra.mxu0 0.0
  %2094 = vmatprep.subr.mxu0 0.0
  %2095 = vmatpush1.msra.mxu0 0.0
  %2096 = vmatprep.subr.mxu0 0.0
  %2097 = vmatpush1.msra.mxu0 0.0
  %2098 = vmatprep.mubr.f32.mxu0 0.0
  %v2099 = vand.u32 %v486, 4294901760
  %2100 = vmatmul.mubr.f32.gmra.mrb[0].mxu0 %v2099
  %v2101 = vpop.f32.mrb[0].mxu0
  %v2102 = vadd.f32 %v1957, %v2101
  %v2103 = vpop.f32.mrb[0].mxu0
  %v2104 = vadd.f32 %v1959, %v2103
  %2105 = vmatprep.mubr.f32.mxu0 0.0
  %v2106 = vand.u32 %v489, 4294901760
  %2107 = vmatmul.mubr.f32.gmra.mrb[0].mxu0 %v2106
  %v2108 = vpop.f32.mrb[0].mxu0
  %v2109 = vadd.f32 %v1968, %v2108
  %v2110 = vpop.f32.mrb[0].mxu0
  %v2111 = vadd.f32 %v1970, %v2110
  %2112 = vmatprep.mubr.f32.mxu0 0.0
  %v2113 = vand.u32 %v492, 4294901760
  %2114 = vmatmul.mubr.f32.gmra.mrb[0].mxu0 %v2113
  %v2115 = vpop.f32.mrb[0].mxu0
  %v2116 = vadd.f32 %v1979, %v2115
  %v2117 = vpop.f32.mrb[0].mxu0
  %v2118 = vadd.f32 %v1981, %v2117
  %2119 = vmatprep.mubr.f32.mxu0 0.0
  %v2120 = vand.u32 %v495, 4294901760
  %2121 = vmatmul.mubr.f32.gmra.mrb[0].mxu0 %v2120
  %v2122 = vpop.f32.mrb[0].mxu0
  %v2123 = vadd.f32 %v1990, %v2122
  %v2124 = vpop.f32.mrb[0].mxu0
  %v2125 = vadd.f32 %v1992, %v2124
  %2126 = vdwg.mxu0
  %v2127 = vand.u32 %v380, 4294901760
  %v2128 = vsub.f32 %v380, %v2127
  %2129 = vmatprep.subr.mxu0 %v2128
  %v2130 = vand.u32 %v340, 4294901760
  %v2131 = vsub.f32 %v340, %v2130
  %2132 = vmatpush1.msra.mxu0 %v2131
  %v2133 = vand.u32 %v381, 4294901760
  %v2134 = vsub.f32 %v381, %v2133
  %2135 = vmatprep.subr.mxu0 %v2134
  %v2136 = vand.u32 %v341, 4294901760
  %v2137 = vsub.f32 %v341, %v2136
  %2138 = vmatpush1.msra.mxu0 %v2137
  %v2139 = vand.u32 %v382, 4294901760
  %v2140 = vsub.f32 %v382, %v2139
  %2141 = vmatprep.subr.mxu0 %v2140
  %v2142 = vand.u32 %v342, 4294901760
  %v2143 = vsub.f32 %v342, %v2142
  %2144 = vmatpush1.msra.mxu0 %v2143
  %v2145 = vand.u32 %v383, 4294901760
  %v2146 = vsub.f32 %v383, %v2145
  %2147 = vmatprep.subr.mxu0 %v2146
  %v2148 = vand.u32 %v343, 4294901760
  %v2149 = vsub.f32 %v343, %v2148
  %2150 = vmatpush1.msra.mxu0 %v2149
  %2151 = vmatprep.subr.mxu0 0.0
  %2152 = vmatpush1.msra.mxu0 0.0
  %2153 = vmatprep.subr.mxu0 0.0
  %2154 = vmatpush1.msra.mxu0 0.0
  %2155 = vmatprep.subr.mxu0 0.0
  %2156 = vmatpush1.msra.mxu0 0.0
  %2157 = vmatprep.subr.mxu0 0.0
  %2158 = vmatpush1.msra.mxu0 0.0
  %2159 = vmatprep.subr.mxu0 0.0
  %2160 = vmatpush1.msra.mxu0 0.0
  %2161 = vmatprep.subr.mxu0 0.0
  %2162 = vmatpush1.msra.mxu0 0.0
  %2163 = vmatprep.subr.mxu0 0.0
  %2164 = vmatpush1.msra.mxu0 0.0
  %2165 = vmatprep.subr.mxu0 0.0
  %2166 = vmatpush1.msra.mxu0 0.0
  %2167 = vmatprep.subr.mxu0 0.0
  %2168 = vmatpush1.msra.mxu0 0.0
  %2169 = vmatprep.subr.mxu0 0.0
  %2170 = vmatpush1.msra.mxu0 0.0
  %2171 = vmatprep.subr.mxu0 0.0
  %2172 = vmatpush1.msra.mxu0 0.0
  %2173 = vmatprep.subr.mxu0 0.0
  %2174 = vmatpush1.msra.mxu0 0.0
  %2175 = vmatprep.subr.mxu0 0.0
  %2176 = vmatpush1.msra.mxu0 0.0
  %2177 = vmatprep.subr.mxu0 0.0
  %2178 = vmatpush1.msra.mxu0 0.0
  %2179 = vmatprep.subr.mxu0 0.0
  %2180 = vmatpush1.msra.mxu0 0.0
  %2181 = vmatprep.subr.mxu0 0.0
  %2182 = vmatpush1.msra.mxu0 0.0
  %2183 = vmatprep.subr.mxu0 0.0
  %2184 = vmatpush1.msra.mxu0 0.0
  %2185 = vmatprep.subr.mxu0 0.0
  %2186 = vmatpush1.msra.mxu0 0.0
  %2187 = vmatprep.subr.mxu0 0.0
  %2188 = vmatpush1.msra.mxu0 0.0
  %2189 = vmatprep.subr.mxu0 0.0
  %2190 = vmatpush1.msra.mxu0 0.0
  %2191 = vmatprep.subr.mxu0 0.0
  %2192 = vmatpush1.msra.mxu0 0.0
  %2193 = vmatprep.subr.mxu0 0.0
  %2194 = vmatpush1.msra.mxu0 0.0
  %2195 = vmatprep.subr.mxu0 0.0
  %2196 = vmatpush1.msra.mxu0 0.0
  %2197 = vmatprep.subr.mxu0 0.0
  %2198 = vmatpush1.msra.mxu0 0.0
  %2199 = vmatprep.subr.mxu0 0.0
  %2200 = vmatpush1.msra.mxu0 0.0
  %2201 = vmatprep.subr.mxu0 0.0
  %2202 = vmatpush1.msra.mxu0 0.0
  %2203 = vmatprep.subr.mxu0 0.0
  %2204 = vmatpush1.msra.mxu0 0.0
  %2205 = vmatprep.subr.mxu0 0.0
  %2206 = vmatpush1.msra.mxu0 0.0
  %2207 = vmatprep.mubr.f32.mxu0 0.0
  %v2208 = vand.u32 %v486, 4294901760
  %v2209 = vsub.f32 %v486, %v2208
  %2210 = vmatmul.mubr.f32.gmra.mrb[0].mxu0 %v2209
  %v2211 = vpop.f32.mrb[0].mxu0
  %v2212 = vadd.f32 %v2102, %v2211
  %v2213 = vpop.f32.mrb[0].mxu0
  %v2214 = vadd.f32 %v2104, %v2213
  %2215 = vmatprep.mubr.f32.mxu0 0.0
  %v2216 = vand.u32 %v489, 4294901760
  %v2217 = vsub.f32 %v489, %v2216
  %2218 = vmatmul.mubr.f32.gmra.mrb[0].mxu0 %v2217
  %v2219 = vpop.f32.mrb[0].mxu0
  %v2220 = vadd.f32 %v2109, %v2219
  %v2221 = vpop.f32.mrb[0].mxu0
  %v2222 = vadd.f32 %v2111, %v2221
  %2223 = vmatprep.mubr.f32.mxu0 0.0
  %v2224 = vand.u32 %v492, 4294901760
  %v2225 = vsub.f32 %v492, %v2224
  %2226 = vmatmul.mubr.f32.gmra.mrb[0].mxu0 %v2225
  %v2227 = vpop.f32.mrb[0].mxu0
  %v2228 = vadd.f32 %v2116, %v2227
  %v2229 = vpop.f32.mrb[0].mxu0
  %v2230 = vadd.f32 %v2118, %v2229
  %2231 = vmatprep.mubr.f32.mxu0 0.0
  %v2232 = vand.u32 %v495, 4294901760
  %v2233 = vsub.f32 %v495, %v2232
  %2234 = vmatmul.mubr.f32.gmra.mrb[0].mxu0 %v2233
  %v2235 = vpop.f32.mrb[0].mxu0
  %v2236 = vadd.f32 %v2123, %v2235
  %v2237 = vpop.f32.mrb[0].mxu0
  %v2238 = vadd.f32 %v2125, %v2237
  %2239 = vdwg.mxu0
  %v2240 = vand.u32 %v380, 4294901760
  %2241 = vmatprep.subr.mxu0 %v2240
  %v2242 = vand.u32 %v340, 4294901760
  %2243 = vmatpush1.msra.mxu0 %v2242
  %v2244 = vand.u32 %v381, 4294901760
  %2245 = vmatprep.subr.mxu0 %v2244
  %v2246 = vand.u32 %v341, 4294901760
  %2247 = vmatpush1.msra.mxu0 %v2246
  %v2248 = vand.u32 %v382, 4294901760
  %2249 = vmatprep.subr.mxu0 %v2248
  %v2250 = vand.u32 %v342, 4294901760
  %2251 = vmatpush1.msra.mxu0 %v2250
  %v2252 = vand.u32 %v383, 4294901760
  %2253 = vmatprep.subr.mxu0 %v2252
  %v2254 = vand.u32 %v343, 4294901760
  %2255 = vmatpush1.msra.mxu0 %v2254
  %2256 = vmatprep.subr.mxu0 0.0
  %2257 = vmatpush1.msra.mxu0 0.0
  %2258 = vmatprep.subr.mxu0 0.0
  %2259 = vmatpush1.msra.mxu0 0.0
  %2260 = vmatprep.subr.mxu0 0.0
  %2261 = vmatpush1.msra.mxu0 0.0
  %2262 = vmatprep.subr.mxu0 0.0
  %2263 = vmatpush1.msra.mxu0 0.0
  %2264 = vmatprep.subr.mxu0 0.0
  %2265 = vmatpush1.msra.mxu0 0.0
  %2266 = vmatprep.subr.mxu0 0.0
  %2267 = vmatpush1.msra.mxu0 0.0
  %2268 = vmatprep.subr.mxu0 0.0
  %2269 = vmatpush1.msra.mxu0 0.0
  %2270 = vmatprep.subr.mxu0 0.0
  %2271 = vmatpush1.msra.mxu0 0.0
  %2272 = vmatprep.subr.mxu0 0.0
  %2273 = vmatpush1.msra.mxu0 0.0
  %2274 = vmatprep.subr.mxu0 0.0
  %2275 = vmatpush1.msra.mxu0 0.0
  %2276 = vmatprep.subr.mxu0 0.0
  %2277 = vmatpush1.msra.mxu0 0.0
  %2278 = vmatprep.subr.mxu0 0.0
  %2279 = vmatpush1.msra.mxu0 0.0
  %2280 = vmatprep.subr.mxu0 0.0
  %2281 = vmatpush1.msra.mxu0 0.0
  %2282 = vmatprep.subr.mxu0 0.0
  %2283 = vmatpush1.msra.mxu0 0.0
  %2284 = vmatprep.subr.mxu0 0.0
  %2285 = vmatpush1.msra.mxu0 0.0
  %2286 = vmatprep.subr.mxu0 0.0
  %2287 = vmatpush1.msra.mxu0 0.0
  %2288 = vmatprep.subr.mxu0 0.0
  %2289 = vmatpush1.msra.mxu0 0.0
  %2290 = vmatprep.subr.mxu0 0.0
  %2291 = vmatpush1.msra.mxu0 0.0
  %2292 = vmatprep.subr.mxu0 0.0
  %2293 = vmatpush1.msra.mxu0 0.0
  %2294 = vmatprep.subr.mxu0 0.0
  %2295 = vmatpush1.msra.mxu0 0.0
  %2296 = vmatprep.subr.mxu0 0.0
  %2297 = vmatpush1.msra.mxu0 0.0
  %2298 = vmatprep.subr.mxu0 0.0
  %2299 = vmatpush1.msra.mxu0 0.0
  %2300 = vmatprep.subr.mxu0 0.0
  %2301 = vmatpush1.msra.mxu0 0.0
  %2302 = vmatprep.subr.mxu0 0.0
  %2303 = vmatpush1.msra.mxu0 0.0
  %2304 = vmatprep.subr.mxu0 0.0
  %2305 = vmatpush1.msra.mxu0 0.0
  %2306 = vmatprep.subr.mxu0 0.0
  %2307 = vmatpush1.msra.mxu0 0.0
  %2308 = vmatprep.subr.mxu0 0.0
  %2309 = vmatpush1.msra.mxu0 0.0
  %2310 = vmatprep.subr.mxu0 0.0
  %2311 = vmatpush1.msra.mxu0 0.0
  %2312 = vmatprep.mubr.f32.mxu0 0.0
  %v2313 = vand.u32 %v486, 4294901760
  %v2314 = vsub.f32 %v486, %v2313
  %v2315 = vand.u32 %v2314, 4294901760
  %2316 = vmatmul.mubr.f32.gmra.mrb[0].mxu0 %v2315
  %v2317 = vpop.f32.mrb[0].mxu0
  %v2318 = vadd.f32 %v2212, %v2317
  %v2319 = vpop.f32.mrb[0].mxu0
  %v2320 = vadd.f32 %v2214, %v2319
  %2321 = vmatprep.mubr.f32.mxu0 0.0
  %v2322 = vand.u32 %v489, 4294901760
  %v2323 = vsub.f32 %v489, %v2322
  %v2324 = vand.u32 %v2323, 4294901760
  %2325 = vmatmul.mubr.f32.gmra.mrb[0].mxu0 %v2324
  %v2326 = vpop.f32.mrb[0].mxu0
  %v2327 = vadd.f32 %v2220, %v2326
  %v2328 = vpop.f32.mrb[0].mxu0
  %v2329 = vadd.f32 %v2222, %v2328
  %2330 = vmatprep.mubr.f32.mxu0 0.0
  %v2331 = vand.u32 %v492, 4294901760
  %v2332 = vsub.f32 %v492, %v2331
  %v2333 = vand.u32 %v2332, 4294901760
  %2334 = vmatmul.mubr.f32.gmra.mrb[0].mxu0 %v2333
  %v2335 = vpop.f32.mrb[0].mxu0
  %v2336 = vadd.f32 %v2228, %v2335
  %v2337 = vpop.f32.mrb[0].mxu0
  %v2338 = vadd.f32 %v2230, %v2337
  %2339 = vmatprep.mubr.f32.mxu0 0.0
  %v2340 = vand.u32 %v495, 4294901760
  %v2341 = vsub.f32 %v495, %v2340
  %v2342 = vand.u32 %v2341, 4294901760
  %2343 = vmatmul.mubr.f32.gmra.mrb[0].mxu0 %v2342
  %v2344 = vpop.f32.mrb[0].mxu0
  %v2345 = vadd.f32 %v2236, %v2344
  %v2346 = vpop.f32.mrb[0].mxu0
  %v2347 = vadd.f32 %v2238, %v2346
  %2348 = vdwg.mxu0
  %v2349 = vand.u32 %v380, 4294901760
  %v2350 = vsub.f32 %v380, %v2349
  %v2351 = vand.u32 %v2350, 4294901760
  %2352 = vmatprep.subr.mxu0 %v2351
  %v2353 = vand.u32 %v340, 4294901760
  %v2354 = vsub.f32 %v340, %v2353
  %v2355 = vand.u32 %v2354, 4294901760
  %2356 = vmatpush1.msra.mxu0 %v2355
  %v2357 = vand.u32 %v381, 4294901760
  %v2358 = vsub.f32 %v381, %v2357
  %v2359 = vand.u32 %v2358, 4294901760
  %2360 = vmatprep.subr.mxu0 %v2359
  %v2361 = vand.u32 %v341, 4294901760
  %v2362 = vsub.f32 %v341, %v2361
  %v2363 = vand.u32 %v2362, 4294901760
  %2364 = vmatpush1.msra.mxu0 %v2363
  %v2365 = vand.u32 %v382, 4294901760
  %v2366 = vsub.f32 %v382, %v2365
  %v2367 = vand.u32 %v2366, 4294901760
  %2368 = vmatprep.subr.mxu0 %v2367
  %v2369 = vand.u32 %v342, 4294901760
  %v2370 = vsub.f32 %v342, %v2369
  %v2371 = vand.u32 %v2370, 4294901760
  %2372 = vmatpush1.msra.mxu0 %v2371
  %v2373 = vand.u32 %v383, 4294901760
  %v2374 = vsub.f32 %v383, %v2373
  %v2375 = vand.u32 %v2374, 4294901760
  %2376 = vmatprep.subr.mxu0 %v2375
  %v2377 = vand.u32 %v343, 4294901760
  %v2378 = vsub.f32 %v343, %v2377
  %v2379 = vand.u32 %v2378, 4294901760
  %2380 = vmatpush1.msra.mxu0 %v2379
  %2381 = vmatprep.subr.mxu0 0.0
  %2382 = vmatpush1.msra.mxu0 0.0
  %2383 = vmatprep.subr.mxu0 0.0
  %2384 = vmatpush1.msra.mxu0 0.0
  %2385 = vmatprep.subr.mxu0 0.0
  %2386 = vmatpush1.msra.mxu0 0.0
  %2387 = vmatprep.subr.mxu0 0.0
  %2388 = vmatpush1.msra.mxu0 0.0
  %2389 = vmatprep.subr.mxu0 0.0
  %2390 = vmatpush1.msra.mxu0 0.0
  %2391 = vmatprep.subr.mxu0 0.0
  %2392 = vmatpush1.msra.mxu0 0.0
  %2393 = vmatprep.subr.mxu0 0.0
  %2394 = vmatpush1.msra.mxu0 0.0
  %2395 = vmatprep.subr.mxu0 0.0
  %2396 = vmatpush1.msra.mxu0 0.0
  %2397 = vmatprep.subr.mxu0 0.0
  %2398 = vmatpush1.msra.mxu0 0.0
  %2399 = vmatprep.subr.mxu0 0.0
  %2400 = vmatpush1.msra.mxu0 0.0
  %2401 = vmatprep.subr.mxu0 0.0
  %2402 = vmatpush1.msra.mxu0 0.0
  %2403 = vmatprep.subr.mxu0 0.0
  %2404 = vmatpush1.msra.mxu0 0.0
  %2405 = vmatprep.subr.mxu0 0.0
  %2406 = vmatpush1.msra.mxu0 0.0
  %2407 = vmatprep.subr.mxu0 0.0
  %2408 = vmatpush1.msra.mxu0 0.0
  %2409 = vmatprep.subr.mxu0 0.0
  %2410 = vmatpush1.msra.mxu0 0.0
  %2411 = vmatprep.subr.mxu0 0.0
  %2412 = vmatpush1.msra.mxu0 0.0
  %2413 = vmatprep.subr.mxu0 0.0
  %2414 = vmatpush1.msra.mxu0 0.0
  %2415 = vmatprep.subr.mxu0 0.0
  %2416 = vmatpush1.msra.mxu0 0.0
  %2417 = vmatprep.subr.mxu0 0.0
  %2418 = vmatpush1.msra.mxu0 0.0
  %2419 = vmatprep.subr.mxu0 0.0
  %2420 = vmatpush1.msra.mxu0 0.0
  %2421 = vmatprep.subr.mxu0 0.0
  %2422 = vmatpush1.msra.mxu0 0.0
  %2423 = vmatprep.subr.mxu0 0.0
  %2424 = vmatpush1.msra.mxu0 0.0
  %2425 = vmatprep.subr.mxu0 0.0
  %2426 = vmatpush1.msra.mxu0 0.0
  %2427 = vmatprep.subr.mxu0 0.0
  %2428 = vmatpush1.msra.mxu0 0.0
  %2429 = vmatprep.subr.mxu0 0.0
  %2430 = vmatpush1.msra.mxu0 0.0
  %2431 = vmatprep.subr.mxu0 0.0
  %2432 = vmatpush1.msra.mxu0 0.0
  %2433 = vmatprep.subr.mxu0 0.0
  %2434 = vmatpush1.msra.mxu0 0.0
  %2435 = vmatprep.subr.mxu0 0.0
  %2436 = vmatpush1.msra.mxu0 0.0
  %2437 = vmatprep.mubr.f32.mxu0 0.0
  %v2438 = vand.u32 %v486, 4294901760
  %2439 = vmatmul.mubr.f32.gmra.mrb[0].mxu0 %v2438
  %v2440 = vpop.f32.mrb[0].mxu0
  %v2441 = vadd.f32 %v2318, %v2440
  %v2442 = vpop.f32.mrb[0].mxu0
  %v2443 = vadd.f32 %v2320, %v2442
  %2444 = vmatprep.mubr.f32.mxu0 0.0
  %v2445 = vand.u32 %v489, 4294901760
  %2446 = vmatmul.mubr.f32.gmra.mrb[0].mxu0 %v2445
  %v2447 = vpop.f32.mrb[0].mxu0
  %v2448 = vadd.f32 %v2327, %v2447
  %v2449 = vpop.f32.mrb[0].mxu0
  %v2450 = vadd.f32 %v2329, %v2449
  %2451 = vmatprep.mubr.f32.mxu0 0.0
  %v2452 = vand.u32 %v492, 4294901760
  %2453 = vmatmul.mubr.f32.gmra.mrb[0].mxu0 %v2452
  %v2454 = vpop.f32.mrb[0].mxu0
  %v2455 = vadd.f32 %v2336, %v2454
  %v2456 = vpop.f32.mrb[0].mxu0
  %v2457 = vadd.f32 %v2338, %v2456
  %2458 = vmatprep.mubr.f32.mxu0 0.0
  %v2459 = vand.u32 %v495, 4294901760
  %2460 = vmatmul.mubr.f32.gmra.mrb[0].mxu0 %v2459
  %v2461 = vpop.f32.mrb[0].mxu0
  %v2462 = vadd.f32 %v2345, %v2461
  %v2463 = vpop.f32.mrb[0].mxu0
  %v2464 = vadd.f32 %v2347, %v2463
  %2465 = vdwg.mxu0
  %v2466 = vand.u32 %v380, 4294901760
  %2467 = vmatprep.subr.mxu0 %v2466
  %v2468 = vand.u32 %v340, 4294901760
  %2469 = vmatpush1.msra.mxu0 %v2468
  %v2470 = vand.u32 %v381, 4294901760
  %2471 = vmatprep.subr.mxu0 %v2470
  %v2472 = vand.u32 %v341, 4294901760
  %2473 = vmatpush1.msra.mxu0 %v2472
  %v2474 = vand.u32 %v382, 4294901760
  %2475 = vmatprep.subr.mxu0 %v2474
  %v2476 = vand.u32 %v342, 4294901760
  %2477 = vmatpush1.msra.mxu0 %v2476
  %v2478 = vand.u32 %v383, 4294901760
  %2479 = vmatprep.subr.mxu0 %v2478
  %v2480 = vand.u32 %v343, 4294901760
  %2481 = vmatpush1.msra.mxu0 %v2480
  %2482 = vmatprep.subr.mxu0 0.0
  %2483 = vmatpush1.msra.mxu0 0.0
  %2484 = vmatprep.subr.mxu0 0.0
  %2485 = vmatpush1.msra.mxu0 0.0
  %2486 = vmatprep.subr.mxu0 0.0
  %2487 = vmatpush1.msra.mxu0 0.0
  %2488 = vmatprep.subr.mxu0 0.0
  %2489 = vmatpush1.msra.mxu0 0.0
  %2490 = vmatprep.subr.mxu0 0.0
  %2491 = vmatpush1.msra.mxu0 0.0
  %2492 = vmatprep.subr.mxu0 0.0
  %2493 = vmatpush1.msra.mxu0 0.0
  %2494 = vmatprep.subr.mxu0 0.0
  %2495 = vmatpush1.msra.mxu0 0.0
  %2496 = vmatprep.subr.mxu0 0.0
  %2497 = vmatpush1.msra.mxu0 0.0
  %2498 = vmatprep.subr.mxu0 0.0
  %2499 = vmatpush1.msra.mxu0 0.0
  %2500 = vmatprep.subr.mxu0 0.0
  %2501 = vmatpush1.msra.mxu0 0.0
  %2502 = vmatprep.subr.mxu0 0.0
  %2503 = vmatpush1.msra.mxu0 0.0
  %2504 = vmatprep.subr.mxu0 0.0
  %2505 = vmatpush1.msra.mxu0 0.0
  %2506 = vmatprep.subr.mxu0 0.0
  %2507 = vmatpush1.msra.mxu0 0.0
  %2508 = vmatprep.subr.mxu0 0.0
  %2509 = vmatpush1.msra.mxu0 0.0
  %2510 = vmatprep.subr.mxu0 0.0
  %2511 = vmatpush1.msra.mxu0 0.0
  %2512 = vmatprep.subr.mxu0 0.0
  %2513 = vmatpush1.msra.mxu0 0.0
  %2514 = vmatprep.subr.mxu0 0.0
  %2515 = vmatpush1.msra.mxu0 0.0
  %2516 = vmatprep.subr.mxu0 0.0
  %2517 = vmatpush1.msra.mxu0 0.0
  %2518 = vmatprep.subr.mxu0 0.0
  %2519 = vmatpush1.msra.mxu0 0.0
  %2520 = vmatprep.subr.mxu0 0.0
  %2521 = vmatpush1.msra.mxu0 0.0
  %2522 = vmatprep.subr.mxu0 0.0
  %2523 = vmatpush1.msra.mxu0 0.0
  %2524 = vmatprep.subr.mxu0 0.0
  %2525 = vmatpush1.msra.mxu0 0.0
  %2526 = vmatprep.subr.mxu0 0.0
  %2527 = vmatpush1.msra.mxu0 0.0
  %2528 = vmatprep.subr.mxu0 0.0
  %2529 = vmatpush1.msra.mxu0 0.0
  %2530 = vmatprep.subr.mxu0 0.0
  %2531 = vmatpush1.msra.mxu0 0.0
  %2532 = vmatprep.subr.mxu0 0.0
  %2533 = vmatpush1.msra.mxu0 0.0
  %2534 = vmatprep.subr.mxu0 0.0
  %2535 = vmatpush1.msra.mxu0 0.0
  %2536 = vmatprep.subr.mxu0 0.0
  %2537 = vmatpush1.msra.mxu0 0.0
  %2538 = vmatprep.mubr.f32.mxu0 0.0
  %v2539 = vand.u32 %v486, 4294901760
  %2540 = vmatmul.mubr.f32.gmra.mrb[0].mxu0 %v2539
  %v2541 = vpop.f32.mrb[0].mxu0
  %v2542 = vadd.f32 %v2441, %v2541
  %v2543 = vpop.f32.mrb[0].mxu0
  %v2544 = vadd.f32 %v2443, %v2543
  %2545 = vmatprep.mubr.f32.mxu0 0.0
  %v2546 = vand.u32 %v489, 4294901760
  %2547 = vmatmul.mubr.f32.gmra.mrb[0].mxu0 %v2546
  %v2548 = vpop.f32.mrb[0].mxu0
  %v2549 = vadd.f32 %v2448, %v2548
  %v2550 = vpop.f32.mrb[0].mxu0
  %v2551 = vadd.f32 %v2450, %v2550
  %2552 = vmatprep.mubr.f32.mxu0 0.0
  %v2553 = vand.u32 %v492, 4294901760
  %2554 = vmatmul.mubr.f32.gmra.mrb[0].mxu0 %v2553
  %v2555 = vpop.f32.mrb[0].mxu0
  %v2556 = vadd.f32 %v2455, %v2555
  %v2557 = vpop.f32.mrb[0].mxu0
  %v2558 = vadd.f32 %v2457, %v2557
  %2559 = vmatprep.mubr.f32.mxu0 0.0
  %v2560 = vand.u32 %v495, 4294901760
  %2561 = vmatmul.mubr.f32.gmra.mrb[0].mxu0 %v2560
  %v2562 = vpop.f32.mrb[0].mxu0
  %v2563 = vadd.f32 %v2462, %v2562
  %v2564 = vpop.f32.mrb[0].mxu0
  %v2565 = vadd.f32 %v2464, %v2564
  %2566 = vdwg.mxu0
  %v2567 = vand.u32 %v460, 4294901760
  %2568 = vmatprep.subr.mxu0 %v2567
  %v2569 = vand.u32 %v420, 4294901760
  %2570 = vmatpush1.msra.mxu0 %v2569
  %v2571 = vand.u32 %v461, 4294901760
  %2572 = vmatprep.subr.mxu0 %v2571
  %v2573 = vand.u32 %v421, 4294901760
  %2574 = vmatpush1.msra.mxu0 %v2573
  %v2575 = vand.u32 %v462, 4294901760
  %2576 = vmatprep.subr.mxu0 %v2575
  %v2577 = vand.u32 %v422, 4294901760
  %2578 = vmatpush1.msra.mxu0 %v2577
  %v2579 = vand.u32 %v463, 4294901760
  %2580 = vmatprep.subr.mxu0 %v2579
  %v2581 = vand.u32 %v423, 4294901760
  %2582 = vmatpush1.msra.mxu0 %v2581
  %2583 = vmatprep.subr.mxu0 0.0
  %2584 = vmatpush1.msra.mxu0 0.0
  %2585 = vmatprep.subr.mxu0 0.0
  %2586 = vmatpush1.msra.mxu0 0.0
  %2587 = vmatprep.subr.mxu0 0.0
  %2588 = vmatpush1.msra.mxu0 0.0
  %2589 = vmatprep.subr.mxu0 0.0
  %2590 = vmatpush1.msra.mxu0 0.0
  %2591 = vmatprep.subr.mxu0 0.0
  %2592 = vmatpush1.msra.mxu0 0.0
  %2593 = vmatprep.subr.mxu0 0.0
  %2594 = vmatpush1.msra.mxu0 0.0
  %2595 = vmatprep.subr.mxu0 0.0
  %2596 = vmatpush1.msra.mxu0 0.0
  %2597 = vmatprep.subr.mxu0 0.0
  %2598 = vmatpush1.msra.mxu0 0.0
  %2599 = vmatprep.subr.mxu0 0.0
  %2600 = vmatpush1.msra.mxu0 0.0
  %2601 = vmatprep.subr.mxu0 0.0
  %2602 = vmatpush1.msra.mxu0 0.0
  %2603 = vmatprep.subr.mxu0 0.0
  %2604 = vmatpush1.msra.mxu0 0.0
  %2605 = vmatprep.subr.mxu0 0.0
  %2606 = vmatpush1.msra.mxu0 0.0
  %2607 = vmatprep.subr.mxu0 0.0
  %2608 = vmatpush1.msra.mxu0 0.0
  %2609 = vmatprep.subr.mxu0 0.0
  %2610 = vmatpush1.msra.mxu0 0.0
  %2611 = vmatprep.subr.mxu0 0.0
  %2612 = vmatpush1.msra.mxu0 0.0
  %2613 = vmatprep.subr.mxu0 0.0
  %2614 = vmatpush1.msra.mxu0 0.0
  %2615 = vmatprep.subr.mxu0 0.0
  %2616 = vmatpush1.msra.mxu0 0.0
  %2617 = vmatprep.subr.mxu0 0.0
  %2618 = vmatpush1.msra.mxu0 0.0
  %2619 = vmatprep.subr.mxu0 0.0
  %2620 = vmatpush1.msra.mxu0 0.0
  %2621 = vmatprep.subr.mxu0 0.0
  %2622 = vmatpush1.msra.mxu0 0.0
  %2623 = vmatprep.subr.mxu0 0.0
  %2624 = vmatpush1.msra.mxu0 0.0
  %2625 = vmatprep.subr.mxu0 0.0
  %2626 = vmatpush1.msra.mxu0 0.0
  %2627 = vmatprep.subr.mxu0 0.0
  %2628 = vmatpush1.msra.mxu0 0.0
  %2629 = vmatprep.subr.mxu0 0.0
  %2630 = vmatpush1.msra.mxu0 0.0
  %2631 = vmatprep.subr.mxu0 0.0
  %2632 = vmatpush1.msra.mxu0 0.0
  %2633 = vmatprep.subr.mxu0 0.0
  %2634 = vmatpush1.msra.mxu0 0.0
  %2635 = vmatprep.subr.mxu0 0.0
  %2636 = vmatpush1.msra.mxu0 0.0
  %2637 = vmatprep.subr.mxu0 0.0
  %2638 = vmatpush1.msra.mxu0 0.0
  %2639 = vmatprep.mubr.f32.mxu0 0.0
  %v2640 = vand.u32 %v486, 4294901760
  %v2641 = vsub.f32 %v486, %v2640
  %v2642 = vand.u32 %v2641, 4294901760
  %v2643 = vsub.f32 %v2641, %v2642
  %v2644 = vand.u32 %v2643, 4294901760
  %2645 = vmatmul.mubr.f32.gmra.mrb[0].mxu0 %v2644
  %v2646 = vpop.f32.mrb[0].mxu0
  %v2647 = vadd.f32 %v467, %v2646
  %v2648 = vpop.f32.mrb[0].mxu0
  %v2649 = vadd.f32 %v467, %v2648
  %2650 = vmatprep.mubr.f32.mxu0 0.0
  %v2651 = vand.u32 %v489, 4294901760
  %v2652 = vsub.f32 %v489, %v2651
  %v2653 = vand.u32 %v2652, 4294901760
  %v2654 = vsub.f32 %v2652, %v2653
  %v2655 = vand.u32 %v2654, 4294901760
  %2656 = vmatmul.mubr.f32.gmra.mrb[0].mxu0 %v2655
  %v2657 = vpop.f32.mrb[0].mxu0
  %v2658 = vadd.f32 %v472, %v2657
  %v2659 = vpop.f32.mrb[0].mxu0
  %v2660 = vadd.f32 %v472, %v2659
  %2661 = vmatprep.mubr.f32.mxu0 0.0
  %v2662 = vand.u32 %v492, 4294901760
  %v2663 = vsub.f32 %v492, %v2662
  %v2664 = vand.u32 %v2663, 4294901760
  %v2665 = vsub.f32 %v2663, %v2664
  %v2666 = vand.u32 %v2665, 4294901760
  %2667 = vmatmul.mubr.f32.gmra.mrb[0].mxu0 %v2666
  %v2668 = vpop.f32.mrb[0].mxu0
  %v2669 = vadd.f32 %v477, %v2668
  %v2670 = vpop.f32.mrb[0].mxu0
  %v2671 = vadd.f32 %v477, %v2670
  %2672 = vmatprep.mubr.f32.mxu0 0.0
  %v2673 = vand.u32 %v495, 4294901760
  %v2674 = vsub.f32 %v495, %v2673
  %v2675 = vand.u32 %v2674, 4294901760
  %v2676 = vsub.f32 %v2674, %v2675
  %v2677 = vand.u32 %v2676, 4294901760
  %2678 = vmatmul.mubr.f32.gmra.mrb[0].mxu0 %v2677
  %v2679 = vpop.f32.mrb[0].mxu0
  %v2680 = vadd.f32 %v482, %v2679
  %v2681 = vpop.f32.mrb[0].mxu0
  %v2682 = vadd.f32 %v482, %v2681
  %2683 = vdwg.mxu0
  %v2684 = vand.u32 %v460, 4294901760
  %v2685 = vsub.f32 %v460, %v2684
  %v2686 = vand.u32 %v2685, 4294901760
  %v2687 = vsub.f32 %v2685, %v2686
  %v2688 = vand.u32 %v2687, 4294901760
  %2689 = vmatprep.subr.mxu0 %v2688
  %v2690 = vand.u32 %v420, 4294901760
  %v2691 = vsub.f32 %v420, %v2690
  %v2692 = vand.u32 %v2691, 4294901760
  %v2693 = vsub.f32 %v2691, %v2692
  %v2694 = vand.u32 %v2693, 4294901760
  %2695 = vmatpush1.msra.mxu0 %v2694
  %v2696 = vand.u32 %v461, 4294901760
  %v2697 = vsub.f32 %v461, %v2696
  %v2698 = vand.u32 %v2697, 4294901760
  %v2699 = vsub.f32 %v2697, %v2698
  %v2700 = vand.u32 %v2699, 4294901760
  %2701 = vmatprep.subr.mxu0 %v2700
  %v2702 = vand.u32 %v421, 4294901760
  %v2703 = vsub.f32 %v421, %v2702
  %v2704 = vand.u32 %v2703, 4294901760
  %v2705 = vsub.f32 %v2703, %v2704
  %v2706 = vand.u32 %v2705, 4294901760
  %2707 = vmatpush1.msra.mxu0 %v2706
  %v2708 = vand.u32 %v462, 4294901760
  %v2709 = vsub.f32 %v462, %v2708
  %v2710 = vand.u32 %v2709, 4294901760
  %v2711 = vsub.f32 %v2709, %v2710
  %v2712 = vand.u32 %v2711, 4294901760
  %2713 = vmatprep.subr.mxu0 %v2712
  %v2714 = vand.u32 %v422, 4294901760
  %v2715 = vsub.f32 %v422, %v2714
  %v2716 = vand.u32 %v2715, 4294901760
  %v2717 = vsub.f32 %v2715, %v2716
  %v2718 = vand.u32 %v2717, 4294901760
  %2719 = vmatpush1.msra.mxu0 %v2718
  %v2720 = vand.u32 %v463, 4294901760
  %v2721 = vsub.f32 %v463, %v2720
  %v2722 = vand.u32 %v2721, 4294901760
  %v2723 = vsub.f32 %v2721, %v2722
  %v2724 = vand.u32 %v2723, 4294901760
  %2725 = vmatprep.subr.mxu0 %v2724
  %v2726 = vand.u32 %v423, 4294901760
  %v2727 = vsub.f32 %v423, %v2726
  %v2728 = vand.u32 %v2727, 4294901760
  %v2729 = vsub.f32 %v2727, %v2728
  %v2730 = vand.u32 %v2729, 4294901760
  %2731 = vmatpush1.msra.mxu0 %v2730
  %2732 = vmatprep.subr.mxu0 0.0
  %2733 = vmatpush1.msra.mxu0 0.0
  %2734 = vmatprep.subr.mxu0 0.0
  %2735 = vmatpush1.msra.mxu0 0.0
  %2736 = vmatprep.subr.mxu0 0.0
  %2737 = vmatpush1.msra.mxu0 0.0
  %2738 = vmatprep.subr.mxu0 0.0
  %2739 = vmatpush1.msra.mxu0 0.0
  %2740 = vmatprep.subr.mxu0 0.0
  %2741 = vmatpush1.msra.mxu0 0.0
  %2742 = vmatprep.subr.mxu0 0.0
  %2743 = vmatpush1.msra.mxu0 0.0
  %2744 = vmatprep.subr.mxu0 0.0
  %2745 = vmatpush1.msra.mxu0 0.0
  %2746 = vmatprep.subr.mxu0 0.0
  %2747 = vmatpush1.msra.mxu0 0.0
  %2748 = vmatprep.subr.mxu0 0.0
  %2749 = vmatpush1.msra.mxu0 0.0
  %2750 = vmatprep.subr.mxu0 0.0
  %2751 = vmatpush1.msra.mxu0 0.0
  %2752 = vmatprep.subr.mxu0 0.0
  %2753 = vmatpush1.msra.mxu0 0.0
  %2754 = vmatprep.subr.mxu0 0.0
  %2755 = vmatpush1.msra.mxu0 0.0
  %2756 = vmatprep.subr.mxu0 0.0
  %2757 = vmatpush1.msra.mxu0 0.0
  %2758 = vmatprep.subr.mxu0 0.0
  %2759 = vmatpush1.msra.mxu0 0.0
  %2760 = vmatprep.subr.mxu0 0.0
  %2761 = vmatpush1.msra.mxu0 0.0
  %2762 = vmatprep.subr.mxu0 0.0
  %2763 = vmatpush1.msra.mxu0 0.0
  %2764 = vmatprep.subr.mxu0 0.0
  %2765 = vmatpush1.msra.mxu0 0.0
  %2766 = vmatprep.subr.mxu0 0.0
  %2767 = vmatpush1.msra.mxu0 0.0
  %2768 = vmatprep.subr.mxu0 0.0
  %2769 = vmatpush1.msra.mxu0 0.0
  %2770 = vmatprep.subr.mxu0 0.0
  %2771 = vmatpush1.msra.mxu0 0.0
  %2772 = vmatprep.subr.mxu0 0.0
  %2773 = vmatpush1.msra.mxu0 0.0
  %2774 = vmatprep.subr.mxu0 0.0
  %2775 = vmatpush1.msra.mxu0 0.0
  %2776 = vmatprep.subr.mxu0 0.0
  %2777 = vmatpush1.msra.mxu0 0.0
  %2778 = vmatprep.subr.mxu0 0.0
  %2779 = vmatpush1.msra.mxu0 0.0
  %2780 = vmatprep.subr.mxu0 0.0
  %2781 = vmatpush1.msra.mxu0 0.0
  %2782 = vmatprep.subr.mxu0 0.0
  %2783 = vmatpush1.msra.mxu0 0.0
  %2784 = vmatprep.subr.mxu0 0.0
  %2785 = vmatpush1.msra.mxu0 0.0
  %2786 = vmatprep.subr.mxu0 0.0
  %2787 = vmatpush1.msra.mxu0 0.0
  %2788 = vmatprep.mubr.f32.mxu0 0.0
  %v2789 = vand.u32 %v486, 4294901760
  %2790 = vmatmul.mubr.f32.gmra.mrb[0].mxu0 %v2789
  %v2791 = vpop.f32.mrb[0].mxu0
  %v2792 = vadd.f32 %v2647, %v2791
  %v2793 = vpop.f32.mrb[0].mxu0
  %v2794 = vadd.f32 %v2649, %v2793
  %2795 = vmatprep.mubr.f32.mxu0 0.0
  %v2796 = vand.u32 %v489, 4294901760
  %2797 = vmatmul.mubr.f32.gmra.mrb[0].mxu0 %v2796
  %v2798 = vpop.f32.mrb[0].mxu0
  %v2799 = vadd.f32 %v2658, %v2798
  %v2800 = vpop.f32.mrb[0].mxu0
  %v2801 = vadd.f32 %v2660, %v2800
  %2802 = vmatprep.mubr.f32.mxu0 0.0
  %v2803 = vand.u32 %v492, 4294901760
  %2804 = vmatmul.mubr.f32.gmra.mrb[0].mxu0 %v2803
  %v2805 = vpop.f32.mrb[0].mxu0
  %v2806 = vadd.f32 %v2669, %v2805
  %v2807 = vpop.f32.mrb[0].mxu0
  %v2808 = vadd.f32 %v2671, %v2807
  %2809 = vmatprep.mubr.f32.mxu0 0.0
  %v2810 = vand.u32 %v495, 4294901760
  %2811 = vmatmul.mubr.f32.gmra.mrb[0].mxu0 %v2810
  %v2812 = vpop.f32.mrb[0].mxu0
  %v2813 = vadd.f32 %v2680, %v2812
  %v2814 = vpop.f32.mrb[0].mxu0
  %v2815 = vadd.f32 %v2682, %v2814
  %2816 = vdwg.mxu0
  %v2817 = vand.u32 %v460, 4294901760
  %v2818 = vsub.f32 %v460, %v2817
  %2819 = vmatprep.subr.mxu0 %v2818
  %v2820 = vand.u32 %v420, 4294901760
  %v2821 = vsub.f32 %v420, %v2820
  %2822 = vmatpush1.msra.mxu0 %v2821
  %v2823 = vand.u32 %v461, 4294901760
  %v2824 = vsub.f32 %v461, %v2823
  %2825 = vmatprep.subr.mxu0 %v2824
  %v2826 = vand.u32 %v421, 4294901760
  %v2827 = vsub.f32 %v421, %v2826
  %2828 = vmatpush1.msra.mxu0 %v2827
  %v2829 = vand.u32 %v462, 4294901760
  %v2830 = vsub.f32 %v462, %v2829
  %2831 = vmatprep.subr.mxu0 %v2830
  %v2832 = vand.u32 %v422, 4294901760
  %v2833 = vsub.f32 %v422, %v2832
  %2834 = vmatpush1.msra.mxu0 %v2833
  %v2835 = vand.u32 %v463, 4294901760
  %v2836 = vsub.f32 %v463, %v2835
  %2837 = vmatprep.subr.mxu0 %v2836
  %v2838 = vand.u32 %v423, 4294901760
  %v2839 = vsub.f32 %v423, %v2838
  %2840 = vmatpush1.msra.mxu0 %v2839
  %2841 = vmatprep.subr.mxu0 0.0
  %2842 = vmatpush1.msra.mxu0 0.0
  %2843 = vmatprep.subr.mxu0 0.0
  %2844 = vmatpush1.msra.mxu0 0.0
  %2845 = vmatprep.subr.mxu0 0.0
  %2846 = vmatpush1.msra.mxu0 0.0
  %2847 = vmatprep.subr.mxu0 0.0
  %2848 = vmatpush1.msra.mxu0 0.0
  %2849 = vmatprep.subr.mxu0 0.0
  %2850 = vmatpush1.msra.mxu0 0.0
  %2851 = vmatprep.subr.mxu0 0.0
  %2852 = vmatpush1.msra.mxu0 0.0
  %2853 = vmatprep.subr.mxu0 0.0
  %2854 = vmatpush1.msra.mxu0 0.0
  %2855 = vmatprep.subr.mxu0 0.0
  %2856 = vmatpush1.msra.mxu0 0.0
  %2857 = vmatprep.subr.mxu0 0.0
  %2858 = vmatpush1.msra.mxu0 0.0
  %2859 = vmatprep.subr.mxu0 0.0
  %2860 = vmatpush1.msra.mxu0 0.0
  %2861 = vmatprep.subr.mxu0 0.0
  %2862 = vmatpush1.msra.mxu0 0.0
  %2863 = vmatprep.subr.mxu0 0.0
  %2864 = vmatpush1.msra.mxu0 0.0
  %2865 = vmatprep.subr.mxu0 0.0
  %2866 = vmatpush1.msra.mxu0 0.0
  %2867 = vmatprep.subr.mxu0 0.0
  %2868 = vmatpush1.msra.mxu0 0.0
  %2869 = vmatprep.subr.mxu0 0.0
  %2870 = vmatpush1.msra.mxu0 0.0
  %2871 = vmatprep.subr.mxu0 0.0
  %2872 = vmatpush1.msra.mxu0 0.0
  %2873 = vmatprep.subr.mxu0 0.0
  %2874 = vmatpush1.msra.mxu0 0.0
  %2875 = vmatprep.subr.mxu0 0.0
  %2876 = vmatpush1.msra.mxu0 0.0
  %2877 = vmatprep.subr.mxu0 0.0
  %2878 = vmatpush1.msra.mxu0 0.0
  %2879 = vmatprep.subr.mxu0 0.0
  %2880 = vmatpush1.msra.mxu0 0.0
  %2881 = vmatprep.subr.mxu0 0.0
  %2882 = vmatpush1.msra.mxu0 0.0
  %2883 = vmatprep.subr.mxu0 0.0
  %2884 = vmatpush1.msra.mxu0 0.0
  %2885 = vmatprep.subr.mxu0 0.0
  %2886 = vmatpush1.msra.mxu0 0.0
  %2887 = vmatprep.subr.mxu0 0.0
  %2888 = vmatpush1.msra.mxu0 0.0
  %2889 = vmatprep.subr.mxu0 0.0
  %2890 = vmatpush1.msra.mxu0 0.0
  %2891 = vmatprep.subr.mxu0 0.0
  %2892 = vmatpush1.msra.mxu0 0.0
  %2893 = vmatprep.subr.mxu0 0.0
  %2894 = vmatpush1.msra.mxu0 0.0
  %2895 = vmatprep.subr.mxu0 0.0
  %2896 = vmatpush1.msra.mxu0 0.0
  %2897 = vmatprep.mubr.f32.mxu0 0.0
  %v2898 = vand.u32 %v486, 4294901760
  %v2899 = vsub.f32 %v486, %v2898
  %2900 = vmatmul.mubr.f32.gmra.mrb[0].mxu0 %v2899
  %v2901 = vpop.f32.mrb[0].mxu0
  %v2902 = vadd.f32 %v2792, %v2901
  %v2903 = vpop.f32.mrb[0].mxu0
  %v2904 = vadd.f32 %v2794, %v2903
  %2905 = vmatprep.mubr.f32.mxu0 0.0
  %v2906 = vand.u32 %v489, 4294901760
  %v2907 = vsub.f32 %v489, %v2906
  %2908 = vmatmul.mubr.f32.gmra.mrb[0].mxu0 %v2907
  %v2909 = vpop.f32.mrb[0].mxu0
  %v2910 = vadd.f32 %v2799, %v2909
  %v2911 = vpop.f32.mrb[0].mxu0
  %v2912 = vadd.f32 %v2801, %v2911
  %2913 = vmatprep.mubr.f32.mxu0 0.0
  %v2914 = vand.u32 %v492, 4294901760
  %v2915 = vsub.f32 %v492, %v2914
  %2916 = vmatmul.mubr.f32.gmra.mrb[0].mxu0 %v2915
  %v2917 = vpop.f32.mrb[0].mxu0
  %v2918 = vadd.f32 %v2806, %v2917
  %v2919 = vpop.f32.mrb[0].mxu0
  %v2920 = vadd.f32 %v2808, %v2919
  %2921 = vmatprep.mubr.f32.mxu0 0.0
  %v2922 = vand.u32 %v495, 4294901760
  %v2923 = vsub.f32 %v495, %v2922
  %2924 = vmatmul.mubr.f32.gmra.mrb[0].mxu0 %v2923
  %v2925 = vpop.f32.mrb[0].mxu0
  %v2926 = vadd.f32 %v2813, %v2925
  %v2927 = vpop.f32.mrb[0].mxu0
  %v2928 = vadd.f32 %v2815, %v2927
  %2929 = vdwg.mxu0
  %v2930 = vand.u32 %v460, 4294901760
  %2931 = vmatprep.subr.mxu0 %v2930
  %v2932 = vand.u32 %v420, 4294901760
  %2933 = vmatpush1.msra.mxu0 %v2932
  %v2934 = vand.u32 %v461, 4294901760
  %2935 = vmatprep.subr.mxu0 %v2934
  %v2936 = vand.u32 %v421, 4294901760
  %2937 = vmatpush1.msra.mxu0 %v2936
  %v2938 = vand.u32 %v462, 4294901760
  %2939 = vmatprep.subr.mxu0 %v2938
  %v2940 = vand.u32 %v422, 4294901760
  %2941 = vmatpush1.msra.mxu0 %v2940
  %v2942 = vand.u32 %v463, 4294901760
  %2943 = vmatprep.subr.mxu0 %v2942
  %v2944 = vand.u32 %v423, 4294901760
  %2945 = vmatpush1.msra.mxu0 %v2944
  %2946 = vmatprep.subr.mxu0 0.0
  %2947 = vmatpush1.msra.mxu0 0.0
  %2948 = vmatprep.subr.mxu0 0.0
  %2949 = vmatpush1.msra.mxu0 0.0
  %2950 = vmatprep.subr.mxu0 0.0
  %2951 = vmatpush1.msra.mxu0 0.0
  %2952 = vmatprep.subr.mxu0 0.0
  %2953 = vmatpush1.msra.mxu0 0.0
  %2954 = vmatprep.subr.mxu0 0.0
  %2955 = vmatpush1.msra.mxu0 0.0
  %2956 = vmatprep.subr.mxu0 0.0
  %2957 = vmatpush1.msra.mxu0 0.0
  %2958 = vmatprep.subr.mxu0 0.0
  %2959 = vmatpush1.msra.mxu0 0.0
  %2960 = vmatprep.subr.mxu0 0.0
  %2961 = vmatpush1.msra.mxu0 0.0
  %2962 = vmatprep.subr.mxu0 0.0
  %2963 = vmatpush1.msra.mxu0 0.0
  %2964 = vmatprep.subr.mxu0 0.0
  %2965 = vmatpush1.msra.mxu0 0.0
  %2966 = vmatprep.subr.mxu0 0.0
  %2967 = vmatpush1.msra.mxu0 0.0
  %2968 = vmatprep.subr.mxu0 0.0
  %2969 = vmatpush1.msra.mxu0 0.0
  %2970 = vmatprep.subr.mxu0 0.0
  %2971 = vmatpush1.msra.mxu0 0.0
  %2972 = vmatprep.subr.mxu0 0.0
  %2973 = vmatpush1.msra.mxu0 0.0
  %2974 = vmatprep.subr.mxu0 0.0
  %2975 = vmatpush1.msra.mxu0 0.0
  %2976 = vmatprep.subr.mxu0 0.0
  %2977 = vmatpush1.msra.mxu0 0.0
  %2978 = vmatprep.subr.mxu0 0.0
  %2979 = vmatpush1.msra.mxu0 0.0
  %2980 = vmatprep.subr.mxu0 0.0
  %2981 = vmatpush1.msra.mxu0 0.0
  %2982 = vmatprep.subr.mxu0 0.0
  %2983 = vmatpush1.msra.mxu0 0.0
  %2984 = vmatprep.subr.mxu0 0.0
  %2985 = vmatpush1.msra.mxu0 0.0
  %2986 = vmatprep.subr.mxu0 0.0
  %2987 = vmatpush1.msra.mxu0 0.0
  %2988 = vmatprep.subr.mxu0 0.0
  %2989 = vmatpush1.msra.mxu0 0.0
  %2990 = vmatprep.subr.mxu0 0.0
  %2991 = vmatpush1.msra.mxu0 0.0
  %2992 = vmatprep.subr.mxu0 0.0
  %2993 = vmatpush1.msra.mxu0 0.0
  %2994 = vmatprep.subr.mxu0 0.0
  %2995 = vmatpush1.msra.mxu0 0.0
  %2996 = vmatprep.subr.mxu0 0.0
  %2997 = vmatpush1.msra.mxu0 0.0
  %2998 = vmatprep.subr.mxu0 0.0
  %2999 = vmatpush1.msra.mxu0 0.0
  %3000 = vmatprep.subr.mxu0 0.0
  %3001 = vmatpush1.msra.mxu0 0.0
  %3002 = vmatprep.mubr.f32.mxu0 0.0
  %v3003 = vand.u32 %v486, 4294901760
  %v3004 = vsub.f32 %v486, %v3003
  %v3005 = vand.u32 %v3004, 4294901760
  %3006 = vmatmul.mubr.f32.gmra.mrb[0].mxu0 %v3005
  %v3007 = vpop.f32.mrb[0].mxu0
  %v3008 = vadd.f32 %v2902, %v3007
  %v3009 = vpop.f32.mrb[0].mxu0
  %v3010 = vadd.f32 %v2904, %v3009
  %3011 = vmatprep.mubr.f32.mxu0 0.0
  %v3012 = vand.u32 %v489, 4294901760
  %v3013 = vsub.f32 %v489, %v3012
  %v3014 = vand.u32 %v3013, 4294901760
  %3015 = vmatmul.mubr.f32.gmra.mrb[0].mxu0 %v3014
  %v3016 = vpop.f32.mrb[0].mxu0
  %v3017 = vadd.f32 %v2910, %v3016
  %v3018 = vpop.f32.mrb[0].mxu0
  %v3019 = vadd.f32 %v2912, %v3018
  %3020 = vmatprep.mubr.f32.mxu0 0.0
  %v3021 = vand.u32 %v492, 4294901760
  %v3022 = vsub.f32 %v492, %v3021
  %v3023 = vand.u32 %v3022, 4294901760
  %3024 = vmatmul.mubr.f32.gmra.mrb[0].mxu0 %v3023
  %v3025 = vpop.f32.mrb[0].mxu0
  %v3026 = vadd.f32 %v2918, %v3025
  %v3027 = vpop.f32.mrb[0].mxu0
  %v3028 = vadd.f32 %v2920, %v3027
  %3029 = vmatprep.mubr.f32.mxu0 0.0
  %v3030 = vand.u32 %v495, 4294901760
  %v3031 = vsub.f32 %v495, %v3030
  %v3032 = vand.u32 %v3031, 4294901760
  %3033 = vmatmul.mubr.f32.gmra.mrb[0].mxu0 %v3032
  %v3034 = vpop.f32.mrb[0].mxu0
  %v3035 = vadd.f32 %v2926, %v3034
  %v3036 = vpop.f32.mrb[0].mxu0
  %v3037 = vadd.f32 %v2928, %v3036
  %3038 = vdwg.mxu0
  %v3039 = vand.u32 %v460, 4294901760
  %v3040 = vsub.f32 %v460, %v3039
  %v3041 = vand.u32 %v3040, 4294901760
  %3042 = vmatprep.subr.mxu0 %v3041
  %v3043 = vand.u32 %v420, 4294901760
  %v3044 = vsub.f32 %v420, %v3043
  %v3045 = vand.u32 %v3044, 4294901760
  %3046 = vmatpush1.msra.mxu0 %v3045
  %v3047 = vand.u32 %v461, 4294901760
  %v3048 = vsub.f32 %v461, %v3047
  %v3049 = vand.u32 %v3048, 4294901760
  %3050 = vmatprep.subr.mxu0 %v3049
  %v3051 = vand.u32 %v421, 4294901760
  %v3052 = vsub.f32 %v421, %v3051
  %v3053 = vand.u32 %v3052, 4294901760
  %3054 = vmatpush1.msra.mxu0 %v3053
  %v3055 = vand.u32 %v462, 4294901760
  %v3056 = vsub.f32 %v462, %v3055
  %v3057 = vand.u32 %v3056, 4294901760
  %3058 = vmatprep.subr.mxu0 %v3057
  %v3059 = vand.u32 %v422, 4294901760
  %v3060 = vsub.f32 %v422, %v3059
  %v3061 = vand.u32 %v3060, 4294901760
  %3062 = vmatpush1.msra.mxu0 %v3061
  %v3063 = vand.u32 %v463, 4294901760
  %v3064 = vsub.f32 %v463, %v3063
  %v3065 = vand.u32 %v3064, 4294901760
  %3066 = vmatprep.subr.mxu0 %v3065
  %v3067 = vand.u32 %v423, 4294901760
  %v3068 = vsub.f32 %v423, %v3067
  %v3069 = vand.u32 %v3068, 4294901760
  %3070 = vmatpush1.msra.mxu0 %v3069
  %3071 = vmatprep.subr.mxu0 0.0
  %3072 = vmatpush1.msra.mxu0 0.0
  %3073 = vmatprep.subr.mxu0 0.0
  %3074 = vmatpush1.msra.mxu0 0.0
  %3075 = vmatprep.subr.mxu0 0.0
  %3076 = vmatpush1.msra.mxu0 0.0
  %3077 = vmatprep.subr.mxu0 0.0
  %3078 = vmatpush1.msra.mxu0 0.0
  %3079 = vmatprep.subr.mxu0 0.0
  %3080 = vmatpush1.msra.mxu0 0.0
  %3081 = vmatprep.subr.mxu0 0.0
  %3082 = vmatpush1.msra.mxu0 0.0
  %3083 = vmatprep.subr.mxu0 0.0
  %3084 = vmatpush1.msra.mxu0 0.0
  %3085 = vmatprep.subr.mxu0 0.0
  %3086 = vmatpush1.msra.mxu0 0.0
  %3087 = vmatprep.subr.mxu0 0.0
  %3088 = vmatpush1.msra.mxu0 0.0
  %3089 = vmatprep.subr.mxu0 0.0
  %3090 = vmatpush1.msra.mxu0 0.0
  %3091 = vmatprep.subr.mxu0 0.0
  %3092 = vmatpush1.msra.mxu0 0.0
  %3093 = vmatprep.subr.mxu0 0.0
  %3094 = vmatpush1.msra.mxu0 0.0
  %3095 = vmatprep.subr.mxu0 0.0
  %3096 = vmatpush1.msra.mxu0 0.0
  %3097 = vmatprep.subr.mxu0 0.0
  %3098 = vmatpush1.msra.mxu0 0.0
  %3099 = vmatprep.subr.mxu0 0.0
  %3100 = vmatpush1.msra.mxu0 0.0
  %3101 = vmatprep.subr.mxu0 0.0
  %3102 = vmatpush1.msra.mxu0 0.0
  %3103 = vmatprep.subr.mxu0 0.0
  %3104 = vmatpush1.msra.mxu0 0.0
  %3105 = vmatprep.subr.mxu0 0.0
  %3106 = vmatpush1.msra.mxu0 0.0
  %3107 = vmatprep.subr.mxu0 0.0
  %3108 = vmatpush1.msra.mxu0 0.0
  %3109 = vmatprep.subr.mxu0 0.0
  %3110 = vmatpush1.msra.mxu0 0.0
  %3111 = vmatprep.subr.mxu0 0.0
  %3112 = vmatpush1.msra.mxu0 0.0
  %3113 = vmatprep.subr.mxu0 0.0
  %3114 = vmatpush1.msra.mxu0 0.0
  %3115 = vmatprep.subr.mxu0 0.0
  %3116 = vmatpush1.msra.mxu0 0.0
  %3117 = vmatprep.subr.mxu0 0.0
  %3118 = vmatpush1.msra.mxu0 0.0
  %3119 = vmatprep.subr.mxu0 0.0
  %3120 = vmatpush1.msra.mxu0 0.0
  %3121 = vmatprep.subr.mxu0 0.0
  %3122 = vmatpush1.msra.mxu0 0.0
  %3123 = vmatprep.subr.mxu0 0.0
  %3124 = vmatpush1.msra.mxu0 0.0
  %3125 = vmatprep.subr.mxu0 0.0
  %3126 = vmatpush1.msra.mxu0 0.0
  %3127 = vmatprep.mubr.f32.mxu0 0.0
  %v3128 = vand.u32 %v486, 4294901760
  %3129 = vmatmul.mubr.f32.gmra.mrb[0].mxu0 %v3128
  %v3130 = vpop.f32.mrb[0].mxu0
  %v3131 = vadd.f32 %v3008, %v3130
  %v3132 = vpop.f32.mrb[0].mxu0
  %v3133 = vadd.f32 %v3010, %v3132
  %3134 = vmatprep.mubr.f32.mxu0 0.0
  %v3135 = vand.u32 %v489, 4294901760
  %3136 = vmatmul.mubr.f32.gmra.mrb[0].mxu0 %v3135
  %v3137 = vpop.f32.mrb[0].mxu0
  %v3138 = vadd.f32 %v3017, %v3137
  %v3139 = vpop.f32.mrb[0].mxu0
  %v3140 = vadd.f32 %v3019, %v3139
  %3141 = vmatprep.mubr.f32.mxu0 0.0
  %v3142 = vand.u32 %v492, 4294901760
  %3143 = vmatmul.mubr.f32.gmra.mrb[0].mxu0 %v3142
  %v3144 = vpop.f32.mrb[0].mxu0
  %v3145 = vadd.f32 %v3026, %v3144
  %v3146 = vpop.f32.mrb[0].mxu0
  %v3147 = vadd.f32 %v3028, %v3146
  %3148 = vmatprep.mubr.f32.mxu0 0.0
  %v3149 = vand.u32 %v495, 4294901760
  %3150 = vmatmul.mubr.f32.gmra.mrb[0].mxu0 %v3149
  %v3151 = vpop.f32.mrb[0].mxu0
  %v3152 = vadd.f32 %v3035, %v3151
  %v3153 = vpop.f32.mrb[0].mxu0
  %v3154 = vadd.f32 %v3037, %v3153
  %3155 = vdwg.mxu0
  %v3156 = vand.u32 %v460, 4294901760
  %3157 = vmatprep.subr.mxu0 %v3156
  %v3158 = vand.u32 %v420, 4294901760
  %3159 = vmatpush1.msra.mxu0 %v3158
  %v3160 = vand.u32 %v461, 4294901760
  %3161 = vmatprep.subr.mxu0 %v3160
  %v3162 = vand.u32 %v421, 4294901760
  %3163 = vmatpush1.msra.mxu0 %v3162
  %v3164 = vand.u32 %v462, 4294901760
  %3165 = vmatprep.subr.mxu0 %v3164
  %v3166 = vand.u32 %v422, 4294901760
  %3167 = vmatpush1.msra.mxu0 %v3166
  %v3168 = vand.u32 %v463, 4294901760
  %3169 = vmatprep.subr.mxu0 %v3168
  %v3170 = vand.u32 %v423, 4294901760
  %3171 = vmatpush1.msra.mxu0 %v3170
  %3172 = vmatprep.subr.mxu0 0.0
  %3173 = vmatpush1.msra.mxu0 0.0
  %3174 = vmatprep.subr.mxu0 0.0
  %3175 = vmatpush1.msra.mxu0 0.0
  %3176 = vmatprep.subr.mxu0 0.0
  %3177 = vmatpush1.msra.mxu0 0.0
  %3178 = vmatprep.subr.mxu0 0.0
  %3179 = vmatpush1.msra.mxu0 0.0
  %3180 = vmatprep.subr.mxu0 0.0
  %3181 = vmatpush1.msra.mxu0 0.0
  %3182 = vmatprep.subr.mxu0 0.0
  %3183 = vmatpush1.msra.mxu0 0.0
  %3184 = vmatprep.subr.mxu0 0.0
  %3185 = vmatpush1.msra.mxu0 0.0
  %3186 = vmatprep.subr.mxu0 0.0
  %3187 = vmatpush1.msra.mxu0 0.0
  %3188 = vmatprep.subr.mxu0 0.0
  %3189 = vmatpush1.msra.mxu0 0.0
  %3190 = vmatprep.subr.mxu0 0.0
  %3191 = vmatpush1.msra.mxu0 0.0
  %3192 = vmatprep.subr.mxu0 0.0
  %3193 = vmatpush1.msra.mxu0 0.0
  %3194 = vmatprep.subr.mxu0 0.0
  %3195 = vmatpush1.msra.mxu0 0.0
  %3196 = vmatprep.subr.mxu0 0.0
  %3197 = vmatpush1.msra.mxu0 0.0
  %3198 = vmatprep.subr.mxu0 0.0
  %3199 = vmatpush1.msra.mxu0 0.0
  %3200 = vmatprep.subr.mxu0 0.0
  %3201 = vmatpush1.msra.mxu0 0.0
  %3202 = vmatprep.subr.mxu0 0.0
  %3203 = vmatpush1.msra.mxu0 0.0
  %3204 = vmatprep.subr.mxu0 0.0
  %3205 = vmatpush1.msra.mxu0 0.0
  %3206 = vmatprep.subr.mxu0 0.0
  %3207 = vmatpush1.msra.mxu0 0.0
  %3208 = vmatprep.subr.mxu0 0.0
  %3209 = vmatpush1.msra.mxu0 0.0
  %3210 = vmatprep.subr.mxu0 0.0
  %3211 = vmatpush1.msra.mxu0 0.0
  %3212 = vmatprep.subr.mxu0 0.0
  %3213 = vmatpush1.msra.mxu0 0.0
  %3214 = vmatprep.subr.mxu0 0.0
  %3215 = vmatpush1.msra.mxu0 0.0
  %3216 = vmatprep.subr.mxu0 0.0
  %3217 = vmatpush1.msra.mxu0 0.0
  %3218 = vmatprep.subr.mxu0 0.0
  %3219 = vmatpush1.msra.mxu0 0.0
  %3220 = vmatprep.subr.mxu0 0.0
  %3221 = vmatpush1.msra.mxu0 0.0
  %3222 = vmatprep.subr.mxu0 0.0
  %3223 = vmatpush1.msra.mxu0 0.0
  %3224 = vmatprep.subr.mxu0 0.0
  %3225 = vmatpush1.msra.mxu0 0.0
  %3226 = vmatprep.subr.mxu0 0.0
  %3227 = vmatpush1.msra.mxu0 0.0
  %3228 = vmatprep.mubr.f32.mxu0 0.0
  %v3229 = vand.u32 %v486, 4294901760
  %3230 = vmatmul.mubr.f32.gmra.mrb[0].mxu0 %v3229
  %v3231 = vpop.f32.mrb[0].mxu0
  %v3232 = vadd.f32 %v3131, %v3231
  %v3233 = vpop.f32.mrb[0].mxu0
  %v3234 = vadd.f32 %v3133, %v3233
  %3235 = vmatprep.mubr.f32.mxu0 0.0
  %v3236 = vand.u32 %v489, 4294901760
  %3237 = vmatmul.mubr.f32.gmra.mrb[0].mxu0 %v3236
  %v3238 = vpop.f32.mrb[0].mxu0
  %v3239 = vadd.f32 %v3138, %v3238
  %v3240 = vpop.f32.mrb[0].mxu0
  %v3241 = vadd.f32 %v3140, %v3240
  %3242 = vmatprep.mubr.f32.mxu0 0.0
  %v3243 = vand.u32 %v492, 4294901760
  %3244 = vmatmul.mubr.f32.gmra.mrb[0].mxu0 %v3243
  %v3245 = vpop.f32.mrb[0].mxu0
  %v3246 = vadd.f32 %v3145, %v3245
  %v3247 = vpop.f32.mrb[0].mxu0
  %v3248 = vadd.f32 %v3147, %v3247
  %3249 = vmatprep.mubr.f32.mxu0 0.0
  %v3250 = vand.u32 %v495, 4294901760
  %3251 = vmatmul.mubr.f32.gmra.mrb[0].mxu0 %v3250
  %v3252 = vpop.f32.mrb[0].mxu0
  %v3253 = vadd.f32 %v3152, %v3252
  %v3254 = vpop.f32.mrb[0].mxu0
  %v3255 = vadd.f32 %v3154, %v3254
  %3256 = vdwg.mxu0
  %v3257 = vmax.f32 %v1162, 0.0
  %v3258 = vmax.f32 %v1164, 0.0
  %v3259 = vmax.f32 %v1852, 0.0
  %v3260 = vmax.f32 %v1854, 0.0
  %v3261 = vmax.f32 %v2542, 0.0
  %v3262 = vmax.f32 %v2544, 0.0
  %v3263 = vmax.f32 %v3232, 0.0
  %v3264 = vmax.f32 %v3234, 0.0
  %v3265 = vmax.f32 %v1169, 0.0
  %v3266 = vmax.f32 %v1171, 0.0
  %v3267 = vmax.f32 %v1859, 0.0
  %v3268 = vmax.f32 %v1861, 0.0
  %v3269 = vmax.f32 %v2549, 0.0
  %v3270 = vmax.f32 %v2551, 0.0
  %v3271 = vmax.f32 %v3239, 0.0
  %v3272 = vmax.f32 %v3241, 0.0
  %v3273 = vmax.f32 %v1176, 0.0
  %v3274 = vmax.f32 %v1178, 0.0
  %v3275 = vmax.f32 %v1866, 0.0
  %v3276 = vmax.f32 %v1868, 0.0
  %v3277 = vmax.f32 %v2556, 0.0
  %v3278 = vmax.f32 %v2558, 0.0
  %v3279 = vmax.f32 %v3246, 0.0
  %v3280 = vmax.f32 %v3248, 0.0
  %v3281 = vmax.f32 %v1183, 0.0
  %v3282 = vmax.f32 %v1185, 0.0
  %v3283 = vmax.f32 %v1873, 0.0
  %v3284 = vmax.f32 %v1875, 0.0
  %v3285 = vmax.f32 %v2563, 0.0
  %v3286 = vmax.f32 %v2565, 0.0
  %v3287 = vmax.f32 %v3253, 0.0
  %v3288 = vmax.f32 %v3255, 0.0
  %v3289 = vlaneseq
  %v3290 = vand.u32 %v3289, 127
  %3291 = vrot.lane.b32.xlu0 %v3257, 127
  %v3292 = vpop.permute.xlu0 %3291
  %3293 = vrot.lane.b32.xlu0 %v3265, 127
  %v3294 = vpop.permute.xlu0 %3293
  %3295 = vrot.lane.b32.xlu0 %v3273, 127
  %v3296 = vpop.permute.xlu0 %3295
  %3297 = vrot.lane.b32.xlu0 %v3281, 127
  %v3298 = vpop.permute.xlu0 %3297
  %v3299 = vmax.f32 %v3257, %v3292
  %v3300 = vmax.f32 %v3265, %v3294
  %v3301 = vmax.f32 %v3273, %v3296
  %v3302 = vmax.f32 %v3281, %v3298
  %v3303 = vmul.f32 %v3299, %v50
  %v3304 = vmul.f32 %v3300, %v51
  %v3305 = vmul.f32 %v3301, %v52
  %v3306 = vmul.f32 %v3302, %v53
  %3307 = vadd.xlane.f32.xlu0 %v3303
  %v3308 = vpop.xlane.xlu0 %3307
  %3309 = vadd.xlane.f32.xlu0 %v3304
  %v3310 = vpop.xlane.xlu0 %3309
  %3311 = vadd.xlane.f32.xlu0 %v3305
  %v3312 = vpop.xlane.xlu0 %3311
  %3313 = vadd.xlane.f32.xlu0 %v3306
  %v3314 = vpop.xlane.xlu0 %3313
  %v3315 = vadd.f32 %v3308, %v3310
  %v3316 = vadd.f32 %v3315, %v3312
  %v3317 = vadd.f32 %v3316, %v3314
  %v3318 = vrot.slane %v3317, 4
  %v3319 = vadd.f32 %v3317, %v3318
  %v3320 = vrot.slane %v3319, 2
  %v3321 = vadd.f32 %v3319, %v3320
  %v3322 = vrot.slane %v3321, 1
  %v3323 = vadd.f32 %v3321, %v3322
  %vm3324 = vcmp.eq.s32.totalorder %v3290, 0
  %v3325 = vsel %vm3324, %v3323, 0.0
  %v3326 = vadd.f32 %v58, %v3325
  %v3327 = vmul.f32 %v3299, %v54
  %v3328 = vmul.f32 %v3300, %v55
  %v3329 = vmul.f32 %v3301, %v56
  %v3330 = vmul.f32 %v3302, %v57
  %3331 = vadd.xlane.f32.xlu0 %v3327
  %v3332 = vpop.xlane.xlu0 %3331
  %3333 = vadd.xlane.f32.xlu0 %v3328
  %v3334 = vpop.xlane.xlu0 %3333
  %3335 = vadd.xlane.f32.xlu0 %v3329
  %v3336 = vpop.xlane.xlu0 %3335
  %3337 = vadd.xlane.f32.xlu0 %v3330
  %v3338 = vpop.xlane.xlu0 %3337
  %v3339 = vadd.f32 %v3332, %v3334
  %v3340 = vadd.f32 %v3339, %v3336
  %v3341 = vadd.f32 %v3340, %v3338
  %v3342 = vrot.slane %v3341, 4
  %v3343 = vadd.f32 %v3341, %v3342
  %v3344 = vrot.slane %v3343, 2
  %v3345 = vadd.f32 %v3343, %v3344
  %v3346 = vrot.slane %v3345, 1
  %v3347 = vadd.f32 %v3345, %v3346
  %vm3348 = vcmp.eq.s32.totalorder %v3290, 1
  %v3349 = vsel %vm3348, %v3347, 0.0
  %v3350 = vadd.f32 %v3326, %v3349
  %vm3351 = vcmask 8192
  %3352 = vst.msk [vmem:[%s7] sm:$0x1] %vm3351, %v3350
  %3353 = vrot.lane.b32.xlu0 %v3258, 127
  %v3354 = vpop.permute.xlu0 %3353
  %3355 = vrot.lane.b32.xlu0 %v3266, 127
  %v3356 = vpop.permute.xlu0 %3355
  %3357 = vrot.lane.b32.xlu0 %v3274, 127
  %v3358 = vpop.permute.xlu0 %3357
  %3359 = vrot.lane.b32.xlu0 %v3282, 127
  %v3360 = vpop.permute.xlu0 %3359
  %v3361 = vmax.f32 %v3258, %v3354
  %v3362 = vmax.f32 %v3266, %v3356
  %v3363 = vmax.f32 %v3274, %v3358
  %v3364 = vmax.f32 %v3282, %v3360
  %v3365 = vmul.f32 %v3361, %v50
  %v3366 = vmul.f32 %v3362, %v51
  %v3367 = vmul.f32 %v3363, %v52
  %v3368 = vmul.f32 %v3364, %v53
  %3369 = vadd.xlane.f32.xlu0 %v3365
  %v3370 = vpop.xlane.xlu0 %3369
  %3371 = vadd.xlane.f32.xlu0 %v3366
  %v3372 = vpop.xlane.xlu0 %3371
  %3373 = vadd.xlane.f32.xlu0 %v3367
  %v3374 = vpop.xlane.xlu0 %3373
  %3375 = vadd.xlane.f32.xlu0 %v3368
  %v3376 = vpop.xlane.xlu0 %3375
  %v3377 = vadd.f32 %v3370, %v3372
  %v3378 = vadd.f32 %v3377, %v3374
  %v3379 = vadd.f32 %v3378, %v3376
  %v3380 = vrot.slane %v3379, 4
  %v3381 = vadd.f32 %v3379, %v3380
  %v3382 = vrot.slane %v3381, 2
  %v3383 = vadd.f32 %v3381, %v3382
  %v3384 = vrot.slane %v3383, 1
  %v3385 = vadd.f32 %v3383, %v3384
  %v3386 = vsel %vm3324, %v3385, 0.0
  %v3387 = vadd.f32 %v58, %v3386
  %v3388 = vmul.f32 %v3361, %v54
  %v3389 = vmul.f32 %v3362, %v55
  %v3390 = vmul.f32 %v3363, %v56
  %v3391 = vmul.f32 %v3364, %v57
  %3392 = vadd.xlane.f32.xlu0 %v3388
  %v3393 = vpop.xlane.xlu0 %3392
  %3394 = vadd.xlane.f32.xlu0 %v3389
  %v3395 = vpop.xlane.xlu0 %3394
  %3396 = vadd.xlane.f32.xlu0 %v3390
  %v3397 = vpop.xlane.xlu0 %3396
  %3398 = vadd.xlane.f32.xlu0 %v3391
  %v3399 = vpop.xlane.xlu0 %3398
  %v3400 = vadd.f32 %v3393, %v3395
  %v3401 = vadd.f32 %v3400, %v3397
  %v3402 = vadd.f32 %v3401, %v3399
  %v3403 = vrot.slane %v3402, 4
  %v3404 = vadd.f32 %v3402, %v3403
  %v3405 = vrot.slane %v3404, 2
  %v3406 = vadd.f32 %v3404, %v3405
  %v3407 = vrot.slane %v3406, 1
  %v3408 = vadd.f32 %v3406, %v3407
  %v3409 = vsel %vm3348, %v3408, 0.0
  %v3410 = vadd.f32 %v3387, %v3409
  %3411 = vst.msk [vmem:[%s7 + $0x1] sm:$0x1] %vm3351, %v3410
  %3412 = vrot.lane.b32.xlu0 %v3259, 127
  %v3413 = vpop.permute.xlu0 %3412
  %3414 = vrot.lane.b32.xlu0 %v3267, 127
  %v3415 = vpop.permute.xlu0 %3414
  %3416 = vrot.lane.b32.xlu0 %v3275, 127
  %v3417 = vpop.permute.xlu0 %3416
  %3418 = vrot.lane.b32.xlu0 %v3283, 127
  %v3419 = vpop.permute.xlu0 %3418
  %v3420 = vmax.f32 %v3259, %v3413
  %v3421 = vmax.f32 %v3267, %v3415
  %v3422 = vmax.f32 %v3275, %v3417
  %v3423 = vmax.f32 %v3283, %v3419
  %v3424 = vmul.f32 %v3420, %v50
  %v3425 = vmul.f32 %v3421, %v51
  %v3426 = vmul.f32 %v3422, %v52
  %v3427 = vmul.f32 %v3423, %v53
  %3428 = vadd.xlane.f32.xlu0 %v3424
  %v3429 = vpop.xlane.xlu0 %3428
  %3430 = vadd.xlane.f32.xlu0 %v3425
  %v3431 = vpop.xlane.xlu0 %3430
  %3432 = vadd.xlane.f32.xlu0 %v3426
  %v3433 = vpop.xlane.xlu0 %3432
  %3434 = vadd.xlane.f32.xlu0 %v3427
  %v3435 = vpop.xlane.xlu0 %3434
  %v3436 = vadd.f32 %v3429, %v3431
  %v3437 = vadd.f32 %v3436, %v3433
  %v3438 = vadd.f32 %v3437, %v3435
  %v3439 = vrot.slane %v3438, 4
  %v3440 = vadd.f32 %v3438, %v3439
  %v3441 = vrot.slane %v3440, 2
  %v3442 = vadd.f32 %v3440, %v3441
  %v3443 = vrot.slane %v3442, 1
  %v3444 = vadd.f32 %v3442, %v3443
  %v3445 = vsel %vm3324, %v3444, 0.0
  %v3446 = vadd.f32 %v58, %v3445
  %v3447 = vmul.f32 %v3420, %v54
  %v3448 = vmul.f32 %v3421, %v55
  %v3449 = vmul.f32 %v3422, %v56
  %v3450 = vmul.f32 %v3423, %v57
  %3451 = vadd.xlane.f32.xlu0 %v3447
  %v3452 = vpop.xlane.xlu0 %3451
  %3453 = vadd.xlane.f32.xlu0 %v3448
  %v3454 = vpop.xlane.xlu0 %3453
  %3455 = vadd.xlane.f32.xlu0 %v3449
  %v3456 = vpop.xlane.xlu0 %3455
  %3457 = vadd.xlane.f32.xlu0 %v3450
  %v3458 = vpop.xlane.xlu0 %3457
  %v3459 = vadd.f32 %v3452, %v3454
  %v3460 = vadd.f32 %v3459, %v3456
  %v3461 = vadd.f32 %v3460, %v3458
  %v3462 = vrot.slane %v3461, 4
  %v3463 = vadd.f32 %v3461, %v3462
  %v3464 = vrot.slane %v3463, 2
  %v3465 = vadd.f32 %v3463, %v3464
  %v3466 = vrot.slane %v3465, 1
  %v3467 = vadd.f32 %v3465, %v3466
  %v3468 = vsel %vm3348, %v3467, 0.0
  %v3469 = vadd.f32 %v3446, %v3468
  %3470 = vst.msk [vmem:[%s7 + $0x2] sm:$0x1] %vm3351, %v3469
  %3471 = vrot.lane.b32.xlu0 %v3260, 127
  %v3472 = vpop.permute.xlu0 %3471
  %3473 = vrot.lane.b32.xlu0 %v3268, 127
  %v3474 = vpop.permute.xlu0 %3473
  %3475 = vrot.lane.b32.xlu0 %v3276, 127
  %v3476 = vpop.permute.xlu0 %3475
  %3477 = vrot.lane.b32.xlu0 %v3284, 127
  %v3478 = vpop.permute.xlu0 %3477
  %v3479 = vmax.f32 %v3260, %v3472
  %v3480 = vmax.f32 %v3268, %v3474
  %v3481 = vmax.f32 %v3276, %v3476
  %v3482 = vmax.f32 %v3284, %v3478
  %v3483 = vmul.f32 %v3479, %v50
  %v3484 = vmul.f32 %v3480, %v51
  %v3485 = vmul.f32 %v3481, %v52
  %v3486 = vmul.f32 %v3482, %v53
  %3487 = vadd.xlane.f32.xlu0 %v3483
  %v3488 = vpop.xlane.xlu0 %3487
  %3489 = vadd.xlane.f32.xlu0 %v3484
  %v3490 = vpop.xlane.xlu0 %3489
  %3491 = vadd.xlane.f32.xlu0 %v3485
  %v3492 = vpop.xlane.xlu0 %3491
  %3493 = vadd.xlane.f32.xlu0 %v3486
  %v3494 = vpop.xlane.xlu0 %3493
  %v3495 = vadd.f32 %v3488, %v3490
  %v3496 = vadd.f32 %v3495, %v3492
  %v3497 = vadd.f32 %v3496, %v3494
  %v3498 = vrot.slane %v3497, 4
  %v3499 = vadd.f32 %v3497, %v3498
  %v3500 = vrot.slane %v3499, 2
  %v3501 = vadd.f32 %v3499, %v3500
  %v3502 = vrot.slane %v3501, 1
  %v3503 = vadd.f32 %v3501, %v3502
  %v3504 = vsel %vm3324, %v3503, 0.0
  %v3505 = vadd.f32 %v58, %v3504
  %v3506 = vmul.f32 %v3479, %v54
  %v3507 = vmul.f32 %v3480, %v55
  %v3508 = vmul.f32 %v3481, %v56
  %v3509 = vmul.f32 %v3482, %v57
  %3510 = vadd.xlane.f32.xlu0 %v3506
  %v3511 = vpop.xlane.xlu0 %3510
  %3512 = vadd.xlane.f32.xlu0 %v3507
  %v3513 = vpop.xlane.xlu0 %3512
  %3514 = vadd.xlane.f32.xlu0 %v3508
  %v3515 = vpop.xlane.xlu0 %3514
  %3516 = vadd.xlane.f32.xlu0 %v3509
  %v3517 = vpop.xlane.xlu0 %3516
  %v3518 = vadd.f32 %v3511, %v3513
  %v3519 = vadd.f32 %v3518, %v3515
  %v3520 = vadd.f32 %v3519, %v3517
  %v3521 = vrot.slane %v3520, 4
  %v3522 = vadd.f32 %v3520, %v3521
  %v3523 = vrot.slane %v3522, 2
  %v3524 = vadd.f32 %v3522, %v3523
  %v3525 = vrot.slane %v3524, 1
  %v3526 = vadd.f32 %v3524, %v3525
  %v3527 = vsel %vm3348, %v3526, 0.0
  %v3528 = vadd.f32 %v3505, %v3527
  %3529 = vst.msk [vmem:[%s7 + $0x3] sm:$0x1] %vm3351, %v3528
  %3530 = vrot.lane.b32.xlu0 %v3261, 127
  %v3531 = vpop.permute.xlu0 %3530
  %3532 = vrot.lane.b32.xlu0 %v3269, 127
  %v3533 = vpop.permute.xlu0 %3532
  %3534 = vrot.lane.b32.xlu0 %v3277, 127
  %v3535 = vpop.permute.xlu0 %3534
  %3536 = vrot.lane.b32.xlu0 %v3285, 127
  %v3537 = vpop.permute.xlu0 %3536
  %v3538 = vmax.f32 %v3261, %v3531
  %v3539 = vmax.f32 %v3269, %v3533
  %v3540 = vmax.f32 %v3277, %v3535
  %v3541 = vmax.f32 %v3285, %v3537
  %v3542 = vmul.f32 %v3538, %v50
  %v3543 = vmul.f32 %v3539, %v51
  %v3544 = vmul.f32 %v3540, %v52
  %v3545 = vmul.f32 %v3541, %v53
  %3546 = vadd.xlane.f32.xlu0 %v3542
  %v3547 = vpop.xlane.xlu0 %3546
  %3548 = vadd.xlane.f32.xlu0 %v3543
  %v3549 = vpop.xlane.xlu0 %3548
  %3550 = vadd.xlane.f32.xlu0 %v3544
  %v3551 = vpop.xlane.xlu0 %3550
  %3552 = vadd.xlane.f32.xlu0 %v3545
  %v3553 = vpop.xlane.xlu0 %3552
  %v3554 = vadd.f32 %v3547, %v3549
  %v3555 = vadd.f32 %v3554, %v3551
  %v3556 = vadd.f32 %v3555, %v3553
  %v3557 = vrot.slane %v3556, 4
  %v3558 = vadd.f32 %v3556, %v3557
  %v3559 = vrot.slane %v3558, 2
  %v3560 = vadd.f32 %v3558, %v3559
  %v3561 = vrot.slane %v3560, 1
  %v3562 = vadd.f32 %v3560, %v3561
  %v3563 = vsel %vm3324, %v3562, 0.0
  %v3564 = vadd.f32 %v58, %v3563
  %v3565 = vmul.f32 %v3538, %v54
  %v3566 = vmul.f32 %v3539, %v55
  %v3567 = vmul.f32 %v3540, %v56
  %v3568 = vmul.f32 %v3541, %v57
  %3569 = vadd.xlane.f32.xlu0 %v3565
  %v3570 = vpop.xlane.xlu0 %3569
  %3571 = vadd.xlane.f32.xlu0 %v3566
  %v3572 = vpop.xlane.xlu0 %3571
  %3573 = vadd.xlane.f32.xlu0 %v3567
  %v3574 = vpop.xlane.xlu0 %3573
  %3575 = vadd.xlane.f32.xlu0 %v3568
  %v3576 = vpop.xlane.xlu0 %3575
  %v3577 = vadd.f32 %v3570, %v3572
  %v3578 = vadd.f32 %v3577, %v3574
  %v3579 = vadd.f32 %v3578, %v3576
  %v3580 = vrot.slane %v3579, 4
  %v3581 = vadd.f32 %v3579, %v3580
  %v3582 = vrot.slane %v3581, 2
  %v3583 = vadd.f32 %v3581, %v3582
  %v3584 = vrot.slane %v3583, 1
  %v3585 = vadd.f32 %v3583, %v3584
  %v3586 = vsel %vm3348, %v3585, 0.0
  %v3587 = vadd.f32 %v3564, %v3586
  %3588 = vst.msk [vmem:[%s7 + $0x4] sm:$0x1] %vm3351, %v3587
  %3589 = vrot.lane.b32.xlu0 %v3262, 127
  %v3590 = vpop.permute.xlu0 %3589
  %3591 = vrot.lane.b32.xlu0 %v3270, 127
  %v3592 = vpop.permute.xlu0 %3591
  %3593 = vrot.lane.b32.xlu0 %v3278, 127
  %v3594 = vpop.permute.xlu0 %3593
  %3595 = vrot.lane.b32.xlu0 %v3286, 127
  %v3596 = vpop.permute.xlu0 %3595
  %v3597 = vmax.f32 %v3262, %v3590
  %v3598 = vmax.f32 %v3270, %v3592
  %v3599 = vmax.f32 %v3278, %v3594
  %v3600 = vmax.f32 %v3286, %v3596
  %v3601 = vmul.f32 %v3597, %v50
  %v3602 = vmul.f32 %v3598, %v51
  %v3603 = vmul.f32 %v3599, %v52
  %v3604 = vmul.f32 %v3600, %v53
  %3605 = vadd.xlane.f32.xlu0 %v3601
  %v3606 = vpop.xlane.xlu0 %3605
  %3607 = vadd.xlane.f32.xlu0 %v3602
  %v3608 = vpop.xlane.xlu0 %3607
  %3609 = vadd.xlane.f32.xlu0 %v3603
  %v3610 = vpop.xlane.xlu0 %3609
  %3611 = vadd.xlane.f32.xlu0 %v3604
  %v3612 = vpop.xlane.xlu0 %3611
  %v3613 = vadd.f32 %v3606, %v3608
  %v3614 = vadd.f32 %v3613, %v3610
  %v3615 = vadd.f32 %v3614, %v3612
  %v3616 = vrot.slane %v3615, 4
  %v3617 = vadd.f32 %v3615, %v3616
  %v3618 = vrot.slane %v3617, 2
  %v3619 = vadd.f32 %v3617, %v3618
  %v3620 = vrot.slane %v3619, 1
  %v3621 = vadd.f32 %v3619, %v3620
  %v3622 = vsel %vm3324, %v3621, 0.0
  %v3623 = vadd.f32 %v58, %v3622
  %v3624 = vmul.f32 %v3597, %v54
  %v3625 = vmul.f32 %v3598, %v55
  %v3626 = vmul.f32 %v3599, %v56
  %v3627 = vmul.f32 %v3600, %v57
  %3628 = vadd.xlane.f32.xlu0 %v3624
  %v3629 = vpop.xlane.xlu0 %3628
  %3630 = vadd.xlane.f32.xlu0 %v3625
  %v3631 = vpop.xlane.xlu0 %3630
  %3632 = vadd.xlane.f32.xlu0 %v3626
  %v3633 = vpop.xlane.xlu0 %3632
  %3634 = vadd.xlane.f32.xlu0 %v3627
  %v3635 = vpop.xlane.xlu0 %3634
  %v3636 = vadd.f32 %v3629, %v3631
  %v3637 = vadd.f32 %v3636, %v3633
  %v3638 = vadd.f32 %v3637, %v3635
  %v3639 = vrot.slane %v3638, 4
  %v3640 = vadd.f32 %v3638, %v3639
  %v3641 = vrot.slane %v3640, 2
  %v3642 = vadd.f32 %v3640, %v3641
  %v3643 = vrot.slane %v3642, 1
  %v3644 = vadd.f32 %v3642, %v3643
  %v3645 = vsel %vm3348, %v3644, 0.0
  %v3646 = vadd.f32 %v3623, %v3645
  %3647 = vst.msk [vmem:[%s7 + $0x5] sm:$0x1] %vm3351, %v3646
  %3648 = vrot.lane.b32.xlu0 %v3263, 127
  %v3649 = vpop.permute.xlu0 %3648
  %3650 = vrot.lane.b32.xlu0 %v3271, 127
  %v3651 = vpop.permute.xlu0 %3650
  %3652 = vrot.lane.b32.xlu0 %v3279, 127
  %v3653 = vpop.permute.xlu0 %3652
  %3654 = vrot.lane.b32.xlu0 %v3287, 127
  %v3655 = vpop.permute.xlu0 %3654
  %v3656 = vmax.f32 %v3263, %v3649
  %v3657 = vmax.f32 %v3271, %v3651
  %v3658 = vmax.f32 %v3279, %v3653
  %v3659 = vmax.f32 %v3287, %v3655
  %v3660 = vmul.f32 %v3656, %v50
  %v3661 = vmul.f32 %v3657, %v51
  %v3662 = vmul.f32 %v3658, %v52
  %v3663 = vmul.f32 %v3659, %v53
  %3664 = vadd.xlane.f32.xlu0 %v3660
  %v3665 = vpop.xlane.xlu0 %3664
  %3666 = vadd.xlane.f32.xlu0 %v3661
  %v3667 = vpop.xlane.xlu0 %3666
  %3668 = vadd.xlane.f32.xlu0 %v3662
  %v3669 = vpop.xlane.xlu0 %3668
  %3670 = vadd.xlane.f32.xlu0 %v3663
  %v3671 = vpop.xlane.xlu0 %3670
  %v3672 = vadd.f32 %v3665, %v3667
  %v3673 = vadd.f32 %v3672, %v3669
  %v3674 = vadd.f32 %v3673, %v3671
  %v3675 = vrot.slane %v3674, 4
  %v3676 = vadd.f32 %v3674, %v3675
  %v3677 = vrot.slane %v3676, 2
  %v3678 = vadd.f32 %v3676, %v3677
  %v3679 = vrot.slane %v3678, 1
  %v3680 = vadd.f32 %v3678, %v3679
  %v3681 = vsel %vm3324, %v3680, 0.0
  %v3682 = vadd.f32 %v58, %v3681
  %v3683 = vmul.f32 %v3656, %v54
  %v3684 = vmul.f32 %v3657, %v55
  %v3685 = vmul.f32 %v3658, %v56
  %v3686 = vmul.f32 %v3659, %v57
  %3687 = vadd.xlane.f32.xlu0 %v3683
  %v3688 = vpop.xlane.xlu0 %3687
  %3689 = vadd.xlane.f32.xlu0 %v3684
  %v3690 = vpop.xlane.xlu0 %3689
  %3691 = vadd.xlane.f32.xlu0 %v3685
  %v3692 = vpop.xlane.xlu0 %3691
  %3693 = vadd.xlane.f32.xlu0 %v3686
  %v3694 = vpop.xlane.xlu0 %3693
  %v3695 = vadd.f32 %v3688, %v3690
  %v3696 = vadd.f32 %v3695, %v3692
  %v3697 = vadd.f32 %v3696, %v3694
  %v3698 = vrot.slane %v3697, 4
  %v3699 = vadd.f32 %v3697, %v3698
  %v3700 = vrot.slane %v3699, 2
  %v3701 = vadd.f32 %v3699, %v3700
  %v3702 = vrot.slane %v3701, 1
  %v3703 = vadd.f32 %v3701, %v3702
  %v3704 = vsel %vm3348, %v3703, 0.0
  %v3705 = vadd.f32 %v3682, %v3704
  %3706 = vst.msk [vmem:[%s7 + $0x6] sm:$0x1] %vm3351, %v3705
  %3707 = vrot.lane.b32.xlu0 %v3264, 127
  %v3708 = vpop.permute.xlu0 %3707
  %3709 = vrot.lane.b32.xlu0 %v3272, 127
  %v3710 = vpop.permute.xlu0 %3709
  %3711 = vrot.lane.b32.xlu0 %v3280, 127
  %v3712 = vpop.permute.xlu0 %3711
  %3713 = vrot.lane.b32.xlu0 %v3288, 127
  %v3714 = vpop.permute.xlu0 %3713
  %v3715 = vmax.f32 %v3264, %v3708
  %v3716 = vmax.f32 %v3272, %v3710
  %v3717 = vmax.f32 %v3280, %v3712
  %v3718 = vmax.f32 %v3288, %v3714
  %v3719 = vmul.f32 %v3715, %v50
  %v3720 = vmul.f32 %v3716, %v51
  %v3721 = vmul.f32 %v3717, %v52
  %v3722 = vmul.f32 %v3718, %v53
  %3723 = vadd.xlane.f32.xlu0 %v3719
  %v3724 = vpop.xlane.xlu0 %3723
  %3725 = vadd.xlane.f32.xlu0 %v3720
  %v3726 = vpop.xlane.xlu0 %3725
  %3727 = vadd.xlane.f32.xlu0 %v3721
  %v3728 = vpop.xlane.xlu0 %3727
  %3729 = vadd.xlane.f32.xlu0 %v3722
  %v3730 = vpop.xlane.xlu0 %3729
  %v3731 = vadd.f32 %v3724, %v3726
  %v3732 = vadd.f32 %v3731, %v3728
  %v3733 = vadd.f32 %v3732, %v3730
  %v3734 = vrot.slane %v3733, 4
  %v3735 = vadd.f32 %v3733, %v3734
  %v3736 = vrot.slane %v3735, 2
  %v3737 = vadd.f32 %v3735, %v3736
  %v3738 = vrot.slane %v3737, 1
  %v3739 = vadd.f32 %v3737, %v3738
  %v3740 = vsel %vm3324, %v3739, 0.0
  %v3741 = vadd.f32 %v58, %v3740
  %v3742 = vmul.f32 %v3715, %v54
  %v3743 = vmul.f32 %v3716, %v55
  %v3744 = vmul.f32 %v3717, %v56
  %v3745 = vmul.f32 %v3718, %v57
  %3746 = vadd.xlane.f32.xlu0 %v3742
  %v3747 = vpop.xlane.xlu0 %3746
  %3748 = vadd.xlane.f32.xlu0 %v3743
  %v3749 = vpop.xlane.xlu0 %3748
  %3750 = vadd.xlane.f32.xlu0 %v3744
  %v3751 = vpop.xlane.xlu0 %3750
  %3752 = vadd.xlane.f32.xlu0 %v3745
  %v3753 = vpop.xlane.xlu0 %3752
  %v3754 = vadd.f32 %v3747, %v3749
  %v3755 = vadd.f32 %v3754, %v3751
  %v3756 = vadd.f32 %v3755, %v3753
  %v3757 = vrot.slane %v3756, 4
  %v3758 = vadd.f32 %v3756, %v3757
  %v3759 = vrot.slane %v3758, 2
  %v3760 = vadd.f32 %v3758, %v3759
  %v3761 = vrot.slane %v3760, 1
  %v3762 = vadd.f32 %v3760, %v3761
  %v3763 = vsel %vm3348, %v3762, 0.0
  %v3764 = vadd.f32 %v3741, %v3763
  %3765 = vst.msk [vmem:[%s7 + $0x7] sm:$0x1] %vm3351, %v3764
  // Predicated region
  $region30: #{c1d_forward.1} parent=0 // pred_check
    _
  $region31: #{c1d_forward.1} parent=0 // pred_check_branch
    %3767 = sbr.rel (0) target = $region33
  $region32: #{c1d_forward.1} parent=0 // pred_region
    _
  $region33: #{c1d_forward.1} parent=0 // pred_fallthru
    _
  // Predicated region
  $region34: #{c1d_forward.1} parent=0 // pred_check
    _
  $region35: #{c1d_forward.1} parent=0 // pred_check_branch
    %3769 = sbr.rel (0) target = $region37
  $region36: #{c1d_forward.1} parent=0 // pred_region
    _
  $region37: #{c1d_forward.1} parent=0 // pred_fallthru
    _

</llo_original>
